<compile_context>
chip_gen: v6e
topology: v6e:2x2x1
jax: 0.10.0
libtpu: 0.0.40
codegen_flags: <defaults>
</compile_context>

<pallas_src>
import jax
import jax.numpy as jnp
from jax.experimental import pallas as pl
from jax.experimental.pallas import tpu as pltpu

EPS = 1e-5
LANE = 128
MATMUL_DTYPE = jnp.bfloat16        # MXU operand dtype (accumulation stays f32)
VMEM_LIMIT = 32 * 1024 * 1024      # safe on v5e/v6e/v7x; raise for very large tiles


# ------------------------------ small helpers ------------------------------ #

def _round_up(x, m=LANE):
    return ((x + m - 1) // m) * m


def _pick_tm(m, prefer=512):
    """Largest row tile <= prefer that divides m, preferring >= 2 grid steps (megacore)."""
    cands = [t for t in (2048, 1024, 512, 256, 128, 64, 32, 16, 8) if t <= prefer]
    for tm in cands:
        if m % tm == 0 and m // tm >= 2:
            return tm
    for tm in cands:
        if m % tm == 0:
            return tm
    return m  # fallback: single full-extent block


def _cparams(grid_axes=1):
    return pltpu.CompilerParams(
        dimension_semantics=("parallel",) * grid_axes,
        vmem_limit_bytes=VMEM_LIMIT)


# ----------------------------- Pallas kernels ------------------------------ #

def _stats_kernel(x_ref, sum_ref, sq_ref):
    """Per-channel partial sum / sum-of-squares for this row tile."""
    x = x_ref[...]
    c = x.shape[-1]
    s = jnp.sum(x, axis=0, keepdims=True)
    q = jnp.sum(x * x, axis=0, keepdims=True)
    sum_ref[...] = jnp.broadcast_to(s[None], (1, 8, c))
    sq_ref[...] = jnp.broadcast_to(q[None], (1, 8, c))


def _cbr1_kernel(x_ref, s_ref, t_ref, w_ref, b_ref, y_ref, sum_ref, sq_ref):
    """Fused BN-ReLU-1x1conv; also emits partial (sum, sumsq) of its own output."""
    a = jnp.maximum(x_ref[...] * s_ref[...] + t_ref[...], 0.0)          # f32 elementwise
    y = jnp.dot(a.astype(MATMUL_DTYPE), w_ref[...],
                preferred_element_type=jnp.float32) + b_ref[...]
    y_ref[...] = y
    c = y.shape[-1]
    s = jnp.sum(y, axis=0, keepdims=True)
    q = jnp.sum(y * y, axis=0, keepdims=True)
    sum_ref[...] = jnp.broadcast_to(s[None], (1, 8, c))
    sq_ref[...] = jnp.broadcast_to(q[None], (1, 8, c))


def _cbr2_kernel(x_ref, s_ref, t_ref, w_ref, b_ref, y_ref, sum_ref, sq_ref):
    """Fused BN-ReLU + 3x3 'same' conv done fully in-kernel for one image.

    x_ref: (1, H, W, C) un-normalized input; w_ref: (9, C, C) taps (kh-major);
    y_ref: (1, H, W, C); plus partial (sum, sumsq) of the output over H*W pixels."""
    _, hh, ww, c = x_ref.shape
    a = jnp.maximum(x_ref[0] * s_ref[...] + t_ref[...], 0.0)            # (H, W, C) f32
    # zero-pad spatially *after* BN-ReLU (conv pads with zeros, not with relu(shift))
    zrow = jnp.zeros((1, ww, c), jnp.float32)
    zcol = jnp.zeros((hh + 2, 1, c), jnp.float32)
    ap = jnp.concatenate([zrow, a, zrow], axis=0)                       # (H+2, W,   C)
    ap = jnp.concatenate([zcol, ap, zcol], axis=1)                      # (H+2, W+2, C)
    acc = jnp.zeros((hh * ww, c), jnp.float32)
    for kh in range(3):
        for kw in range(3):
            tap = ap[kh:kh + hh, kw:kw + ww, :].reshape(hh * ww, c)
            acc = acc + jnp.dot(tap.astype(MATMUL_DTYPE), w_ref[kh * 3 + kw],
                                preferred_element_type=jnp.float32)
    y = acc + b_ref[...]
    y_ref[...] = y.reshape(1, hh, ww, c)
    s = jnp.sum(y, axis=0, keepdims=True)
    q = jnp.sum(y * y, axis=0, keepdims=True)
    sum_ref[...] = jnp.broadcast_to(s[None], (1, 8, c))
    sq_ref[...] = jnp.broadcast_to(q[None], (1, 8, c))


def _cbr3_skipconv_kernel(x_ref, s_ref, t_ref, w_ref, b_ref,
                          xin_ref, ws_ref, bs_ref, o_ref):
    """Final fused BN-ReLU-1x1conv with the 1x1-conv skip branch fused in."""
    a = jnp.maximum(x_ref[...] * s_ref[...] + t_ref[...], 0.0)
    out = jnp.dot(a.astype(MATMUL_DTYPE), w_ref[...],
                  preferred_element_type=jnp.float32) + b_ref[...]
    out = out + jnp.dot(xin_ref[...].astype(MATMUL_DTYPE), ws_ref[...],
                        preferred_element_type=jnp.float32) + bs_ref[...]
    o_ref[...] = out


def _cbr3_skipid_kernel(x_ref, s_ref, t_ref, w_ref, b_ref, xin_ref, o_ref):
    """Final fused BN-ReLU-1x1conv with the identity skip fused in."""
    a = jnp.maximum(x_ref[...] * s_ref[...] + t_ref[...], 0.0)
    o_ref[...] = (jnp.dot(a.astype(MATMUL_DTYPE), w_ref[...],
                          preferred_element_type=jnp.float32)
                  + b_ref[...] + xin_ref[...])


# ------------------------------ Pallas wrappers ----------------------------- #

def stats_partial(x2d, tm):
    m, c = x2d.shape
    nt = m // tm
    row = pl.BlockSpec((tm, c), lambda i: (i, 0))
    stat = pl.BlockSpec((1, 8, c), lambda i: (i, 0, 0))
    stat_shape = jax.ShapeDtypeStruct((nt, 8, c), jnp.float32)
    return pl.pallas_call(
        _stats_kernel,
        out_shape=(stat_shape, stat_shape),
        grid=(nt,),
        in_specs=[row],
        out_specs=(stat, stat),
        compiler_params=_cparams(),
        cost_estimate=pl.CostEstimate(flops=3 * m * c, transcendentals=0,
                                      bytes_accessed=4 * (m * c + 2 * nt * 8 * c)),
    )(x2d)


def finish_stats(psum, psq, count, gamma, beta):
    """Combine per-tile partial (sum, sumsq) into BN scale/shift (tiny C-length glue)."""
    total = jnp.sum(psum[:, 0, :], axis=0)
    totsq = jnp.sum(psq[:, 0, :], axis=0)
    mean = total / count
    var = jnp.maximum(totsq / count - mean * mean, 0.0)   # biased var (BN training forward)
    scale = gamma / jnp.sqrt(var + EPS)
    shift = beta - mean * scale
    return scale.reshape(1, -1), shift.reshape(1, -1)


def cbr1(x2d, scale, shift, w_bf, bias, tm):
    m, cin = x2d.shape
    cout = w_bf.shape[1]
    nt = m // tm
    row_in = pl.BlockSpec((tm, cin), lambda i: (i, 0))
    row_out = pl.BlockSpec((tm, cout), lambda i: (i, 0))
    vec_in = pl.BlockSpec((1, cin), lambda i: (0, 0))
    vec_out = pl.BlockSpec((1, cout), lambda i: (0, 0))
    w_spec = pl.BlockSpec((cin, cout), lambda i: (0, 0))
    stat = pl.BlockSpec((1, 8, cout), lambda i: (i, 0, 0))
    stat_shape = jax.ShapeDtypeStruct((nt, 8, cout), jnp.float32)
    return pl.pallas_call(
        _cbr1_kernel,
        out_shape=(jax.ShapeDtypeStruct((m, cout), jnp.float32), stat_shape, stat_shape),
        grid=(nt,),
        in_specs=[row_in, vec_in, vec_in, w_spec, vec_out],
        out_specs=(row_out, stat, stat),
        compiler_params=_cparams(),
        cost_estimate=pl.CostEstimate(
            flops=2 * m * cin * cout + 6 * m * cout, transcendentals=0,
            bytes_accessed=4 * m * (cin + cout) + 2 * cin * cout),
    )(x2d, scale, shift, w_bf, bias)


def cbr2(y1_2d, scale, shift, w9_bf, bias, n, h, w):
    c = y1_2d.shape[-1]
    x4 = y1_2d.reshape(n, h, w, c)          # metadata reshape only (NHWC row order)
    img = pl.BlockSpec((1, h, w, c), lambda b: (b, 0, 0, 0))
    vec = pl.BlockSpec((1, c), lambda b: (0, 0))
    wsp = pl.BlockSpec((9, c, c), lambda b: (0, 0, 0))
    stat = pl.BlockSpec((1, 8, c), lambda b: (b, 0, 0))
    stat_shape = jax.ShapeDtypeStruct((n, 8, c), jnp.float32)
    y2, psum, psq = pl.pallas_call(
        _cbr2_kernel,
        out_shape=(jax.ShapeDtypeStruct((n, h, w, c), jnp.float32), stat_shape, stat_shape),
        grid=(n,),
        in_specs=[img, vec, vec, wsp, vec],
        out_specs=(img, stat, stat),
        compiler_params=_cparams(),
        cost_estimate=pl.CostEstimate(
            flops=18 * n * h * w * c * c + 8 * n * h * w * c, transcendentals=0,
            bytes_accessed=8 * n * h * w * c + 18 * c * c),
    )(x4, scale, shift, w9_bf, bias)
    return y2.reshape(n * h * w, c), psum, psq


def cbr3_skip(y2_2d, scale, shift, w_bf, bias, x2d, ws_bf, bs, tm):
    m, cmid = y2_2d.shape
    cout = w_bf.shape[1]
    cin = x2d.shape[1]
    nt = m // tm
    row_mid = pl.BlockSpec((tm, cmid), lambda i: (i, 0))
    row_in = pl.BlockSpec((tm, cin), lambda i: (i, 0))
    row_out = pl.BlockSpec((tm, cout), lambda i: (i, 0))
    vec_mid = pl.BlockSpec((1, cmid), lambda i: (0, 0))
    vec_out = pl.BlockSpec((1, cout), lambda i: (0, 0))
    w_spec = pl.BlockSpec((cmid, cout), lambda i: (0, 0))

    if ws_bf is None:
        assert cin == cout, "identity skip requires matching (padded) channel counts"
        kernel = _cbr3_skipid_kernel
        in_specs = [row_mid, vec_mid, vec_mid, w_spec, vec_out, row_in]
        args = (y2_2d, scale, shift, w_bf, bias, x2d)
        flops = 2 * m * cmid * cout + 5 * m * cout
    else:
        kernel = _cbr3_skipconv_kernel
        ws_spec = pl.BlockSpec((cin, cout), lambda i: (0, 0))
        in_specs = [row_mid, vec_mid, vec_mid, w_spec, vec_out, row_in, ws_spec, vec_out]
        args = (y2_2d, scale, shift, w_bf, bias, x2d, ws_bf, bs)
        flops = 2 * m * (cmid + cin) * cout + 6 * m * cout

    return pl.pallas_call(
        kernel,
        out_shape=jax.ShapeDtypeStruct((m, cout), jnp.float32),
        grid=(nt,),
        in_specs=in_specs,
        out_specs=row_out,
        compiler_params=_cparams(),
        cost_estimate=pl.CostEstimate(
            flops=flops, transcendentals=0,
            bytes_accessed=4 * m * (cmid + cin + cout)),
    )(*args)


# ------------------------------ Residual module ----------------------------- #

def init_params(key, in_channels, out_channels):
    mid = out_channels // 2
    ks = jax.random.split(key, 16)
    n = lambda k, shape, s=1.0: s * jax.random.normal(k, shape, jnp.float32)
    p = dict(
        g1=1.0 + 0.1 * n(ks[0], (in_channels,)), b1=0.1 * n(ks[1], (in_channels,)),
        g2=1.0 + 0.1 * n(ks[2], (mid,)),         b2=0.1 * n(ks[3], (mid,)),
        g3=1.0 + 0.1 * n(ks[4], (mid,)),         b3=0.1 * n(ks[5], (mid,)),
        # conv1 (1x1): stored (Cin, mid) == PyTorch weight.T
        w1=n(ks[6], (in_channels, mid), 1.0 / jnp.sqrt(in_channels)),
        bias1=0.05 * n(ks[7], (mid,)),
        # conv2 (3x3): stored (kH, kW, Cin, Cout)  (HWIO)
        w2=n(ks[8], (3, 3, mid, mid), 1.0 / jnp.sqrt(9 * mid)),
        bias2=0.05 * n(ks[9], (mid,)),
        # conv3 (1x1): stored (mid, Cout)
        w3=n(ks[10], (mid, out_channels), 1.0 / jnp.sqrt(mid)),
        bias3=0.05 * n(ks[11], (out_channels,)),
    )
    if in_channels != out_channels:
        p["ws"] = n(ks[12], (in_channels, out_channels), 1.0 / jnp.sqrt(in_channels))
        p["biass"] = 0.05 * n(ks[13], (out_channels,))
    else:
        p["ws"] = None
        p["biass"] = None
    return p


def _pad_vec(v, cp):
    return jnp.pad(v, (0, cp - v.shape[0]))


@jax.jit
def residual_forward(x_nchw, params):
    n, cin, h, w = x_nchw.shape
    mid = params["w1"].shape[1]
    cout = params["w3"].shape[1]
    cin_p, mid_p, cout_p = _round_up(cin), _round_up(mid), _round_up(cout)
    m = n * h * w
    tm = _pick_tm(m)

    # NCHW -> NHWC, pad channels to a lane multiple (128).  Padded channels stay exactly
    # zero through every stage (gamma/beta/weights/biases are zero-padded) and are sliced off.
    x = jnp.transpose(x_nchw, (0, 2, 3, 1))
    x = jnp.pad(x, ((0, 0), (0, 0), (0, 0), (0, cin_p - cin)))
    x2d = x.reshape(m, cin_p)

    g1, b1 = _pad_vec(params["g1"], cin_p), _pad_vec(params["b1"], cin_p)
    g2, b2 = _pad_vec(params["g2"], mid_p), _pad_vec(params["b2"], mid_p)
    g3, b3 = _pad_vec(params["g3"], mid_p), _pad_vec(params["b3"], mid_p)
    w1 = jnp.pad(params["w1"], ((0, cin_p - cin), (0, mid_p - mid))).astype(MATMUL_DTYPE)
    w2 = jnp.pad(params["w2"], ((0, 0), (0, 0), (0, mid_p - mid), (0, mid_p - mid)))
    w2 = w2.reshape(9, mid_p, mid_p).astype(MATMUL_DTYPE)
    w3 = jnp.pad(params["w3"], ((0, mid_p - mid), (0, cout_p - cout))).astype(MATMUL_DTYPE)
    bias1 = _pad_vec(params["bias1"], mid_p).reshape(1, mid_p)
    bias2 = _pad_vec(params["bias2"], mid_p).reshape(1, mid_p)
    bias3 = _pad_vec(params["bias3"], cout_p).reshape(1, cout_p)

    # BN1 stats: one tiled, pipelined pass over x (partials combined in tiny glue).
    p0s, p0q = stats_partial(x2d, tm)
    s1, t1 = finish_stats(p0s, p0q, m, g1, b1)

    # cbr1: fused BN1-ReLU-1x1conv, emits partial stats of y1 (for BN2).
    y1, p1s, p1q = cbr1(x2d, s1, t1, w1, bias1, tm)
    s2, t2 = finish_stats(p1s, p1q, m, g2, b2)

    # cbr2: fused BN2-ReLU-3x3conv fully in-kernel (no materialized im2col),
    # emits partial stats of y2 (for BN3).
    y2, p2s, p2q = cbr2(y1, s2, t2, w2, bias2, n, h, w)
    s3, t3 = finish_stats(p2s, p2q, m, g3, b3)

    # cbr3 + skip fused into one kernel (1x1-conv skip or identity add).
    if params["ws"] is None:
        out2d = cbr3_skip(y2, s3, t3, w3, bias3, x2d, None, None, tm)
    else:
        ws = jnp.pad(params["ws"], ((0, cin_p - cin), (0, cout_p - cout))).astype(MATMUL_DTYPE)
        bs = _pad_vec(params["biass"], cout_p).reshape(1, cout_p)
        out2d = cbr3_skip(y2, s3, t3, w3, bias3, x2d, ws, bs, tm)

    out = out2d.reshape(n, h, w, cout_p)[..., :cout]
    return jnp.transpose(out, (0, 3, 1, 2))               # back to NCHW


# ------------------------------- pure-JAX reference ------------------------- #

def residual_reference(x, p, matmul_dtype=jnp.float32):
    """Reference with the same conv-operand precision as the kernel path (f32 accumulate)."""
    def bn_relu_ref(x, g, b):
        mean = jnp.mean(x, axis=(0, 2, 3), keepdims=True)
        var = jnp.mean((x - mean) ** 2, axis=(0, 2, 3), keepdims=True)
        xn = (x - mean) / jnp.sqrt(var + EPS)
        return jnp.maximum(xn * g[None, :, None, None] + b[None, :, None, None], 0.0)

    def conv_ref(x, w_oihw, bias, pad):
        y = jax.lax.conv_general_dilated(
            x.astype(matmul_dtype), w_oihw.astype(matmul_dtype), (1, 1),
            [(pad, pad), (pad, pad)],
            dimension_numbers=("NCHW", "OIHW", "NCHW"),
            preferred_element_type=jnp.float32)
        return y + bias[None, :, None, None]

    w1 = jnp.transpose(p["w1"])[:, :, None, None]
    w2 = jnp.transpose(p["w2"], (3, 2, 0, 1))
    w3 = jnp.transpose(p["w3"])[:, :, None, None]

    h = conv_ref(bn_relu_ref(x, p["g1"], p["b1"]), w1, p["bias1"], 0)
    h = conv_ref(bn_relu_ref(h, p["g2"], p["b2"]), w2, p["bias2"], 1)
    h = conv_ref(bn_relu_ref(h, p["g3"], p["b3"]), w3, p["bias3"], 0)
    if p["ws"] is None:
        s = x
    else:
        s = conv_ref(x, jnp.transpose(p["ws"])[:, :, None, None], p["biass"], 0)
    return h + s


# ------------------------------------ main ---------------------------------- #

if __name__ == "__main__":
    N, Cin, H, W = 2, 4, 16, 16
    Cout = 8

    x = jax.random.normal(jax.random.PRNGKey(0), (N, Cin, H, W), jnp.float32)
    params = init_params(jax.random.PRNGKey(1), Cin, Cout)

    y = jax.block_until_ready(residual_forward(x, params))
    assert y.shape == (N, Cout, H, W), y.shape

    # Compare against a reference that uses the same bf16 matmul-operand precision.
    # Tolerance covers occasional one-ulp bf16 rounding flips amplified through the
    # three BatchNorm renormalizations (structural bugs would be O(1) mismatches).
    y_ref = residual_reference(x, params, matmul_dtype=MATMUL_DTYPE)
    max_err = float(jnp.max(jnp.abs(y - y_ref)))
    assert max_err < 5e-2, f"mismatch vs matched-precision reference: {max_err}"

    print("KERNEL_OK")
</pallas_src>

<mosaic_0001>
module attributes {stable_mosaic.version = 11 : i64} {
  func.func @_stats_kernel(%arg0: i32, %arg1: memref<256x128xf32, #tpu.memory_space<vmem>>, %arg2: memref<1x8x128xf32, #tpu.memory_space<vmem>>, %arg3: memref<1x8x128xf32, #tpu.memory_space<vmem>>) attributes {dimension_semantics = [#tpu.dimension_semantics<parallel>], iteration_bounds = array<i64: 2>, scalar_prefetch = 0 : i64, scratch_operands = 0 : i64, tpu.core_type = #tpu.core_type<tc>, window_params = [{transform_indices = @transform_0, window_bounds = array<i64: 256, 128>}, {transform_indices = @transform_1, window_bounds = array<i64: 1, 8, 128>}, {transform_indices = @transform_2, window_bounds = array<i64: 1, 8, 128>}]} {
    %c0 = arith.constant 0 : index
    %c0_0 = arith.constant 0 : index
    %0 = vector.load %arg1[%c0, %c0_0] : memref<256x128xf32, #tpu.memory_space<vmem>>, vector<256x128xf32>
    %cst = arith.constant dense<0.000000e+00> : vector<128xf32>
    %1 = vector.multi_reduction <add>, %0, %cst [0] : vector<256x128xf32> to vector<128xf32>
    %2 = vector.shape_cast %1 : vector<128xf32> to vector<1x128xf32>
    %3 = arith.mulf %0, %0 : vector<256x128xf32>
    %cst_1 = arith.constant dense<0.000000e+00> : vector<128xf32>
    %4 = vector.multi_reduction <add>, %3, %cst_1 [0] : vector<256x128xf32> to vector<128xf32>
    %5 = vector.shape_cast %4 : vector<128xf32> to vector<1x128xf32>
    %6 = vector.shape_cast %2 : vector<1x128xf32> to vector<1x1x128xf32>
    %7 = vector.shape_cast %6 : vector<1x1x128xf32> to vector<1x1x128xf32>
    %8 = vector.broadcast %7 : vector<1x1x128xf32> to vector<1x8x128xf32>
    %c0_2 = arith.constant 0 : index
    %c0_3 = arith.constant 0 : index
    %c0_4 = arith.constant 0 : index
    %9 = vector.load %arg2[%c0_2, %c0_3, %c0_4] : memref<1x8x128xf32, #tpu.memory_space<vmem>>, vector<1x8x128xf32>
    tpu.vector_store %arg2[%c0_2, %c0_3, %c0_4], %8 {strides = array<i32>} : memref<1x8x128xf32, #tpu.memory_space<vmem>>, vector<1x8x128xf32>,
    %10 = vector.shape_cast %5 : vector<1x128xf32> to vector<1x1x128xf32>
    %11 = vector.shape_cast %10 : vector<1x1x128xf32> to vector<1x1x128xf32>
    %12 = vector.broadcast %11 : vector<1x1x128xf32> to vector<1x8x128xf32>
    %c0_5 = arith.constant 0 : index
    %c0_6 = arith.constant 0 : index
    %c0_7 = arith.constant 0 : index
    %13 = vector.load %arg3[%c0_5, %c0_6, %c0_7] : memref<1x8x128xf32, #tpu.memory_space<vmem>>, vector<1x8x128xf32>
    tpu.vector_store %arg3[%c0_5, %c0_6, %c0_7], %12 {strides = array<i32>} : memref<1x8x128xf32, #tpu.memory_space<vmem>>, vector<1x8x128xf32>,
    return
  }
  func.func @transform_0(%arg0: i32) -> (i32, i32) {
    %c0_i32 = arith.constant 0 : i32
    %c0_i32_0 = arith.constant 0 : i32
    return %arg0, %c0_i32 : i32, i32
  }
  func.func @transform_1(%arg0: i32) -> (i32, i32, i32) {
    %c0_i32 = arith.constant 0 : i32
    %c0_i32_0 = arith.constant 0 : i32
    %c0_i32_1 = arith.constant 0 : i32
    return %arg0, %c0_i32, %c0_i32_0 : i32, i32, i32
  }
  func.func @transform_2(%arg0: i32) -> (i32, i32, i32) {
    %c0_i32 = arith.constant 0 : i32
    %c0_i32_0 = arith.constant 0 : i32
    %c0_i32_1 = arith.constant 0 : i32
    return %arg0, %c0_i32, %c0_i32_0 : i32, i32, i32
  }
}

module attributes {stable_mosaic.version = 11 : i64} {
  func.func @_cbr1_kernel(%arg0: i32, %arg1: memref<256x128xf32, #tpu.memory_space<vmem>>, %arg2: memref<1x128xf32, #tpu.memory_space<vmem>>, %arg3: memref<1x128xf32, #tpu.memory_space<vmem>>, %arg4: memref<128x128xbf16, #tpu.memory_space<vmem>>, %arg5: memref<1x128xf32, #tpu.memory_space<vmem>>, %arg6: memref<256x128xf32, #tpu.memory_space<vmem>>, %arg7: memref<1x8x128xf32, #tpu.memory_space<vmem>>, %arg8: memref<1x8x128xf32, #tpu.memory_space<vmem>>) attributes {dimension_semantics = [#tpu.dimension_semantics<parallel>], iteration_bounds = array<i64: 2>, scalar_prefetch = 0 : i64, scratch_operands = 0 : i64, tpu.core_type = #tpu.core_type<tc>, window_params = [{transform_indices = @transform_0, window_bounds = array<i64: 256, 128>}, {pipeline_mode = #tpu.pipeline_mode<synchronous>, transform_indices = @transform_1, window_bounds = array<i64: 1, 128>}, {pipeline_mode = #tpu.pipeline_mode<synchronous>, transform_indices = @transform_2, window_bounds = array<i64: 1, 128>}, {pipeline_mode = #tpu.pipeline_mode<synchronous>, transform_indices = @transform_3, window_bounds = array<i64: 128, 128>}, {pipeline_mode = #tpu.pipeline_mode<synchronous>, transform_indices = @transform_4, window_bounds = array<i64: 1, 128>}, {transform_indices = @transform_5, window_bounds = array<i64: 256, 128>}, {transform_indices = @transform_6, window_bounds = array<i64: 1, 8, 128>}, {transform_indices = @transform_7, window_bounds = array<i64: 1, 8, 128>}]} {
    %c0 = arith.constant 0 : index
    %c0_0 = arith.constant 0 : index
    %0 = vector.load %arg1[%c0, %c0_0] : memref<256x128xf32, #tpu.memory_space<vmem>>, vector<256x128xf32>
    %c0_1 = arith.constant 0 : index
    %c0_2 = arith.constant 0 : index
    %1 = vector.load %arg2[%c0_1, %c0_2] : memref<1x128xf32, #tpu.memory_space<vmem>>, vector<1x128xf32>
    %2 = vector.broadcast %1 : vector<1x128xf32> to vector<256x128xf32>
    %3 = arith.mulf %0, %2 : vector<256x128xf32>
    %c0_3 = arith.constant 0 : index
    %c0_4 = arith.constant 0 : index
    %4 = vector.load %arg3[%c0_3, %c0_4] : memref<1x128xf32, #tpu.memory_space<vmem>>, vector<1x128xf32>
    %5 = vector.broadcast %4 : vector<1x128xf32> to vector<256x128xf32>
    %6 = arith.addf %3, %5 : vector<256x128xf32>
    %cst = arith.constant 0.000000e+00 : f32
    %7 = vector.broadcast %cst : f32 to vector<256x128xf32>
    %8 = arith.maximumf %6, %7 : vector<256x128xf32>
    %9 = arith.truncf %8 : vector<256x128xf32> to vector<256x128xbf16>
    %c0_5 = arith.constant 0 : index
    %c0_6 = arith.constant 0 : index
    %10 = vector.load %arg4[%c0_5, %c0_6] : memref<128x128xbf16, #tpu.memory_space<vmem>>, vector<128x128xbf16>
    %cst_7 = arith.constant dense<0.000000e+00> : vector<256x128xf32>
    %11 = tpu.matmul %9, %10, %cst_7 {dimension_numbers = #tpu.dot_dimension_numbers<[1], [0], [0], [1], [0, 0, 1, 1], [], []>} : vector<256x128xbf16>, vector<128x128xbf16>, vector<256x128xf32> -> vector<256x128xf32>
    %c0_8 = arith.constant 0 : index
    %c0_9 = arith.constant 0 : index
    %12 = vector.load %arg5[%c0_8, %c0_9] : memref<1x128xf32, #tpu.memory_space<vmem>>, vector<1x128xf32>
    %13 = vector.broadcast %12 : vector<1x128xf32> to vector<256x128xf32>
    %14 = arith.addf %11, %13 : vector<256x128xf32>
    %c0_10 = arith.constant 0 : index
    %c0_11 = arith.constant 0 : index
    %15 = vector.load %arg6[%c0_10, %c0_11] : memref<256x128xf32, #tpu.memory_space<vmem>>, vector<256x128xf32>
    tpu.vector_store %arg6[%c0_10, %c0_11], %14 {strides = array<i32>} : memref<256x128xf32, #tpu.memory_space<vmem>>, vector<256x128xf32>,
    %cst_12 = arith.constant dense<0.000000e+00> : vector<128xf32>
    %16 = vector.multi_reduction <add>, %14, %cst_12 [0] : vector<256x128xf32> to vector<128xf32>
    %17 = vector.shape_cast %16 : vector<128xf32> to vector<1x128xf32>
    %18 = arith.mulf %14, %14 : vector<256x128xf32>
    %cst_13 = arith.constant dense<0.000000e+00> : vector<128xf32>
    %19 = vector.multi_reduction <add>, %18, %cst_13 [0] : vector<256x128xf32> to vector<128xf32>
    %20 = vector.shape_cast %19 : vector<128xf32> to vector<1x128xf32>
    %21 = vector.shape_cast %17 : vector<1x128xf32> to vector<1x1x128xf32>
    %22 = vector.shape_cast %21 : vector<1x1x128xf32> to vector<1x1x128xf32>
    %23 = vector.broadcast %22 : vector<1x1x128xf32> to vector<1x8x128xf32>
    %c0_14 = arith.constant 0 : index
    %c0_15 = arith.constant 0 : index
    %c0_16 = arith.constant 0 : index
    %24 = vector.load %arg7[%c0_14, %c0_15, %c0_16] : memref<1x8x128xf32, #tpu.memory_space<vmem>>, vector<1x8x128xf32>
    tpu.vector_store %arg7[%c0_14, %c0_15, %c0_16], %23 {strides = array<i32>} : memref<1x8x128xf32, #tpu.memory_space<vmem>>, vector<1x8x128xf32>,
    %25 = vector.shape_cast %20 : vector<1x128xf32> to vector<1x1x128xf32>
    %26 = vector.shape_cast %25 : vector<1x1x128xf32> to vector<1x1x128xf32>
    %27 = vector.broadcast %26 : vector<1x1x128xf32> to vector<1x8x128xf32>
    %c0_17 = arith.constant 0 : index
    %c0_18 = arith.constant 0 : index
    %c0_19 = arith.constant 0 : index
    %28 = vector.load %arg8[%c0_17, %c0_18, %c0_19] : memref<1x8x128xf32, #tpu.memory_space<vmem>>, vector<1x8x128xf32>
    tpu.vector_store %arg8[%c0_17, %c0_18, %c0_19], %27 {strides = array<i32>} : memref<1x8x128xf32, #tpu.memory_space<vmem>>, vector<1x8x128xf32>,
    return
  }
  func.func @transform_0(%arg0: i32) -> (i32, i32) {
    %c0_i32 = arith.constant 0 : i32
    %c0_i32_0 = arith.constant 0 : i32
    return %arg0, %c0_i32 : i32, i32
  }
  func.func @transform_1(%arg0: i32) -> (i32, i32) {
    %c0_i32 = arith.constant 0 : i32
    %c0_i32_0 = arith.constant 0 : i32
    %c0_i32_1 = arith.constant 0 : i32
    return %c0_i32, %c0_i32_0 : i32, i32
  }
  func.func @transform_2(%arg0: i32) -> (i32, i32) {
    %c0_i32 = arith.constant 0 : i32
    %c0_i32_0 = arith.constant 0 : i32
    %c0_i32_1 = arith.constant 0 : i32
    return %c0_i32, %c0_i32_0 : i32, i32
  }
  func.func @transform_3(%arg0: i32) -> (i32, i32) {
    %c0_i32 = arith.constant 0 : i32
    %c0_i32_0 = arith.constant 0 : i32
    %c0_i32_1 = arith.constant 0 : i32
    return %c0_i32, %c0_i32_0 : i32, i32
  }
  func.func @transform_4(%arg0: i32) -> (i32, i32) {
    %c0_i32 = arith.constant 0 : i32
    %c0_i32_0 = arith.constant 0 : i32
    %c0_i32_1 = arith.constant 0 : i32
    return %c0_i32, %c0_i32_0 : i32, i32
  }
  func.func @transform_5(%arg0: i32) -> (i32, i32) {
    %c0_i32 = arith.constant 0 : i32
    %c0_i32_0 = arith.constant 0 : i32
    return %arg0, %c0_i32 : i32, i32
  }
  func.func @transform_6(%arg0: i32) -> (i32, i32, i32) {
    %c0_i32 = arith.constant 0 : i32
    %c0_i32_0 = arith.constant 0 : i32
    %c0_i32_1 = arith.constant 0 : i32
    return %arg0, %c0_i32, %c0_i32_0 : i32, i32, i32
  }
  func.func @transform_7(%arg0: i32) -> (i32, i32, i32) {
    %c0_i32 = arith.constant 0 : i32
    %c0_i32_0 = arith.constant 0 : i32
    %c0_i32_1 = arith.constant 0 : i32
    return %arg0, %c0_i32, %c0_i32_0 : i32, i32, i32
  }
}

module attributes {stable_mosaic.version = 11 : i64} {
  func.func @_cbr2_kernel(%arg0: i32, %arg1: memref<1x16x16x128xf32, #tpu.memory_space<vmem>>, %arg2: memref<1x128xf32, #tpu.memory_space<vmem>>, %arg3: memref<1x128xf32, #tpu.memory_space<vmem>>, %arg4: memref<9x128x128xbf16, #tpu.memory_space<vmem>>, %arg5: memref<1x128xf32, #tpu.memory_space<vmem>>, %arg6: memref<1x16x16x128xf32, #tpu.memory_space<vmem>>, %arg7: memref<1x8x128xf32, #tpu.memory_space<vmem>>, %arg8: memref<1x8x128xf32, #tpu.memory_space<vmem>>) attributes {dimension_semantics = [#tpu.dimension_semantics<parallel>], iteration_bounds = array<i64: 2>, scalar_prefetch = 0 : i64, scratch_operands = 0 : i64, tpu.core_type = #tpu.core_type<tc>, window_params = [{transform_indices = @transform_0, window_bounds = array<i64: 1, 16, 16, 128>}, {pipeline_mode = #tpu.pipeline_mode<synchronous>, transform_indices = @transform_1, window_bounds = array<i64: 1, 128>}, {pipeline_mode = #tpu.pipeline_mode<synchronous>, transform_indices = @transform_2, window_bounds = array<i64: 1, 128>}, {pipeline_mode = #tpu.pipeline_mode<synchronous>, transform_indices = @transform_3, window_bounds = array<i64: 9, 128, 128>}, {pipeline_mode = #tpu.pipeline_mode<synchronous>, transform_indices = @transform_4, window_bounds = array<i64: 1, 128>}, {transform_indices = @transform_5, window_bounds = array<i64: 1, 16, 16, 128>}, {transform_indices = @transform_6, window_bounds = array<i64: 1, 8, 128>}, {transform_indices = @transform_7, window_bounds = array<i64: 1, 8, 128>}]} {
    %c0 = arith.constant 0 : index
    %c0_0 = arith.constant 0 : index
    %c0_1 = arith.constant 0 : index
    %c0_2 = arith.constant 0 : index
    %0 = vector.load %arg1[%c0, %c0_0, %c0_1, %c0_2] : memref<1x16x16x128xf32, #tpu.memory_space<vmem>>, vector<1x16x16x128xf32>
    %1 = vector.shape_cast %0 : vector<1x16x16x128xf32> to vector<16x16x128xf32>
    %c0_3 = arith.constant 0 : index
    %c0_4 = arith.constant 0 : index
    %2 = vector.load %arg2[%c0_3, %c0_4] : memref<1x128xf32, #tpu.memory_space<vmem>>, vector<1x128xf32>
    %3 = vector.shape_cast %2 : vector<1x128xf32> to vector<1x1x128xf32>
    %4 = vector.broadcast %3 : vector<1x1x128xf32> to vector<16x16x128xf32>
    %5 = arith.mulf %1, %4 : vector<16x16x128xf32>
    %c0_5 = arith.constant 0 : index
    %c0_6 = arith.constant 0 : index
    %6 = vector.load %arg3[%c0_5, %c0_6] : memref<1x128xf32, #tpu.memory_space<vmem>>, vector<1x128xf32>
    %7 = vector.shape_cast %6 : vector<1x128xf32> to vector<1x1x128xf32>
    %8 = vector.broadcast %7 : vector<1x1x128xf32> to vector<16x16x128xf32>
    %9 = arith.addf %5, %8 : vector<16x16x128xf32>
    %cst = arith.constant 0.000000e+00 : f32
    %10 = vector.broadcast %cst : f32 to vector<16x16x128xf32>
    %11 = arith.maximumf %9, %10 : vector<16x16x128xf32>
    %cst_7 = arith.constant 0.000000e+00 : f32
    %12 = vector.broadcast %cst_7 : f32 to vector<1x16x128xf32>
    %cst_8 = arith.constant 0.000000e+00 : f32
    %13 = vector.broadcast %cst_8 : f32 to vector<18x1x128xf32>
    %14 = tpu.concatenate %12, %11, %12 in 0 : vector<1x16x128xf32>, vector<16x16x128xf32>, vector<1x16x128xf32> -> vector<18x16x128xf32>
    %15 = tpu.concatenate %13, %14, %13 in 1 : vector<18x1x128xf32>, vector<18x16x128xf32>, vector<18x1x128xf32> -> vector<18x18x128xf32>
    %cst_9 = arith.constant 0.000000e+00 : f32
    %16 = vector.broadcast %cst_9 : f32 to vector<256x128xf32>
    %17 = vector.extract_strided_slice %15 {offsets = [0, 0, 0], sizes = [16, 16, 128], strides = [1, 1, 1]} : vector<18x18x128xf32> to vector<16x16x128xf32>
    %18 = vector.shape_cast %17 : vector<16x16x128xf32> to vector<256x128xf32>
    %19 = arith.truncf %18 : vector<256x128xf32> to vector<256x128xbf16>
    %c0_10 = arith.constant 0 : index
    %c0_11 = arith.constant 0 : index
    %c0_12 = arith.constant 0 : index
    %20 = vector.load %arg4[%c0_10, %c0_11, %c0_12] : memref<9x128x128xbf16, #tpu.memory_space<vmem>>, vector<1x128x128xbf16>
    %21 = vector.shape_cast %20 : vector<1x128x128xbf16> to vector<128x128xbf16>
    %cst_13 = arith.constant dense<0.000000e+00> : vector<256x128xf32>
    %22 = tpu.matmul %19, %21, %cst_13 {dimension_numbers = #tpu.dot_dimension_numbers<[1], [0], [0], [1], [0, 0, 1, 1], [], []>} : vector<256x128xbf16>, vector<128x128xbf16>, vector<256x128xf32> -> vector<256x128xf32>
    %23 = arith.addf %16, %22 : vector<256x128xf32>
    %24 = vector.extract_strided_slice %15 {offsets = [0, 1, 0], sizes = [16, 16, 128], strides = [1, 1, 1]} : vector<18x18x128xf32> to vector<16x16x128xf32>
    %25 = vector.shape_cast %24 : vector<16x16x128xf32> to vector<256x128xf32>
    %26 = arith.truncf %25 : vector<256x128xf32> to vector<256x128xbf16>
    %c1 = arith.constant 1 : index
    %c0_14 = arith.constant 0 : index
    %c0_15 = arith.constant 0 : index
    %27 = vector.load %arg4[%c1, %c0_14, %c0_15] : memref<9x128x128xbf16, #tpu.memory_space<vmem>>, vector<1x128x128xbf16>
    %28 = vector.shape_cast %27 : vector<1x128x128xbf16> to vector<128x128xbf16>
    %cst_16 = arith.constant dense<0.000000e+00> : vector<256x128xf32>
    %29 = tpu.matmul %26, %28, %cst_16 {dimension_numbers = #tpu.dot_dimension_numbers<[1], [0], [0], [1], [0, 0, 1, 1], [], []>} : vector<256x128xbf16>, vector<128x128xbf16>, vector<256x128xf32> -> vector<256x128xf32>
    %30 = arith.addf %23, %29 : vector<256x128xf32>
    %31 = vector.extract_strided_slice %15 {offsets = [0, 2, 0], sizes = [16, 16, 128], strides = [1, 1, 1]} : vector<18x18x128xf32> to vector<16x16x128xf32>
    %32 = vector.shape_cast %31 : vector<16x16x128xf32> to vector<256x128xf32>
    %33 = arith.truncf %32 : vector<256x128xf32> to vector<256x128xbf16>
    %c2 = arith.constant 2 : index
    %c0_17 = arith.constant 0 : index
    %c0_18 = arith.constant 0 : index
    %34 = vector.load %arg4[%c2, %c0_17, %c0_18] : memref<9x128x128xbf16, #tpu.memory_space<vmem>>, vector<1x128x128xbf16>
    %35 = vector.shape_cast %34 : vector<1x128x128xbf16> to vector<128x128xbf16>
    %cst_19 = arith.constant dense<0.000000e+00> : vector<256x128xf32>
    %36 = tpu.matmul %33, %35, %cst_19 {dimension_numbers = #tpu.dot_dimension_numbers<[1], [0], [0], [1], [0, 0, 1, 1], [], []>} : vector<256x128xbf16>, vector<128x128xbf16>, vector<256x128xf32> -> vector<256x128xf32>
    %37 = arith.addf %30, %36 : vector<256x128xf32>
    %38 = vector.extract_strided_slice %15 {offsets = [1, 0, 0], sizes = [16, 16, 128], strides = [1, 1, 1]} : vector<18x18x128xf32> to vector<16x16x128xf32>
    %39 = vector.shape_cast %38 : vector<16x16x128xf32> to vector<256x128xf32>
    %40 = arith.truncf %39 : vector<256x128xf32> to vector<256x128xbf16>
    %c3 = arith.constant 3 : index
    %c0_20 = arith.constant 0 : index
    %c0_21 = arith.constant 0 : index
    %41 = vector.load %arg4[%c3, %c0_20, %c0_21] : memref<9x128x128xbf16, #tpu.memory_space<vmem>>, vector<1x128x128xbf16>
    %42 = vector.shape_cast %41 : vector<1x128x128xbf16> to vector<128x128xbf16>
    %cst_22 = arith.constant dense<0.000000e+00> : vector<256x128xf32>
    %43 = tpu.matmul %40, %42, %cst_22 {dimension_numbers = #tpu.dot_dimension_numbers<[1], [0], [0], [1], [0, 0, 1, 1], [], []>} : vector<256x128xbf16>, vector<128x128xbf16>, vector<256x128xf32> -> vector<256x128xf32>
    %44 = arith.addf %37, %43 : vector<256x128xf32>
    %45 = vector.extract_strided_slice %15 {offsets = [1, 1, 0], sizes = [16, 16, 128], strides = [1, 1, 1]} : vector<18x18x128xf32> to vector<16x16x128xf32>
    %46 = vector.shape_cast %45 : vector<16x16x128xf32> to vector<256x128xf32>
    %47 = arith.truncf %46 : vector<256x128xf32> to vector<256x128xbf16>
    %c4 = arith.constant 4 : index
    %c0_23 = arith.constant 0 : index
    %c0_24 = arith.constant 0 : index
    %48 = vector.load %arg4[%c4, %c0_23, %c0_24] : memref<9x128x128xbf16, #tpu.memory_space<vmem>>, vector<1x128x128xbf16>
    %49 = vector.shape_cast %48 : vector<1x128x128xbf16> to vector<128x128xbf16>
    %cst_25 = arith.constant dense<0.000000e+00> : vector<256x128xf32>
    %50 = tpu.matmul %47, %49, %cst_25 {dimension_numbers = #tpu.dot_dimension_numbers<[1], [0], [0], [1], [0, 0, 1, 1], [], []>} : vector<256x128xbf16>, vector<128x128xbf16>, vector<256x128xf32> -> vector<256x128xf32>
    %51 = arith.addf %44, %50 : vector<256x128xf32>
    %52 = vector.extract_strided_slice %15 {offsets = [1, 2, 0], sizes = [16, 16, 128], strides = [1, 1, 1]} : vector<18x18x128xf32> to vector<16x16x128xf32>
    %53 = vector.shape_cast %52 : vector<16x16x128xf32> to vector<256x128xf32>
    %54 = arith.truncf %53 : vector<256x128xf32> to vector<256x128xbf16>
    %c5 = arith.constant 5 : index
    %c0_26 = arith.constant 0 : index
    %c0_27 = arith.constant 0 : index
    %55 = vector.load %arg4[%c5, %c0_26, %c0_27] : memref<9x128x128xbf16, #tpu.memory_space<vmem>>, vector<1x128x128xbf16>
    %56 = vector.shape_cast %55 : vector<1x128x128xbf16> to vector<128x128xbf16>
    %cst_28 = arith.constant dense<0.000000e+00> : vector<256x128xf32>
    %57 = tpu.matmul %54, %56, %cst_28 {dimension_numbers = #tpu.dot_dimension_numbers<[1], [0], [0], [1], [0, 0, 1, 1], [], []>} : vector<256x128xbf16>, vector<128x128xbf16>, vector<256x128xf32> -> vector<256x128xf32>
    %58 = arith.addf %51, %57 : vector<256x128xf32>
    %59 = vector.extract_strided_slice %15 {offsets = [2, 0, 0], sizes = [16, 16, 128], strides = [1, 1, 1]} : vector<18x18x128xf32> to vector<16x16x128xf32>
    %60 = vector.shape_cast %59 : vector<16x16x128xf32> to vector<256x128xf32>
    %61 = arith.truncf %60 : vector<256x128xf32> to vector<256x128xbf16>
    %c6 = arith.constant 6 : index
    %c0_29 = arith.constant 0 : index
    %c0_30 = arith.constant 0 : index
    %62 = vector.load %arg4[%c6, %c0_29, %c0_30] : memref<9x128x128xbf16, #tpu.memory_space<vmem>>, vector<1x128x128xbf16>
    %63 = vector.shape_cast %62 : vector<1x128x128xbf16> to vector<128x128xbf16>
    %cst_31 = arith.constant dense<0.000000e+00> : vector<256x128xf32>
    %64 = tpu.matmul %61, %63, %cst_31 {dimension_numbers = #tpu.dot_dimension_numbers<[1], [0], [0], [1], [0, 0, 1, 1], [], []>} : vector<256x128xbf16>, vector<128x128xbf16>, vector<256x128xf32> -> vector<256x128xf32>
    %65 = arith.addf %58, %64 : vector<256x128xf32>
    %66 = vector.extract_strided_slice %15 {offsets = [2, 1, 0], sizes = [16, 16, 128], strides = [1, 1, 1]} : vector<18x18x128xf32> to vector<16x16x128xf32>
    %67 = vector.shape_cast %66 : vector<16x16x128xf32> to vector<256x128xf32>
    %68 = arith.truncf %67 : vector<256x128xf32> to vector<256x128xbf16>
    %c7 = arith.constant 7 : index
    %c0_32 = arith.constant 0 : index
    %c0_33 = arith.constant 0 : index
    %69 = vector.load %arg4[%c7, %c0_32, %c0_33] : memref<9x128x128xbf16, #tpu.memory_space<vmem>>, vector<1x128x128xbf16>
    %70 = vector.shape_cast %69 : vector<1x128x128xbf16> to vector<128x128xbf16>
    %cst_34 = arith.constant dense<0.000000e+00> : vector<256x128xf32>
    %71 = tpu.matmul %68, %70, %cst_34 {dimension_numbers = #tpu.dot_dimension_numbers<[1], [0], [0], [1], [0, 0, 1, 1], [], []>} : vector<256x128xbf16>, vector<128x128xbf16>, vector<256x128xf32> -> vector<256x128xf32>
    %72 = arith.addf %65, %71 : vector<256x128xf32>
    %73 = vector.extract_strided_slice %15 {offsets = [2, 2, 0], sizes = [16, 16, 128], strides = [1, 1, 1]} : vector<18x18x128xf32> to vector<16x16x128xf32>
    %74 = vector.shape_cast %73 : vector<16x16x128xf32> to vector<256x128xf32>
    %75 = arith.truncf %74 : vector<256x128xf32> to vector<256x128xbf16>
    %c8 = arith.constant 8 : index
    %c0_35 = arith.constant 0 : index
    %c0_36 = arith.constant 0 : index
    %76 = vector.load %arg4[%c8, %c0_35, %c0_36] : memref<9x128x128xbf16, #tpu.memory_space<vmem>>, vector<1x128x128xbf16>
    %77 = vector.shape_cast %76 : vector<1x128x128xbf16> to vector<128x128xbf16>
    %cst_37 = arith.constant dense<0.000000e+00> : vector<256x128xf32>
    %78 = tpu.matmul %75, %77, %cst_37 {dimension_numbers = #tpu.dot_dimension_numbers<[1], [0], [0], [1], [0, 0, 1, 1], [], []>} : vector<256x128xbf16>, vector<128x128xbf16>, vector<256x128xf32> -> vector<256x128xf32>
    %79 = arith.addf %72, %78 : vector<256x128xf32>
    %c0_38 = arith.constant 0 : index
    %c0_39 = arith.constant 0 : index
    %80 = vector.load %arg5[%c0_38, %c0_39] : memref<1x128xf32, #tpu.memory_space<vmem>>, vector<1x128xf32>
    %81 = vector.broadcast %80 : vector<1x128xf32> to vector<256x128xf32>
    %82 = arith.addf %79, %81 : vector<256x128xf32>
    %83 = vector.shape_cast %82 : vector<256x128xf32> to vector<1x16x16x128xf32>
    %c0_40 = arith.constant 0 : index
    %c0_41 = arith.constant 0 : index
    %c0_42 = arith.constant 0 : index
    %c0_43 = arith.constant 0 : index
    %84 = vector.load %arg6[%c0_40, %c0_41, %c0_42, %c0_43] : memref<1x16x16x128xf32, #tpu.memory_space<vmem>>, vector<1x16x16x128xf32>
    tpu.vector_store %arg6[%c0_40, %c0_41, %c0_42, %c0_43], %83 {strides = array<i32>} : memref<1x16x16x128xf32, #tpu.memory_space<vmem>>, vector<1x16x16x128xf32>,
    %cst_44 = arith.constant dense<0.000000e+00> : vector<128xf32>
    %85 = vector.multi_reduction <add>, %82, %cst_44 [0] : vector<256x128xf32> to vector<128xf32>
    %86 = vector.shape_cast %85 : vector<128xf32> to vector<1x128xf32>
    %87 = arith.mulf %82, %82 : vector<256x128xf32>
    %cst_45 = arith.constant dense<0.000000e+00> : vector<128xf32>
    %88 = vector.multi_reduction <add>, %87, %cst_45 [0] : vector<256x128xf32> to vector<128xf32>
    %89 = vector.shape_cast %88 : vector<128xf32> to vector<1x128xf32>
    %90 = vector.shape_cast %86 : vector<1x128xf32> to vector<1x1x128xf32>
    %91 = vector.shape_cast %90 : vector<1x1x128xf32> to vector<1x1x128xf32>
    %92 = vector.broadcast %91 : vector<1x1x128xf32> to vector<1x8x128xf32>
    %c0_46 = arith.constant 0 : index
    %c0_47 = arith.constant 0 : index
    %c0_48 = arith.constant 0 : index
    %93 = vector.load %arg7[%c0_46, %c0_47, %c0_48] : memref<1x8x128xf32, #tpu.memory_space<vmem>>, vector<1x8x128xf32>
    tpu.vector_store %arg7[%c0_46, %c0_47, %c0_48], %92 {strides = array<i32>} : memref<1x8x128xf32, #tpu.memory_space<vmem>>, vector<1x8x128xf32>,
    %94 = vector.shape_cast %89 : vector<1x128xf32> to vector<1x1x128xf32>
    %95 = vector.shape_cast %94 : vector<1x1x128xf32> to vector<1x1x128xf32>
    %96 = vector.broadcast %95 : vector<1x1x128xf32> to vector<1x8x128xf32>
    %c0_49 = arith.constant 0 : index
    %c0_50 = arith.constant 0 : index
    %c0_51 = arith.constant 0 : index
    %97 = vector.load %arg8[%c0_49, %c0_50, %c0_51] : memref<1x8x128xf32, #tpu.memory_space<vmem>>, vector<1x8x128xf32>
    tpu.vector_store %arg8[%c0_49, %c0_50, %c0_51], %96 {strides = array<i32>} : memref<1x8x128xf32, #tpu.memory_space<vmem>>, vector<1x8x128xf32>,
    return
  }
  func.func @transform_0(%arg0: i32) -> (i32, i32, i32, i32) {
    %c0_i32 = arith.constant 0 : i32
    %c0_i32_0 = arith.constant 0 : i32
    %c0_i32_1 = arith.constant 0 : i32
    %c0_i32_2 = arith.constant 0 : i32
    return %arg0, %c0_i32, %c0_i32_0, %c0_i32_1 : i32, i32, i32, i32
  }
  func.func @transform_1(%arg0: i32) -> (i32, i32) {
    %c0_i32 = arith.constant 0 : i32
    %c0_i32_0 = arith.constant 0 : i32
    %c0_i32_1 = arith.constant 0 : i32
    return %c0_i32, %c0_i32_0 : i32, i32
  }
  func.func @transform_2(%arg0: i32) -> (i32, i32) {
    %c0_i32 = arith.constant 0 : i32
    %c0_i32_0 = arith.constant 0 : i32
    %c0_i32_1 = arith.constant 0 : i32
    return %c0_i32, %c0_i32_0 : i32, i32
  }
  func.func @transform_3(%arg0: i32) -> (i32, i32, i32) {
    %c0_i32 = arith.constant 0 : i32
    %c0_i32_0 = arith.constant 0 : i32
    %c0_i32_1 = arith.constant 0 : i32
    %c0_i32_2 = arith.constant 0 : i32
    return %c0_i32, %c0_i32_0, %c0_i32_1 : i32, i32, i32
  }
  func.func @transform_4(%arg0: i32) -> (i32, i32) {
    %c0_i32 = arith.constant 0 : i32
    %c0_i32_0 = arith.constant 0 : i32
    %c0_i32_1 = arith.constant 0 : i32
    return %c0_i32, %c0_i32_0 : i32, i32
  }
  func.func @transform_5(%arg0: i32) -> (i32, i32, i32, i32) {
    %c0_i32 = arith.constant 0 : i32
    %c0_i32_0 = arith.constant 0 : i32
    %c0_i32_1 = arith.constant 0 : i32
    %c0_i32_2 = arith.constant 0 : i32
    return %arg0, %c0_i32, %c0_i32_0, %c0_i32_1 : i32, i32, i32, i32
  }
  func.func @transform_6(%arg0: i32) -> (i32, i32, i32) {
    %c0_i32 = arith.constant 0 : i32
    %c0_i32_0 = arith.constant 0 : i32
    %c0_i32_1 = arith.constant 0 : i32
    return %arg0, %c0_i32, %c0_i32_0 : i32, i32, i32
  }
  func.func @transform_7(%arg0: i32) -> (i32, i32, i32) {
    %c0_i32 = arith.constant 0 : i32
    %c0_i32_0 = arith.constant 0 : i32
    %c0_i32_1 = arith.constant 0 : i32
    return %arg0, %c0_i32, %c0_i32_0 : i32, i32, i32
  }
}

module attributes {stable_mosaic.version = 11 : i64} {
  func.func @_cbr3_skipconv_kernel(%arg0: i32, %arg1: memref<256x128xf32, #tpu.memory_space<vmem>>, %arg2: memref<1x128xf32, #tpu.memory_space<vmem>>, %arg3: memref<1x128xf32, #tpu.memory_space<vmem>>, %arg4: memref<128x128xbf16, #tpu.memory_space<vmem>>, %arg5: memref<1x128xf32, #tpu.memory_space<vmem>>, %arg6: memref<256x128xf32, #tpu.memory_space<vmem>>, %arg7: memref<128x128xbf16, #tpu.memory_space<vmem>>, %arg8: memref<1x128xf32, #tpu.memory_space<vmem>>, %arg9: memref<256x128xf32, #tpu.memory_space<vmem>>) attributes {dimension_semantics = [#tpu.dimension_semantics<parallel>], iteration_bounds = array<i64: 2>, scalar_prefetch = 0 : i64, scratch_operands = 0 : i64, tpu.core_type = #tpu.core_type<tc>, window_params = [{transform_indices = @transform_0, window_bounds = array<i64: 256, 128>}, {pipeline_mode = #tpu.pipeline_mode<synchronous>, transform_indices = @transform_1, window_bounds = array<i64: 1, 128>}, {pipeline_mode = #tpu.pipeline_mode<synchronous>, transform_indices = @transform_2, window_bounds = array<i64: 1, 128>}, {pipeline_mode = #tpu.pipeline_mode<synchronous>, transform_indices = @transform_3, window_bounds = array<i64: 128, 128>}, {pipeline_mode = #tpu.pipeline_mode<synchronous>, transform_indices = @transform_4, window_bounds = array<i64: 1, 128>}, {transform_indices = @transform_5, window_bounds = array<i64: 256, 128>}, {pipeline_mode = #tpu.pipeline_mode<synchronous>, transform_indices = @transform_6, window_bounds = array<i64: 128, 128>}, {pipeline_mode = #tpu.pipeline_mode<synchronous>, transform_indices = @transform_7, window_bounds = array<i64: 1, 128>}, {transform_indices = @transform_8, window_bounds = array<i64: 256, 128>}]} {
    %c0 = arith.constant 0 : index
    %c0_0 = arith.constant 0 : index
    %0 = vector.load %arg1[%c0, %c0_0] : memref<256x128xf32, #tpu.memory_space<vmem>>, vector<256x128xf32>
    %c0_1 = arith.constant 0 : index
    %c0_2 = arith.constant 0 : index
    %1 = vector.load %arg2[%c0_1, %c0_2] : memref<1x128xf32, #tpu.memory_space<vmem>>, vector<1x128xf32>
    %2 = vector.broadcast %1 : vector<1x128xf32> to vector<256x128xf32>
    %3 = arith.mulf %0, %2 : vector<256x128xf32>
    %c0_3 = arith.constant 0 : index
    %c0_4 = arith.constant 0 : index
    %4 = vector.load %arg3[%c0_3, %c0_4] : memref<1x128xf32, #tpu.memory_space<vmem>>, vector<1x128xf32>
    %5 = vector.broadcast %4 : vector<1x128xf32> to vector<256x128xf32>
    %6 = arith.addf %3, %5 : vector<256x128xf32>
    %cst = arith.constant 0.000000e+00 : f32
    %7 = vector.broadcast %cst : f32 to vector<256x128xf32>
    %8 = arith.maximumf %6, %7 : vector<256x128xf32>
    %9 = arith.truncf %8 : vector<256x128xf32> to vector<256x128xbf16>
    %c0_5 = arith.constant 0 : index
    %c0_6 = arith.constant 0 : index
    %10 = vector.load %arg4[%c0_5, %c0_6] : memref<128x128xbf16, #tpu.memory_space<vmem>>, vector<128x128xbf16>
    %cst_7 = arith.constant dense<0.000000e+00> : vector<256x128xf32>
    %11 = tpu.matmul %9, %10, %cst_7 {dimension_numbers = #tpu.dot_dimension_numbers<[1], [0], [0], [1], [0, 0, 1, 1], [], []>} : vector<256x128xbf16>, vector<128x128xbf16>, vector<256x128xf32> -> vector<256x128xf32>
    %c0_8 = arith.constant 0 : index
    %c0_9 = arith.constant 0 : index
    %12 = vector.load %arg5[%c0_8, %c0_9] : memref<1x128xf32, #tpu.memory_space<vmem>>, vector<1x128xf32>
    %13 = vector.broadcast %12 : vector<1x128xf32> to vector<256x128xf32>
    %14 = arith.addf %11, %13 : vector<256x128xf32>
    %c0_10 = arith.constant 0 : index
    %c0_11 = arith.constant 0 : index
    %15 = vector.load %arg6[%c0_10, %c0_11] : memref<256x128xf32, #tpu.memory_space<vmem>>, vector<256x128xf32>
    %16 = arith.truncf %15 : vector<256x128xf32> to vector<256x128xbf16>
    %c0_12 = arith.constant 0 : index
    %c0_13 = arith.constant 0 : index
    %17 = vector.load %arg7[%c0_12, %c0_13] : memref<128x128xbf16, #tpu.memory_space<vmem>>, vector<128x128xbf16>
    %cst_14 = arith.constant dense<0.000000e+00> : vector<256x128xf32>
    %18 = tpu.matmul %16, %17, %cst_14 {dimension_numbers = #tpu.dot_dimension_numbers<[1], [0], [0], [1], [0, 0, 1, 1], [], []>} : vector<256x128xbf16>, vector<128x128xbf16>, vector<256x128xf32> -> vector<256x128xf32>
    %19 = arith.addf %14, %18 : vector<256x128xf32>
    %c0_15 = arith.constant 0 : index
    %c0_16 = arith.constant 0 : index
    %20 = vector.load %arg8[%c0_15, %c0_16] : memref<1x128xf32, #tpu.memory_space<vmem>>, vector<1x128xf32>
    %21 = vector.broadcast %20 : vector<1x128xf32> to vector<256x128xf32>
    %22 = arith.addf %19, %21 : vector<256x128xf32>
    %c0_17 = arith.constant 0 : index
    %c0_18 = arith.constant 0 : index
    %23 = vector.load %arg9[%c0_17, %c0_18] : memref<256x128xf32, #tpu.memory_space<vmem>>, vector<256x128xf32>
    tpu.vector_store %arg9[%c0_17, %c0_18], %22 {strides = array<i32>} : memref<256x128xf32, #tpu.memory_space<vmem>>, vector<256x128xf32>,
    return
  }
  func.func @transform_0(%arg0: i32) -> (i32, i32) {
    %c0_i32 = arith.constant 0 : i32
    %c0_i32_0 = arith.constant 0 : i32
    return %arg0, %c0_i32 : i32, i32
  }
  func.func @transform_1(%arg0: i32) -> (i32, i32) {
    %c0_i32 = arith.constant 0 : i32
    %c0_i32_0 = arith.constant 0 : i32
    %c0_i32_1 = arith.constant 0 : i32
    return %c0_i32, %c0_i32_0 : i32, i32
  }
  func.func @transform_2(%arg0: i32) -> (i32, i32) {
    %c0_i32 = arith.constant 0 : i32
    %c0_i32_0 = arith.constant 0 : i32
    %c0_i32_1 = arith.constant 0 : i32
    return %c0_i32, %c0_i32_0 : i32, i32
  }
  func.func @transform_3(%arg0: i32) -> (i32, i32) {
    %c0_i32 = arith.constant 0 : i32
    %c0_i32_0 = arith.constant 0 : i32
    %c0_i32_1 = arith.constant 0 : i32
    return %c0_i32, %c0_i32_0 : i32, i32
  }
  func.func @transform_4(%arg0: i32) -> (i32, i32) {
    %c0_i32 = arith.constant 0 : i32
    %c0_i32_0 = arith.constant 0 : i32
    %c0_i32_1 = arith.constant 0 : i32
    return %c0_i32, %c0_i32_0 : i32, i32
  }
  func.func @transform_5(%arg0: i32) -> (i32, i32) {
    %c0_i32 = arith.constant 0 : i32
    %c0_i32_0 = arith.constant 0 : i32
    return %arg0, %c0_i32 : i32, i32
  }
  func.func @transform_6(%arg0: i32) -> (i32, i32) {
    %c0_i32 = arith.constant 0 : i32
    %c0_i32_0 = arith.constant 0 : i32
    %c0_i32_1 = arith.constant 0 : i32
    return %c0_i32, %c0_i32_0 : i32, i32
  }
  func.func @transform_7(%arg0: i32) -> (i32, i32) {
    %c0_i32 = arith.constant 0 : i32
    %c0_i32_0 = arith.constant 0 : i32
    %c0_i32_1 = arith.constant 0 : i32
    return %c0_i32, %c0_i32_0 : i32, i32
  }
  func.func @transform_8(%arg0: i32) -> (i32, i32) {
    %c0_i32 = arith.constant 0 : i32
    %c0_i32_0 = arith.constant 0 : i32
    return %arg0, %c0_i32 : i32, i32
  }
}

</mosaic_0001>

<llo_original>
// kernel: residual_forward.4
$region0: #{residual_forward.4}
  #allocation0 [shape = 'u32[]', space=smem, size = 0x4, offset = 0x4, fixed_abs, tag = 'smem constant byte address 0x4 - core index']
  #allocation1 [shape = 'u32[144,128]{1,0:T(1,128)}', space=vmem, size = 0x12000, scoped, tag = 'internal scratch']
  %s0 = inlined_call_operand.vmem [shape: f32[512,128], index: 0, kind: input, shape index: {}]
  %s1 = inlined_call_operand.vmem [shape: f32[2,8,128], index: 1, kind: output, shape index: {0}]
  %s2 = inlined_call_operand.vmem [shape: f32[2,8,128], index: 2, kind: output, shape index: {1}]
  %3 = xla_tuple %s1, %s2
  %s4 = sld [smem:[#allocation0]]
  $region45: #{residual_forward.4} parent=0
    _
  %s6 = ssub.s32 1, %s4
  %s7 = scalar_select 0, %s6, %s4
  loop: start=0, step=1, limit=4
  $region2: #{residual_forward.4} parent=0 // loop_pre_header
    _
  $region3: #{residual_forward.4} parent=0 // loop_header
    %s9 = sphi 0, %s13
    %p10 = scmp.ge.s32.totalorder %s9, 4
    %s19 = sphi 0, %s21
    %s22 = sphi 0, %s19
    %s23 = sphi 0, %s22
    %s39 = sphi 0, %s23
    %s45 = sphi 0, %s47
    %s48 = sphi 0, %s45
    %s49 = sphi 0, %s48
    %s65 = sphi 0, %s49
    %s71 = sphi 0, %s73
    %s74 = sphi 0, %s71
    %s75 = sphi 0, %s74
    %s91 = sphi 0, %s75
  $region4: #{residual_forward.4} parent=0 // loop_header_branch
    %12 = sbr.rel (%p10) target = $region8
  $region5: #{residual_forward.4} parent=0 // loop_body
    %s14 = ssub.s32 %s9, 1
    %s15 = ssub.s32 %s9, 2
    %s16 = sadd.s32 %s9, 1
    %s17 = ssub.s32 %s9, %s16
    %p18 = scmp.eq.s32.totalorder %s17, 0
    %s20 = sadd.s32 %s19, 1
    %s21 = scalar_select %p18, %s19, %s20
    %p24 = pneg %p18
    %p25 = scmp.eq.s32.totalorder %s9, 1
    %p26 = por %p24, %p25
    %p27 = scmp.ne.s32.totalorder %s19, %s22
    %p28 = scmp.eq.s32.totalorder %s9, 0
    %p29 = por %p27, %p28
    %p30 = scmp.ne.s32.totalorder %s19, %s22
    %p31 = scmp.eq.s32.totalorder %s14, 1
    %p32 = por %p30, %p31
    %p33 = scmp.ne.s32.totalorder %s22, %s23
    %p34 = scmp.eq.s32.totalorder %s14, 0
    %p35 = por %p33, %p34
    %p36 = scmp.ne.s32.totalorder %s22, %s23
    %p37 = scmp.eq.s32.totalorder %s15, 1
    %p38 = por %p36, %p37
    %p40 = scmp.ne.s32.totalorder %s23, %s39
    %p41 = scmp.eq.s32.totalorder %s15, 0
    %p42 = por %p40, %p41
    %s43 = ssub.s32 %s9, %s16
    %p44 = scmp.eq.s32.totalorder %s43, 0
    %s46 = sadd.s32 %s45, 1
    %s47 = scalar_select %p44, %s45, %s46
    %p50 = pneg %p44
    %p51 = scmp.eq.s32.totalorder %s9, 1
    %p52 = por %p50, %p51
    %p53 = scmp.ne.s32.totalorder %s45, %s48
    %p54 = scmp.eq.s32.totalorder %s9, 0
    %p55 = por %p53, %p54
    %p56 = scmp.ne.s32.totalorder %s45, %s48
    %p57 = scmp.eq.s32.totalorder %s14, 1
    %p58 = por %p56, %p57
    %p59 = scmp.ne.s32.totalorder %s48, %s49
    %p60 = scmp.eq.s32.totalorder %s14, 0
    %p61 = por %p59, %p60
    %p62 = scmp.ne.s32.totalorder %s48, %s49
    %p63 = scmp.eq.s32.totalorder %s15, 1
    %p64 = por %p62, %p63
    %p66 = scmp.ne.s32.totalorder %s49, %s65
    %p67 = scmp.eq.s32.totalorder %s15, 0
    %p68 = por %p66, %p67
    %s69 = ssub.s32 %s9, %s16
    %p70 = scmp.eq.s32.totalorder %s69, 0
    %s72 = sadd.s32 %s71, 1
    %s73 = scalar_select %p70, %s71, %s72
    %p76 = pneg %p70
    %p77 = scmp.eq.s32.totalorder %s9, 1
    %p78 = por %p76, %p77
    %p79 = scmp.ne.s32.totalorder %s71, %s74
    %p80 = scmp.eq.s32.totalorder %s9, 0
    %p81 = por %p79, %p80
    %p82 = scmp.ne.s32.totalorder %s71, %s74
    %p83 = scmp.eq.s32.totalorder %s14, 1
    %p84 = por %p82, %p83
    %p85 = scmp.ne.s32.totalorder %s74, %s75
    %p86 = scmp.eq.s32.totalorder %s14, 0
    %p87 = por %p85, %p86
    %p88 = scmp.ne.s32.totalorder %s74, %s75
    %p89 = scmp.eq.s32.totalorder %s15, 1
    %p90 = por %p88, %p89
    %p92 = scmp.ne.s32.totalorder %s75, %s91
    %p93 = scmp.eq.s32.totalorder %s15, 0
    %p94 = por %p92, %p93
    %p95 = scmp.le.s32.totalorder 1, %s9
    %p96 = scmp.lt.s32.totalorder %s9, 3
    %p97 = pnand %p95, %p96
    %p98 = pneg %p97
    // Predicated region
    $region9: #{residual_forward.4} parent=5 // pred_check
      _
    $region10: #{residual_forward.4} parent=5 // pred_check_branch
      %100 = sbr.rel (%p97) target = $region12
    $region11: #{residual_forward.4} parent=5 // pred_region
      %s101 = ssub.s32 %s9, 1
    $region12: #{residual_forward.4} parent=5 // pred_fallthru
      _
    %p102 = scmp.lt.s32.totalorder %s9, 2
    // Predicated region
    $region13: #{residual_forward.4} parent=5 // pred_check
      %p103 = pneg %p102
    $region14: #{residual_forward.4} parent=5 // pred_check_branch
      %105 = sbr.rel (%p103) target = $region16
    $region15: #{residual_forward.4} parent=5 // pred_region
      // Predicated region
      $region17: #{residual_forward.4} parent=15 // pred_check
        %p106 = pneg %p29
      $region18: #{residual_forward.4} parent=15 // pred_check_branch
        %108 = sbr.rel (%p106) target = $region20
      $region19: #{residual_forward.4} parent=15 // pred_region
        %s109 = smul.u32 32, %s9
        %p110 = scmp.lt.s32.totalorder %s109, 63
        %s111 = scalar_select %p110, %s109, 63
        %s112 = smul.addr %s111, 8
        %s113 = scalar_lea.vmem %s0, %s112
        %s114 = smul.u32 32, %s9
      $region20: #{residual_forward.4} parent=15 // pred_fallthru
        _
    $region16: #{residual_forward.4} parent=5 // pred_fallthru
      _
    %p115 = scmp.le.s32.totalorder 1, %s9
    %p116 = scmp.lt.s32.totalorder %s9, 3
    %p117 = pnand %p115, %p116
    %p118 = pneg %p117
    // Predicated region
    $region21: #{residual_forward.4} parent=5 // pred_check
      _
    $region22: #{residual_forward.4} parent=5 // pred_check_branch
      %120 = sbr.rel (%p117) target = $region24
    $region23: #{residual_forward.4} parent=5 // pred_region
      %s121 = ssub.s32 %s9, 1
      %s122 = smul.u32 32, %s14
      %p123 = scmp.lt.s32.totalorder %s122, 63
      %s124 = scalar_select %p123, %s122, 63
      %s125 = smul.addr %s124, 8
      %s126 = scalar_lea.vmem %s0, %s125
      %p127 = pneg %p35
      %p128 = pneg %p32
      %p129 = pneg %p61
      %p130 = pneg %p58
      %p131 = scmp.lt.s32.totalorder %s14, 1
      %s132 = scalar_select %p131, %s14, 1
      %s133 = smul.addr %s132, 8
      %s134 = scalar_lea.vmem %s1, %s133
      %p135 = pneg %p87
      %p136 = pneg %p84
      %p137 = scmp.lt.s32.totalorder %s14, 1
      %s138 = scalar_select %p137, %s14, 1
      %s139 = smul.addr %s138, 8
      %s140 = scalar_lea.vmem %s2, %s139
      %s141 = smul.u32 32, %s14
      %p142 = scmp.lt.s32.totalorder %s141, 63
      %s143 = scalar_select %p142, %s141, 63
      %s144 = smul.addr %s143, 8
      %s145 = scalar_lea.vmem %s0, %s144
      %s146 = smul.u32 32, %s14
      %p147 = scmp.lt.s32.totalorder %s14, 1
      %s148 = scalar_select %p147, %s14, 1
      %s149 = smul.addr %s148, 8
      %s150 = scalar_lea.vmem %s1, %s149
      %p151 = scmp.lt.s32.totalorder %s14, 1
      %s152 = scalar_select %p151, %s14, 1
      %s153 = smul.addr %s152, 8
      %s154 = scalar_lea.vmem %s2, %s153
      %v155 = vld [vmem:[%s145] sm:$0xff]
      %v156 = vld [vmem:[%s145 + $0x8] sm:$0xff]
      %v157 = vld [vmem:[%s145 + $0x10] sm:$0xff]
      %v158 = vld [vmem:[%s145 + $0x18] sm:$0xff]
      %v159 = vld [vmem:[%s145 + $0x20] sm:$0xff]
      %v160 = vld [vmem:[%s145 + $0x28] sm:$0xff]
      %v161 = vld [vmem:[%s145 + $0x30] sm:$0xff]
      %v162 = vld [vmem:[%s145 + $0x38] sm:$0xff]
      %v163 = vld [vmem:[%s145 + $0x40] sm:$0xff]
      %v164 = vld [vmem:[%s145 + $0x48] sm:$0xff]
      %v165 = vld [vmem:[%s145 + $0x50] sm:$0xff]
      %v166 = vld [vmem:[%s145 + $0x58] sm:$0xff]
      %v167 = vld [vmem:[%s145 + $0x60] sm:$0xff]
      %v168 = vld [vmem:[%s145 + $0x68] sm:$0xff]
      %v169 = vld [vmem:[%s145 + $0x70] sm:$0xff]
      %v170 = vld [vmem:[%s145 + $0x78] sm:$0xff]
      %v171 = vld [vmem:[%s145 + $0x80] sm:$0xff]
      %v172 = vld [vmem:[%s145 + $0x88] sm:$0xff]
      %v173 = vld [vmem:[%s145 + $0x90] sm:$0xff]
      %v174 = vld [vmem:[%s145 + $0x98] sm:$0xff]
      %v175 = vld [vmem:[%s145 + $0xa0] sm:$0xff]
      %v176 = vld [vmem:[%s145 + $0xa8] sm:$0xff]
      %v177 = vld [vmem:[%s145 + $0xb0] sm:$0xff]
      %v178 = vld [vmem:[%s145 + $0xb8] sm:$0xff]
      %v179 = vld [vmem:[%s145 + $0xc0] sm:$0xff]
      %v180 = vld [vmem:[%s145 + $0xc8] sm:$0xff]
      %v181 = vld [vmem:[%s145 + $0xd0] sm:$0xff]
      %v182 = vld [vmem:[%s145 + $0xd8] sm:$0xff]
      %v183 = vld [vmem:[%s145 + $0xe0] sm:$0xff]
      %v184 = vld [vmem:[%s145 + $0xe8] sm:$0xff]
      %v185 = vld [vmem:[%s145 + $0xf0] sm:$0xff]
      %v186 = vld [vmem:[%s145 + $0xf8] sm:$0xff]
      %v187 = vadd.f32 %v155, %v156
      %v188 = vadd.f32 %v187, %v157
      %v189 = vadd.f32 %v188, %v158
      %v190 = vadd.f32 %v189, %v159
      %v191 = vadd.f32 %v190, %v160
      %v192 = vadd.f32 %v191, %v161
      %v193 = vadd.f32 %v192, %v162
      %v194 = vadd.f32 %v193, %v163
      %v195 = vadd.f32 %v194, %v164
      %v196 = vadd.f32 %v195, %v165
      %v197 = vadd.f32 %v196, %v166
      %v198 = vadd.f32 %v197, %v167
      %v199 = vadd.f32 %v198, %v168
      %v200 = vadd.f32 %v199, %v169
      %v201 = vadd.f32 %v200, %v170
      %v202 = vadd.f32 %v201, %v171
      %v203 = vadd.f32 %v202, %v172
      %v204 = vadd.f32 %v203, %v173
      %v205 = vadd.f32 %v204, %v174
      %v206 = vadd.f32 %v205, %v175
      %v207 = vadd.f32 %v206, %v176
      %v208 = vadd.f32 %v207, %v177
      %v209 = vadd.f32 %v208, %v178
      %v210 = vadd.f32 %v209, %v179
      %v211 = vadd.f32 %v210, %v180
      %v212 = vadd.f32 %v211, %v181
      %v213 = vadd.f32 %v212, %v182
      %v214 = vadd.f32 %v213, %v183
      %v215 = vadd.f32 %v214, %v184
      %v216 = vadd.f32 %v215, %v185
      %v217 = vadd.f32 %v216, %v186
      %v218 = vrot.slane %v217, 4
      %v219 = vadd.f32 %v217, %v218
      %v220 = vrot.slane %v219, 2
      %v221 = vadd.f32 %v219, %v220
      %v222 = vrot.slane %v221, 1
      %v223 = vadd.f32 %v221, %v222
      %v224 = vmul.f32 %v155, %v155
      %v225 = vmul.f32 %v156, %v156
      %v226 = vmul.f32 %v157, %v157
      %v227 = vmul.f32 %v158, %v158
      %v228 = vmul.f32 %v159, %v159
      %v229 = vmul.f32 %v160, %v160
      %v230 = vmul.f32 %v161, %v161
      %v231 = vmul.f32 %v162, %v162
      %v232 = vmul.f32 %v163, %v163
      %v233 = vmul.f32 %v164, %v164
      %v234 = vmul.f32 %v165, %v165
      %v235 = vmul.f32 %v166, %v166
      %v236 = vmul.f32 %v167, %v167
      %v237 = vmul.f32 %v168, %v168
      %v238 = vmul.f32 %v169, %v169
      %v239 = vmul.f32 %v170, %v170
      %v240 = vmul.f32 %v171, %v171
      %v241 = vmul.f32 %v172, %v172
      %v242 = vmul.f32 %v173, %v173
      %v243 = vmul.f32 %v174, %v174
      %v244 = vmul.f32 %v175, %v175
      %v245 = vmul.f32 %v176, %v176
      %v246 = vmul.f32 %v177, %v177
      %v247 = vmul.f32 %v178, %v178
      %v248 = vmul.f32 %v179, %v179
      %v249 = vmul.f32 %v180, %v180
      %v250 = vmul.f32 %v181, %v181
      %v251 = vmul.f32 %v182, %v182
      %v252 = vmul.f32 %v183, %v183
      %v253 = vmul.f32 %v184, %v184
      %v254 = vmul.f32 %v185, %v185
      %v255 = vmul.f32 %v186, %v186
      %v256 = vadd.f32 %v224, %v225
      %v257 = vadd.f32 %v256, %v226
      %v258 = vadd.f32 %v257, %v227
      %v259 = vadd.f32 %v258, %v228
      %v260 = vadd.f32 %v259, %v229
      %v261 = vadd.f32 %v260, %v230
      %v262 = vadd.f32 %v261, %v231
      %v263 = vadd.f32 %v262, %v232
      %v264 = vadd.f32 %v263, %v233
      %v265 = vadd.f32 %v264, %v234
      %v266 = vadd.f32 %v265, %v235
      %v267 = vadd.f32 %v266, %v236
      %v268 = vadd.f32 %v267, %v237
      %v269 = vadd.f32 %v268, %v238
      %v270 = vadd.f32 %v269, %v239
      %v271 = vadd.f32 %v270, %v240
      %v272 = vadd.f32 %v271, %v241
      %v273 = vadd.f32 %v272, %v242
      %v274 = vadd.f32 %v273, %v243
      %v275 = vadd.f32 %v274, %v244
      %v276 = vadd.f32 %v275, %v245
      %v277 = vadd.f32 %v276, %v246
      %v278 = vadd.f32 %v277, %v247
      %v279 = vadd.f32 %v278, %v248
      %v280 = vadd.f32 %v279, %v249
      %v281 = vadd.f32 %v280, %v250
      %v282 = vadd.f32 %v281, %v251
      %v283 = vadd.f32 %v282, %v252
      %v284 = vadd.f32 %v283, %v253
      %v285 = vadd.f32 %v284, %v254
      %v286 = vadd.f32 %v285, %v255
      %v287 = vrot.slane %v286, 4
      %v288 = vadd.f32 %v286, %v287
      %v289 = vrot.slane %v288, 2
      %v290 = vadd.f32 %v288, %v289
      %v291 = vrot.slane %v290, 1
      %v292 = vadd.f32 %v290, %v291
      %293 = vst [vmem:[%s150] sm:$0xff] %v223
      %294 = vst [vmem:[%s154] sm:$0xff] %v292
      %p295 = scmp.lt.s32.totalorder %s14, 1
      %s296 = scalar_select %p295, %s14, 1
      %s297 = smul.addr %s296, 8
      %s298 = scalar_lea.vmem %s1, %s297
      %p299 = scmp.lt.s32.totalorder %s14, 1
      %s300 = scalar_select %p299, %s14, 1
      %s301 = smul.addr %s300, 8
      %s302 = scalar_lea.vmem %s2, %s301
      // Predicated region
      $region25: #{residual_forward.4} parent=23 // pred_check
        %p303 = pneg %p58
      $region26: #{residual_forward.4} parent=23 // pred_check_branch
        %305 = sbr.rel (%p303) target = $region28
      $region27: #{residual_forward.4} parent=23 // pred_region
        _
      $region28: #{residual_forward.4} parent=23 // pred_fallthru
        _
      // Predicated region
      $region29: #{residual_forward.4} parent=23 // pred_check
        %p306 = pneg %p84
      $region30: #{residual_forward.4} parent=23 // pred_check_branch
        %308 = sbr.rel (%p306) target = $region32
      $region31: #{residual_forward.4} parent=23 // pred_region
        _
      $region32: #{residual_forward.4} parent=23 // pred_fallthru
        _
    $region24: #{residual_forward.4} parent=5 // pred_fallthru
      _
    %p309 = scmp.le.s32.totalorder 2, %s9
    // Predicated region
    $region33: #{residual_forward.4} parent=5 // pred_check
      %p310 = pneg %p309
    $region34: #{residual_forward.4} parent=5 // pred_check_branch
      %312 = sbr.rel (%p310) target = $region36
    $region35: #{residual_forward.4} parent=5 // pred_region
      %s313 = ssub.s32 %s9, 2
      // Predicated region
      $region37: #{residual_forward.4} parent=35 // pred_check
        %p314 = pneg %p64
      $region38: #{residual_forward.4} parent=35 // pred_check_branch
        %316 = sbr.rel (%p314) target = $region40
      $region39: #{residual_forward.4} parent=35 // pred_region
        %p317 = scmp.lt.s32.totalorder %s15, 1
        %s318 = scalar_select %p317, %s15, 1
        %s319 = smul.addr %s318, 8
        %s320 = scalar_lea.vmem %s1, %s319
      $region40: #{residual_forward.4} parent=35 // pred_fallthru
        _
      // Predicated region
      $region41: #{residual_forward.4} parent=35 // pred_check
        %p321 = pneg %p90
      $region42: #{residual_forward.4} parent=35 // pred_check_branch
        %323 = sbr.rel (%p321) target = $region44
      $region43: #{residual_forward.4} parent=35 // pred_region
        %p324 = scmp.lt.s32.totalorder %s15, 1
        %s325 = scalar_select %p324, %s15, 1
        %s326 = smul.addr %s325, 8
        %s327 = scalar_lea.vmem %s2, %s326
      $region44: #{residual_forward.4} parent=35 // pred_fallthru
        _
    $region36: #{residual_forward.4} parent=5 // pred_fallthru
      _
  $region6: #{residual_forward.4} parent=0 // loop_footer
    %s13 = sadd.s32 1, %s9
  $region7: #{residual_forward.4} parent=0 // loop_footer_branch
    %8 = sbr.rel target = $region3
  $region8: #{residual_forward.4} parent=0 // loop_exit
    _

// kernel: residual_forward.5
$region0: #{residual_forward.5}
  #allocation0 [shape = 'u32[]', space=smem, size = 0x4, offset = 0x4, fixed_abs, tag = 'smem constant byte address 0x4 - core index']
  #allocation1 [shape = 'u32[144,128]{1,0:T(1,128)}', space=vmem, size = 0x12000, scoped, tag = 'internal scratch']
  %s0 = inlined_call_operand.vmem [shape: f32[512,128], index: 0, kind: input, shape index: {}]
  %s1 = inlined_call_operand.vmem [shape: f32[1,128], index: 1, kind: input, shape index: {}]
  %s2 = inlined_call_operand.vmem [shape: f32[1,128], index: 2, kind: input, shape index: {}]
  %s3 = inlined_call_operand.vmem [shape: bf16[128,128], index: 3, kind: input, shape index: {}]
  %s4 = inlined_call_operand.vmem [shape: f32[1,128], index: 4, kind: input, shape index: {}]
  %s5 = inlined_call_operand.vmem [shape: f32[512,128], index: 5, kind: output, shape index: {0}]
  %s6 = inlined_call_operand.vmem [shape: f32[2,8,128], index: 6, kind: output, shape index: {1}]
  %s7 = inlined_call_operand.vmem [shape: f32[2,8,128], index: 7, kind: output, shape index: {2}]
  %8 = xla_tuple %s5, %s6, %s7
  %s9 = sld [smem:[#allocation0]]
  $region69: #{residual_forward.5} parent=0
    _
  %s11 = ssub.s32 1, %s9
  %s12 = scalar_select 0, %s11, %s9
  loop: start=0, step=1, limit=4
  $region2: #{residual_forward.5} parent=0 // loop_pre_header
    _
  $region3: #{residual_forward.5} parent=0 // loop_header
    %s14 = sphi 0, %s18
    %p15 = scmp.ge.s32.totalorder %s14, 4
    %s24 = sphi 0, %s26
    %s27 = sphi 0, %s24
    %s28 = sphi 0, %s27
    %s44 = sphi 0, %s28
    %s48 = sphi 0, %s48
    %s50 = sphi 0, %s48
    %s51 = sphi 0, %s50
    %s65 = sphi 0, %s51
    %s69 = sphi 0, %s69
    %s71 = sphi 0, %s69
    %s72 = sphi 0, %s71
    %s86 = sphi 0, %s72
    %s90 = sphi 0, %s90
    %s92 = sphi 0, %s90
    %s93 = sphi 0, %s92
    %s107 = sphi 0, %s93
    %s111 = sphi 0, %s111
    %s113 = sphi 0, %s111
    %s114 = sphi 0, %s113
    %s128 = sphi 0, %s114
    %s134 = sphi 0, %s136
    %s137 = sphi 0, %s134
    %s138 = sphi 0, %s137
    %s154 = sphi 0, %s138
    %s160 = sphi 0, %s162
    %s163 = sphi 0, %s160
    %s164 = sphi 0, %s163
    %s180 = sphi 0, %s164
    %s186 = sphi 0, %s188
    %s189 = sphi 0, %s186
    %s190 = sphi 0, %s189
    %s206 = sphi 0, %s190
  $region4: #{residual_forward.5} parent=0 // loop_header_branch
    %17 = sbr.rel (%p15) target = $region8
  $region5: #{residual_forward.5} parent=0 // loop_body
    %s19 = ssub.s32 %s14, 1
    %s20 = ssub.s32 %s14, 2
    %s21 = sadd.s32 %s14, 1
    %s22 = ssub.s32 %s14, %s21
    %p23 = scmp.eq.s32.totalorder %s22, 0
    %s25 = sadd.s32 %s24, 1
    %s26 = scalar_select %p23, %s24, %s25
    %p29 = pneg %p23
    %p30 = scmp.eq.s32.totalorder %s14, 1
    %p31 = por %p29, %p30
    %p32 = scmp.ne.s32.totalorder %s24, %s27
    %p33 = scmp.eq.s32.totalorder %s14, 0
    %p34 = por %p32, %p33
    %p35 = scmp.ne.s32.totalorder %s24, %s27
    %p36 = scmp.eq.s32.totalorder %s19, 1
    %p37 = por %p35, %p36
    %p38 = scmp.ne.s32.totalorder %s27, %s28
    %p39 = scmp.eq.s32.totalorder %s19, 0
    %p40 = por %p38, %p39
    %p41 = scmp.ne.s32.totalorder %s27, %s28
    %p42 = scmp.eq.s32.totalorder %s20, 1
    %p43 = por %p41, %p42
    %p45 = scmp.ne.s32.totalorder %s28, %s44
    %p46 = scmp.eq.s32.totalorder %s20, 0
    %p47 = por %p45, %p46
    %s49 = sadd.s32 %s48, 1
    %p52 = scmp.eq.s32.totalorder %s14, 1
    %p53 = scmp.ne.s32.totalorder %s48, %s50
    %p54 = scmp.eq.s32.totalorder %s14, 0
    %p55 = por %p53, %p54
    %p56 = scmp.ne.s32.totalorder %s48, %s50
    %p57 = scmp.eq.s32.totalorder %s19, 1
    %p58 = por %p56, %p57
    %p59 = scmp.ne.s32.totalorder %s50, %s51
    %p60 = scmp.eq.s32.totalorder %s19, 0
    %p61 = por %p59, %p60
    %p62 = scmp.ne.s32.totalorder %s50, %s51
    %p63 = scmp.eq.s32.totalorder %s20, 1
    %p64 = por %p62, %p63
    %p66 = scmp.ne.s32.totalorder %s51, %s65
    %p67 = scmp.eq.s32.totalorder %s20, 0
    %p68 = por %p66, %p67
    %s70 = sadd.s32 %s69, 1
    %p73 = scmp.eq.s32.totalorder %s14, 1
    %p74 = scmp.ne.s32.totalorder %s69, %s71
    %p75 = scmp.eq.s32.totalorder %s14, 0
    %p76 = por %p74, %p75
    %p77 = scmp.ne.s32.totalorder %s69, %s71
    %p78 = scmp.eq.s32.totalorder %s19, 1
    %p79 = por %p77, %p78
    %p80 = scmp.ne.s32.totalorder %s71, %s72
    %p81 = scmp.eq.s32.totalorder %s19, 0
    %p82 = por %p80, %p81
    %p83 = scmp.ne.s32.totalorder %s71, %s72
    %p84 = scmp.eq.s32.totalorder %s20, 1
    %p85 = por %p83, %p84
    %p87 = scmp.ne.s32.totalorder %s72, %s86
    %p88 = scmp.eq.s32.totalorder %s20, 0
    %p89 = por %p87, %p88
    %s91 = sadd.s32 %s90, 1
    %p94 = scmp.eq.s32.totalorder %s14, 1
    %p95 = scmp.ne.s32.totalorder %s90, %s92
    %p96 = scmp.eq.s32.totalorder %s14, 0
    %p97 = por %p95, %p96
    %p98 = scmp.ne.s32.totalorder %s90, %s92
    %p99 = scmp.eq.s32.totalorder %s19, 1
    %p100 = por %p98, %p99
    %p101 = scmp.ne.s32.totalorder %s92, %s93
    %p102 = scmp.eq.s32.totalorder %s19, 0
    %p103 = por %p101, %p102
    %p104 = scmp.ne.s32.totalorder %s92, %s93
    %p105 = scmp.eq.s32.totalorder %s20, 1
    %p106 = por %p104, %p105
    %p108 = scmp.ne.s32.totalorder %s93, %s107
    %p109 = scmp.eq.s32.totalorder %s20, 0
    %p110 = por %p108, %p109
    %s112 = sadd.s32 %s111, 1
    %p115 = scmp.eq.s32.totalorder %s14, 1
    %p116 = scmp.ne.s32.totalorder %s111, %s113
    %p117 = scmp.eq.s32.totalorder %s14, 0
    %p118 = por %p116, %p117
    %p119 = scmp.ne.s32.totalorder %s111, %s113
    %p120 = scmp.eq.s32.totalorder %s19, 1
    %p121 = por %p119, %p120
    %p122 = scmp.ne.s32.totalorder %s113, %s114
    %p123 = scmp.eq.s32.totalorder %s19, 0
    %p124 = por %p122, %p123
    %p125 = scmp.ne.s32.totalorder %s113, %s114
    %p126 = scmp.eq.s32.totalorder %s20, 1
    %p127 = por %p125, %p126
    %p129 = scmp.ne.s32.totalorder %s114, %s128
    %p130 = scmp.eq.s32.totalorder %s20, 0
    %p131 = por %p129, %p130
    %s132 = ssub.s32 %s14, %s21
    %p133 = scmp.eq.s32.totalorder %s132, 0
    %s135 = sadd.s32 %s134, 1
    %s136 = scalar_select %p133, %s134, %s135
    %p139 = pneg %p133
    %p140 = scmp.eq.s32.totalorder %s14, 1
    %p141 = por %p139, %p140
    %p142 = scmp.ne.s32.totalorder %s134, %s137
    %p143 = scmp.eq.s32.totalorder %s14, 0
    %p144 = por %p142, %p143
    %p145 = scmp.ne.s32.totalorder %s134, %s137
    %p146 = scmp.eq.s32.totalorder %s19, 1
    %p147 = por %p145, %p146
    %p148 = scmp.ne.s32.totalorder %s137, %s138
    %p149 = scmp.eq.s32.totalorder %s19, 0
    %p150 = por %p148, %p149
    %p151 = scmp.ne.s32.totalorder %s137, %s138
    %p152 = scmp.eq.s32.totalorder %s20, 1
    %p153 = por %p151, %p152
    %p155 = scmp.ne.s32.totalorder %s138, %s154
    %p156 = scmp.eq.s32.totalorder %s20, 0
    %p157 = por %p155, %p156
    %s158 = ssub.s32 %s14, %s21
    %p159 = scmp.eq.s32.totalorder %s158, 0
    %s161 = sadd.s32 %s160, 1
    %s162 = scalar_select %p159, %s160, %s161
    %p165 = pneg %p159
    %p166 = scmp.eq.s32.totalorder %s14, 1
    %p167 = por %p165, %p166
    %p168 = scmp.ne.s32.totalorder %s160, %s163
    %p169 = scmp.eq.s32.totalorder %s14, 0
    %p170 = por %p168, %p169
    %p171 = scmp.ne.s32.totalorder %s160, %s163
    %p172 = scmp.eq.s32.totalorder %s19, 1
    %p173 = por %p171, %p172
    %p174 = scmp.ne.s32.totalorder %s163, %s164
    %p175 = scmp.eq.s32.totalorder %s19, 0
    %p176 = por %p174, %p175
    %p177 = scmp.ne.s32.totalorder %s163, %s164
    %p178 = scmp.eq.s32.totalorder %s20, 1
    %p179 = por %p177, %p178
    %p181 = scmp.ne.s32.totalorder %s164, %s180
    %p182 = scmp.eq.s32.totalorder %s20, 0
    %p183 = por %p181, %p182
    %s184 = ssub.s32 %s14, %s21
    %p185 = scmp.eq.s32.totalorder %s184, 0
    %s187 = sadd.s32 %s186, 1
    %s188 = scalar_select %p185, %s186, %s187
    %p191 = pneg %p185
    %p192 = scmp.eq.s32.totalorder %s14, 1
    %p193 = por %p191, %p192
    %p194 = scmp.ne.s32.totalorder %s186, %s189
    %p195 = scmp.eq.s32.totalorder %s14, 0
    %p196 = por %p194, %p195
    %p197 = scmp.ne.s32.totalorder %s186, %s189
    %p198 = scmp.eq.s32.totalorder %s19, 1
    %p199 = por %p197, %p198
    %p200 = scmp.ne.s32.totalorder %s189, %s190
    %p201 = scmp.eq.s32.totalorder %s19, 0
    %p202 = por %p200, %p201
    %p203 = scmp.ne.s32.totalorder %s189, %s190
    %p204 = scmp.eq.s32.totalorder %s20, 1
    %p205 = por %p203, %p204
    %p207 = scmp.ne.s32.totalorder %s190, %s206
    %p208 = scmp.eq.s32.totalorder %s20, 0
    %p209 = por %p207, %p208
    %p210 = scmp.le.s32.totalorder 1, %s14
    %p211 = scmp.lt.s32.totalorder %s14, 3
    %p212 = pnand %p210, %p211
    %p213 = pneg %p212
    // Predicated region
    $region9: #{residual_forward.5} parent=5 // pred_check
      _
    $region10: #{residual_forward.5} parent=5 // pred_check_branch
      %215 = sbr.rel (%p212) target = $region12
    $region11: #{residual_forward.5} parent=5 // pred_region
      %s216 = ssub.s32 %s14, 1
      // Predicated region
      $region13: #{residual_forward.5} parent=11 // pred_check
        %p217 = pneg %p61
      $region14: #{residual_forward.5} parent=11 // pred_check_branch
        %219 = sbr.rel (%p217) target = $region16
      $region15: #{residual_forward.5} parent=11 // pred_region
        _
      $region16: #{residual_forward.5} parent=11 // pred_fallthru
        _
      // Predicated region
      $region17: #{residual_forward.5} parent=11 // pred_check
        %p220 = pneg %p82
      $region18: #{residual_forward.5} parent=11 // pred_check_branch
        %222 = sbr.rel (%p220) target = $region20
      $region19: #{residual_forward.5} parent=11 // pred_region
        _
      $region20: #{residual_forward.5} parent=11 // pred_fallthru
        _
      // Predicated region
      $region21: #{residual_forward.5} parent=11 // pred_check
        %p223 = pneg %p103
      $region22: #{residual_forward.5} parent=11 // pred_check_branch
        %225 = sbr.rel (%p223) target = $region24
      $region23: #{residual_forward.5} parent=11 // pred_region
        _
      $region24: #{residual_forward.5} parent=11 // pred_fallthru
        _
      // Predicated region
      $region25: #{residual_forward.5} parent=11 // pred_check
        %p226 = pneg %p124
      $region26: #{residual_forward.5} parent=11 // pred_check_branch
        %228 = sbr.rel (%p226) target = $region28
      $region27: #{residual_forward.5} parent=11 // pred_region
        _
      $region28: #{residual_forward.5} parent=11 // pred_fallthru
        _
    $region12: #{residual_forward.5} parent=5 // pred_fallthru
      _
    %p229 = scmp.lt.s32.totalorder %s14, 2
    // Predicated region
    $region29: #{residual_forward.5} parent=5 // pred_check
      %p230 = pneg %p229
    $region30: #{residual_forward.5} parent=5 // pred_check_branch
      %232 = sbr.rel (%p230) target = $region32
    $region31: #{residual_forward.5} parent=5 // pred_region
      // Predicated region
      $region33: #{residual_forward.5} parent=31 // pred_check
        %p233 = pneg %p34
      $region34: #{residual_forward.5} parent=31 // pred_check_branch
        %235 = sbr.rel (%p233) target = $region36
      $region35: #{residual_forward.5} parent=31 // pred_region
        %s236 = smul.u32 32, %s14
        %p237 = scmp.lt.s32.totalorder %s236, 63
        %s238 = scalar_select %p237, %s236, 63
        %s239 = smul.addr %s238, 8
        %s240 = scalar_lea.vmem %s0, %s239
        %s241 = smul.u32 32, %s14
      $region36: #{residual_forward.5} parent=31 // pred_fallthru
        _
    $region32: #{residual_forward.5} parent=5 // pred_fallthru
      _
    %p242 = scmp.le.s32.totalorder 1, %s14
    %p243 = scmp.lt.s32.totalorder %s14, 3
    %p244 = pnand %p242, %p243
    %p245 = pneg %p244
    // Predicated region
    $region37: #{residual_forward.5} parent=5 // pred_check
      _
    $region38: #{residual_forward.5} parent=5 // pred_check_branch
      %247 = sbr.rel (%p244) target = $region40
    $region39: #{residual_forward.5} parent=5 // pred_region
      %s248 = ssub.s32 %s14, 1
      %s249 = smul.u32 32, %s19
      %p250 = scmp.lt.s32.totalorder %s249, 63
      %s251 = scalar_select %p250, %s249, 63
      %s252 = smul.addr %s251, 8
      %s253 = scalar_lea.vmem %s0, %s252
      %p254 = pneg %p40
      %p255 = pneg %p37
      %p256 = pneg %p61
      %p257 = pneg %p58
      %p258 = pneg %p82
      %p259 = pneg %p79
      %p260 = pneg %p103
      %p261 = pneg %p100
      %p262 = pneg %p124
      %p263 = pneg %p121
      %p264 = pneg %p150
      %p265 = pneg %p147
      %s266 = smul.u32 32, %s19
      %p267 = scmp.lt.s32.totalorder %s266, 63
      %s268 = scalar_select %p267, %s266, 63
      %s269 = smul.addr %s268, 8
      %s270 = scalar_lea.vmem %s5, %s269
      %p271 = pneg %p176
      %p272 = pneg %p173
      %p273 = scmp.lt.s32.totalorder %s19, 1
      %s274 = scalar_select %p273, %s19, 1
      %s275 = smul.addr %s274, 8
      %s276 = scalar_lea.vmem %s6, %s275
      %p277 = pneg %p202
      %p278 = pneg %p199
      %p279 = scmp.lt.s32.totalorder %s19, 1
      %s280 = scalar_select %p279, %s19, 1
      %s281 = smul.addr %s280, 8
      %s282 = scalar_lea.vmem %s7, %s281
      %s283 = smul.u32 32, %s19
      %p284 = scmp.lt.s32.totalorder %s283, 63
      %s285 = scalar_select %p284, %s283, 63
      %s286 = smul.addr %s285, 8
      %s287 = scalar_lea.vmem %s0, %s286
      %s288 = smul.u32 32, %s19
      %s289 = smul.u32 32, %s19
      %p290 = scmp.lt.s32.totalorder %s289, 63
      %s291 = scalar_select %p290, %s289, 63
      %s292 = smul.addr %s291, 8
      %s293 = scalar_lea.vmem %s5, %s292
      %s294 = smul.u32 32, %s19
      %p295 = scmp.lt.s32.totalorder %s19, 1
      %s296 = scalar_select %p295, %s19, 1
      %s297 = smul.addr %s296, 8
      %s298 = scalar_lea.vmem %s6, %s297
      %p299 = scmp.lt.s32.totalorder %s19, 1
      %s300 = scalar_select %p299, %s19, 1
      %s301 = smul.addr %s300, 8
      %s302 = scalar_lea.vmem %s7, %s301
      %v304 = vld [vmem:[%s287] sm:$0xff]
      %v305 = vld [vmem:[%s287 + $0x8] sm:$0xff]
      %v306 = vld [vmem:[%s287 + $0x10] sm:$0xff]
      %v307 = vld [vmem:[%s287 + $0x18] sm:$0xff]
      %v308 = vld [vmem:[%s287 + $0x20] sm:$0xff]
      %v309 = vld [vmem:[%s287 + $0x28] sm:$0xff]
      %v310 = vld [vmem:[%s287 + $0x30] sm:$0xff]
      %v311 = vld [vmem:[%s287 + $0x38] sm:$0xff]
      %v312 = vld [vmem:[%s287 + $0x40] sm:$0xff]
      %v313 = vld [vmem:[%s287 + $0x48] sm:$0xff]
      %v314 = vld [vmem:[%s287 + $0x50] sm:$0xff]
      %v315 = vld [vmem:[%s287 + $0x58] sm:$0xff]
      %v316 = vld [vmem:[%s287 + $0x60] sm:$0xff]
      %v317 = vld [vmem:[%s287 + $0x68] sm:$0xff]
      %v318 = vld [vmem:[%s287 + $0x70] sm:$0xff]
      %v319 = vld [vmem:[%s287 + $0x78] sm:$0xff]
      %v320 = vld [vmem:[%s287 + $0x80] sm:$0xff]
      %v321 = vld [vmem:[%s287 + $0x88] sm:$0xff]
      %v322 = vld [vmem:[%s287 + $0x90] sm:$0xff]
      %v323 = vld [vmem:[%s287 + $0x98] sm:$0xff]
      %v324 = vld [vmem:[%s287 + $0xa0] sm:$0xff]
      %v325 = vld [vmem:[%s287 + $0xa8] sm:$0xff]
      %v326 = vld [vmem:[%s287 + $0xb0] sm:$0xff]
      %v327 = vld [vmem:[%s287 + $0xb8] sm:$0xff]
      %v328 = vld [vmem:[%s287 + $0xc0] sm:$0xff]
      %v329 = vld [vmem:[%s287 + $0xc8] sm:$0xff]
      %v330 = vld [vmem:[%s287 + $0xd0] sm:$0xff]
      %v331 = vld [vmem:[%s287 + $0xd8] sm:$0xff]
      %v332 = vld [vmem:[%s287 + $0xe0] sm:$0xff]
      %v333 = vld [vmem:[%s287 + $0xe8] sm:$0xff]
      %v334 = vld [vmem:[%s287 + $0xf0] sm:$0xff]
      %v335 = vld [vmem:[%s287 + $0xf8] sm:$0xff]
      %v336 = vld [vmem:[%s1] sm:$0x1]
      %v338 = vlaneseq
      %v339 = vshrl.u32 %v338, 7
      %v340 = vsub.s32 0, %v339
      %v341 = vrot.slane %v336, %v340
      %v343 = vmul.f32 %v304, %v341
      %v344 = vmul.f32 %v305, %v341
      %v345 = vmul.f32 %v306, %v341
      %v346 = vmul.f32 %v307, %v341
      %v347 = vmul.f32 %v308, %v341
      %v348 = vmul.f32 %v309, %v341
      %v349 = vmul.f32 %v310, %v341
      %v350 = vmul.f32 %v311, %v341
      %v351 = vmul.f32 %v312, %v341
      %v352 = vmul.f32 %v313, %v341
      %v353 = vmul.f32 %v314, %v341
      %v354 = vmul.f32 %v315, %v341
      %v355 = vmul.f32 %v316, %v341
      %v356 = vmul.f32 %v317, %v341
      %v357 = vmul.f32 %v318, %v341
      %v358 = vmul.f32 %v319, %v341
      %v359 = vmul.f32 %v320, %v341
      %v360 = vmul.f32 %v321, %v341
      %v361 = vmul.f32 %v322, %v341
      %v362 = vmul.f32 %v323, %v341
      %v363 = vmul.f32 %v324, %v341
      %v364 = vmul.f32 %v325, %v341
      %v365 = vmul.f32 %v326, %v341
      %v366 = vmul.f32 %v327, %v341
      %v367 = vmul.f32 %v328, %v341
      %v368 = vmul.f32 %v329, %v341
      %v369 = vmul.f32 %v330, %v341
      %v370 = vmul.f32 %v331, %v341
      %v371 = vmul.f32 %v332, %v341
      %v372 = vmul.f32 %v333, %v341
      %v373 = vmul.f32 %v334, %v341
      %v374 = vmul.f32 %v335, %v341
      %v375 = vld [vmem:[%s2] sm:$0x1]
      %v377 = vlaneseq
      %v378 = vshrl.u32 %v377, 7
      %v379 = vsub.s32 0, %v378
      %v380 = vrot.slane %v375, %v379
      %v382 = vadd.f32 %v343, %v380
      %v383 = vadd.f32 %v344, %v380
      %v384 = vadd.f32 %v345, %v380
      %v385 = vadd.f32 %v346, %v380
      %v386 = vadd.f32 %v347, %v380
      %v387 = vadd.f32 %v348, %v380
      %v388 = vadd.f32 %v349, %v380
      %v389 = vadd.f32 %v350, %v380
      %v390 = vadd.f32 %v351, %v380
      %v391 = vadd.f32 %v352, %v380
      %v392 = vadd.f32 %v353, %v380
      %v393 = vadd.f32 %v354, %v380
      %v394 = vadd.f32 %v355, %v380
      %v395 = vadd.f32 %v356, %v380
      %v396 = vadd.f32 %v357, %v380
      %v397 = vadd.f32 %v358, %v380
      %v398 = vadd.f32 %v359, %v380
      %v399 = vadd.f32 %v360, %v380
      %v400 = vadd.f32 %v361, %v380
      %v401 = vadd.f32 %v362, %v380
      %v402 = vadd.f32 %v363, %v380
      %v403 = vadd.f32 %v364, %v380
      %v404 = vadd.f32 %v365, %v380
      %v405 = vadd.f32 %v366, %v380
      %v406 = vadd.f32 %v367, %v380
      %v407 = vadd.f32 %v368, %v380
      %v408 = vadd.f32 %v369, %v380
      %v409 = vadd.f32 %v370, %v380
      %v410 = vadd.f32 %v371, %v380
      %v411 = vadd.f32 %v372, %v380
      %v412 = vadd.f32 %v373, %v380
      %v413 = vadd.f32 %v374, %v380
      %v414 = vmax.f32 %v382, 0.0
      %v415 = vmax.f32 %v383, 0.0
      %v416 = vmax.f32 %v384, 0.0
      %v417 = vmax.f32 %v385, 0.0
      %v418 = vmax.f32 %v386, 0.0
      %v419 = vmax.f32 %v387, 0.0
      %v420 = vmax.f32 %v388, 0.0
      %v421 = vmax.f32 %v389, 0.0
      %v422 = vmax.f32 %v390, 0.0
      %v423 = vmax.f32 %v391, 0.0
      %v424 = vmax.f32 %v392, 0.0
      %v425 = vmax.f32 %v393, 0.0
      %v426 = vmax.f32 %v394, 0.0
      %v427 = vmax.f32 %v395, 0.0
      %v428 = vmax.f32 %v396, 0.0
      %v429 = vmax.f32 %v397, 0.0
      %v430 = vmax.f32 %v398, 0.0
      %v431 = vmax.f32 %v399, 0.0
      %v432 = vmax.f32 %v400, 0.0
      %v433 = vmax.f32 %v401, 0.0
      %v434 = vmax.f32 %v402, 0.0
      %v435 = vmax.f32 %v403, 0.0
      %v436 = vmax.f32 %v404, 0.0
      %v437 = vmax.f32 %v405, 0.0
      %v438 = vmax.f32 %v406, 0.0
      %v439 = vmax.f32 %v407, 0.0
      %v440 = vmax.f32 %v408, 0.0
      %v441 = vmax.f32 %v409, 0.0
      %v442 = vmax.f32 %v410, 0.0
      %v443 = vmax.f32 %v411, 0.0
      %v444 = vmax.f32 %v412, 0.0
      %v445 = vmax.f32 %v413, 0.0
      %v446 = vpack.c.bf16 %v415, %v414
      %v447 = vpack.c.bf16 %v417, %v416
      %v448 = vpack.c.bf16 %v419, %v418
      %v449 = vpack.c.bf16 %v421, %v420
      %v450 = vpack.c.bf16 %v423, %v422
      %v451 = vpack.c.bf16 %v425, %v424
      %v452 = vpack.c.bf16 %v427, %v426
      %v453 = vpack.c.bf16 %v429, %v428
      %v454 = vpack.c.bf16 %v431, %v430
      %v455 = vpack.c.bf16 %v433, %v432
      %v456 = vpack.c.bf16 %v435, %v434
      %v457 = vpack.c.bf16 %v437, %v436
      %v458 = vpack.c.bf16 %v439, %v438
      %v459 = vpack.c.bf16 %v441, %v440
      %v460 = vpack.c.bf16 %v443, %v442
      %v461 = vpack.c.bf16 %v445, %v444
      %v462 = vld [vmem:[%s3] sm:$0xf]
      %v463 = vld [vmem:[%s3 + $0x4] sm:$0xf]
      %v464 = vld [vmem:[%s3 + $0x8] sm:$0xf]
      %v465 = vld [vmem:[%s3 + $0xc] sm:$0xf]
      %v466 = vld [vmem:[%s3 + $0x10] sm:$0xf]
      %v467 = vld [vmem:[%s3 + $0x14] sm:$0xf]
      %v468 = vld [vmem:[%s3 + $0x18] sm:$0xf]
      %v469 = vld [vmem:[%s3 + $0x1c] sm:$0xf]
      %v470 = vld [vmem:[%s3 + $0x20] sm:$0xf]
      %v471 = vld [vmem:[%s3 + $0x24] sm:$0xf]
      %v472 = vld [vmem:[%s3 + $0x28] sm:$0xf]
      %v473 = vld [vmem:[%s3 + $0x2c] sm:$0xf]
      %v474 = vld [vmem:[%s3 + $0x30] sm:$0xf]
      %v475 = vld [vmem:[%s3 + $0x34] sm:$0xf]
      %v476 = vld [vmem:[%s3 + $0x38] sm:$0xf]
      %v477 = vld [vmem:[%s3 + $0x3c] sm:$0xf]
      %v478 = vld [vmem:[%s4] sm:$0x1]
      %v480 = vlaneseq
      %v481 = vshrl.u32 %v480, 7
      %v482 = vsub.s32 0, %v481
      %v483 = vrot.slane %v478, %v482
      %v501 = vunpack.c.l.b16 %v462
      %v502 = vunpack.c.l.b16 %v463
      %v503 = vunpack.c.l.b16 %v464
      %v504 = vunpack.c.l.b16 %v465
      %v505 = vunpack.c.l.b16 %v466
      %v506 = vunpack.c.l.b16 %v467
      %v507 = vunpack.c.l.b16 %v468
      %v508 = vunpack.c.l.b16 %v469
      %v509 = vunpack.c.l.b16 %v470
      %v510 = vunpack.c.l.b16 %v471
      %v511 = vunpack.c.l.b16 %v472
      %v512 = vunpack.c.l.b16 %v473
      %v513 = vunpack.c.l.b16 %v474
      %v514 = vunpack.c.l.b16 %v475
      %v515 = vunpack.c.l.b16 %v476
      %v516 = vunpack.c.l.b16 %v477
      %v517 = vpack.c.b16 %v502, %v501
      %v518 = vpack.c.b16 %v504, %v503
      %v519 = vpack.c.b16 %v506, %v505
      %v520 = vpack.c.b16 %v508, %v507
      %v521 = vpack.c.b16 %v510, %v509
      %v522 = vpack.c.b16 %v512, %v511
      %v523 = vpack.c.b16 %v514, %v513
      %v524 = vpack.c.b16 %v516, %v515
      %533 = vmatprep.subr.bf16.mxu0 0
      %534 = vmatpush1.bf16.msra.mxu0 %v524
      %535 = vmatprep.subr.bf16.mxu0 0
      %536 = vmatpush1.bf16.msra.mxu0 %v523
      %537 = vmatprep.subr.bf16.mxu0 0
      %538 = vmatpush1.bf16.msra.mxu0 %v522
      %539 = vmatprep.subr.bf16.mxu0 0
      %540 = vmatpush1.bf16.msra.mxu0 %v521
      %541 = vmatprep.subr.bf16.mxu0 0
      %542 = vmatpush1.bf16.msra.mxu0 %v520
      %543 = vmatprep.subr.bf16.mxu0 0
      %544 = vmatpush1.bf16.msra.mxu0 %v519
      %545 = vmatprep.subr.bf16.mxu0 0
      %546 = vmatpush1.bf16.msra.mxu0 %v518
      %547 = vmatprep.subr.bf16.mxu0 0
      %548 = vmatpush1.bf16.msra.mxu0 %v517
      %549 = vmatprep.subr.bf16.mxu0 0
      %550 = vmatpush2.bf16.msra.mxu0 0
      %551 = vmatprep.subr.bf16.mxu0 0
      %552 = vmatpush2.bf16.msra.mxu0 0
      %553 = vmatprep.subr.bf16.mxu0 0
      %554 = vmatpush2.bf16.msra.mxu0 0
      %555 = vmatprep.subr.bf16.mxu0 0
      %556 = vmatpush2.bf16.msra.mxu0 0
      %557 = vmatprep.subr.bf16.mxu0 0
      %558 = vmatpush2.bf16.msra.mxu0 0
      %559 = vmatprep.subr.bf16.mxu0 0
      %560 = vmatpush2.bf16.msra.mxu0 0
      %561 = vmatprep.subr.bf16.mxu0 0
      %562 = vmatpush2.bf16.msra.mxu0 0
      %563 = vmatprep.subr.bf16.mxu0 0
      %564 = vmatpush2.bf16.msra.mxu0 0
      %565 = vmatprep.mubr.bf16.mxu0 0
      %566 = vmatmul.mubr.bf16.gmra.mxu0 %v446
      %v567 = vpop.f32.mrf.mxu0
      %v568 = vadd.f32 %v483, %v567
      %v569 = vpop.f32.mrf.mxu0
      %v570 = vpop.f32.mrf.mxu0
      %v571 = vadd.f32 %v483, %v570
      %v572 = vpop.f32.mrf.mxu0
      %573 = vmatprep.mubr.bf16.mxu0 0
      %574 = vmatmul.mubr.bf16.gmra.mxu0 %v447
      %v575 = vpop.f32.mrf.mxu0
      %v576 = vadd.f32 %v483, %v575
      %v577 = vpop.f32.mrf.mxu0
      %v578 = vpop.f32.mrf.mxu0
      %v579 = vadd.f32 %v483, %v578
      %v580 = vpop.f32.mrf.mxu0
      %581 = vmatprep.mubr.bf16.mxu0 0
      %582 = vmatmul.mubr.bf16.gmra.mxu0 %v448
      %v583 = vpop.f32.mrf.mxu0
      %v584 = vadd.f32 %v483, %v583
      %v585 = vpop.f32.mrf.mxu0
      %v586 = vpop.f32.mrf.mxu0
      %v587 = vadd.f32 %v483, %v586
      %v588 = vpop.f32.mrf.mxu0
      %589 = vmatprep.mubr.bf16.mxu0 0
      %590 = vmatmul.mubr.bf16.gmra.mxu0 %v449
      %v591 = vpop.f32.mrf.mxu0
      %v592 = vadd.f32 %v483, %v591
      %v593 = vpop.f32.mrf.mxu0
      %v594 = vpop.f32.mrf.mxu0
      %v595 = vadd.f32 %v483, %v594
      %v596 = vpop.f32.mrf.mxu0
      %597 = vmatprep.mubr.bf16.mxu0 0
      %598 = vmatmul.mubr.bf16.gmra.mxu0 %v450
      %v599 = vpop.f32.mrf.mxu0
      %v600 = vadd.f32 %v483, %v599
      %v601 = vpop.f32.mrf.mxu0
      %v602 = vpop.f32.mrf.mxu0
      %v603 = vadd.f32 %v483, %v602
      %v604 = vpop.f32.mrf.mxu0
      %605 = vmatprep.mubr.bf16.mxu0 0
      %606 = vmatmul.mubr.bf16.gmra.mxu0 %v451
      %v607 = vpop.f32.mrf.mxu0
      %v608 = vadd.f32 %v483, %v607
      %v609 = vpop.f32.mrf.mxu0
      %v610 = vpop.f32.mrf.mxu0
      %v611 = vadd.f32 %v483, %v610
      %v612 = vpop.f32.mrf.mxu0
      %613 = vmatprep.mubr.bf16.mxu0 0
      %614 = vmatmul.mubr.bf16.gmra.mxu0 %v452
      %v615 = vpop.f32.mrf.mxu0
      %v616 = vadd.f32 %v483, %v615
      %v617 = vpop.f32.mrf.mxu0
      %v618 = vpop.f32.mrf.mxu0
      %v619 = vadd.f32 %v483, %v618
      %v620 = vpop.f32.mrf.mxu0
      %621 = vmatprep.mubr.bf16.mxu0 0
      %622 = vmatmul.mubr.bf16.gmra.mxu0 %v453
      %v623 = vpop.f32.mrf.mxu0
      %v624 = vadd.f32 %v483, %v623
      %v625 = vpop.f32.mrf.mxu0
      %v626 = vpop.f32.mrf.mxu0
      %v627 = vadd.f32 %v483, %v626
      %v628 = vpop.f32.mrf.mxu0
      %629 = vmatprep.mubr.bf16.mxu0 0
      %630 = vmatmul.mubr.bf16.gmra.mxu0 %v454
      %v631 = vpop.f32.mrf.mxu0
      %v632 = vadd.f32 %v483, %v631
      %v633 = vpop.f32.mrf.mxu0
      %v634 = vpop.f32.mrf.mxu0
      %v635 = vadd.f32 %v483, %v634
      %v636 = vpop.f32.mrf.mxu0
      %637 = vmatprep.mubr.bf16.mxu0 0
      %638 = vmatmul.mubr.bf16.gmra.mxu0 %v455
      %v639 = vpop.f32.mrf.mxu0
      %v640 = vadd.f32 %v483, %v639
      %v641 = vpop.f32.mrf.mxu0
      %v642 = vpop.f32.mrf.mxu0
      %v643 = vadd.f32 %v483, %v642
      %v644 = vpop.f32.mrf.mxu0
      %645 = vmatprep.mubr.bf16.mxu0 0
      %646 = vmatmul.mubr.bf16.gmra.mxu0 %v456
      %v647 = vpop.f32.mrf.mxu0
      %v648 = vadd.f32 %v483, %v647
      %v649 = vpop.f32.mrf.mxu0
      %v650 = vpop.f32.mrf.mxu0
      %v651 = vadd.f32 %v483, %v650
      %v652 = vpop.f32.mrf.mxu0
      %653 = vmatprep.mubr.bf16.mxu0 0
      %654 = vmatmul.mubr.bf16.gmra.mxu0 %v457
      %v655 = vpop.f32.mrf.mxu0
      %v656 = vadd.f32 %v483, %v655
      %v657 = vpop.f32.mrf.mxu0
      %v658 = vpop.f32.mrf.mxu0
      %v659 = vadd.f32 %v483, %v658
      %v660 = vpop.f32.mrf.mxu0
      %661 = vmatprep.mubr.bf16.mxu0 0
      %662 = vmatmul.mubr.bf16.gmra.mxu0 %v458
      %v663 = vpop.f32.mrf.mxu0
      %v664 = vadd.f32 %v483, %v663
      %v665 = vpop.f32.mrf.mxu0
      %v666 = vpop.f32.mrf.mxu0
      %v667 = vadd.f32 %v483, %v666
      %v668 = vpop.f32.mrf.mxu0
      %669 = vmatprep.mubr.bf16.mxu0 0
      %670 = vmatmul.mubr.bf16.gmra.mxu0 %v459
      %v671 = vpop.f32.mrf.mxu0
      %v672 = vadd.f32 %v483, %v671
      %v673 = vpop.f32.mrf.mxu0
      %v674 = vpop.f32.mrf.mxu0
      %v675 = vadd.f32 %v483, %v674
      %v676 = vpop.f32.mrf.mxu0
      %677 = vmatprep.mubr.bf16.mxu0 0
      %678 = vmatmul.mubr.bf16.gmra.mxu0 %v460
      %v679 = vpop.f32.mrf.mxu0
      %v680 = vadd.f32 %v483, %v679
      %v681 = vpop.f32.mrf.mxu0
      %v682 = vpop.f32.mrf.mxu0
      %v683 = vadd.f32 %v483, %v682
      %v684 = vpop.f32.mrf.mxu0
      %685 = vmatprep.mubr.bf16.mxu0 0
      %686 = vmatmul.mubr.bf16.gmra.mxu0 %v461
      %v687 = vpop.f32.mrf.mxu0
      %v688 = vadd.f32 %v483, %v687
      %v689 = vpop.f32.mrf.mxu0
      %v690 = vpop.f32.mrf.mxu0
      %v691 = vadd.f32 %v483, %v690
      %v692 = vpop.f32.mrf.mxu0
      %693 = vdwg.mxu0
      %694 = vst [vmem:[%s293] sm:$0xff] %v568
      %695 = vst [vmem:[%s293 + $0x8] sm:$0xff] %v571
      %696 = vst [vmem:[%s293 + $0x10] sm:$0xff] %v576
      %697 = vst [vmem:[%s293 + $0x18] sm:$0xff] %v579
      %698 = vst [vmem:[%s293 + $0x20] sm:$0xff] %v584
      %699 = vst [vmem:[%s293 + $0x28] sm:$0xff] %v587
      %700 = vst [vmem:[%s293 + $0x30] sm:$0xff] %v592
      %701 = vst [vmem:[%s293 + $0x38] sm:$0xff] %v595
      %702 = vst [vmem:[%s293 + $0x40] sm:$0xff] %v600
      %703 = vst [vmem:[%s293 + $0x48] sm:$0xff] %v603
      %704 = vst [vmem:[%s293 + $0x50] sm:$0xff] %v608
      %705 = vst [vmem:[%s293 + $0x58] sm:$0xff] %v611
      %706 = vst [vmem:[%s293 + $0x60] sm:$0xff] %v616
      %707 = vst [vmem:[%s293 + $0x68] sm:$0xff] %v619
      %708 = vst [vmem:[%s293 + $0x70] sm:$0xff] %v624
      %709 = vst [vmem:[%s293 + $0x78] sm:$0xff] %v627
      %710 = vst [vmem:[%s293 + $0x80] sm:$0xff] %v632
      %711 = vst [vmem:[%s293 + $0x88] sm:$0xff] %v635
      %712 = vst [vmem:[%s293 + $0x90] sm:$0xff] %v640
      %713 = vst [vmem:[%s293 + $0x98] sm:$0xff] %v643
      %714 = vst [vmem:[%s293 + $0xa0] sm:$0xff] %v648
      %715 = vst [vmem:[%s293 + $0xa8] sm:$0xff] %v651
      %716 = vst [vmem:[%s293 + $0xb0] sm:$0xff] %v656
      %717 = vst [vmem:[%s293 + $0xb8] sm:$0xff] %v659
      %718 = vst [vmem:[%s293 + $0xc0] sm:$0xff] %v664
      %719 = vst [vmem:[%s293 + $0xc8] sm:$0xff] %v667
      %720 = vst [vmem:[%s293 + $0xd0] sm:$0xff] %v672
      %721 = vst [vmem:[%s293 + $0xd8] sm:$0xff] %v675
      %722 = vst [vmem:[%s293 + $0xe0] sm:$0xff] %v680
      %723 = vst [vmem:[%s293 + $0xe8] sm:$0xff] %v683
      %724 = vst [vmem:[%s293 + $0xf0] sm:$0xff] %v688
      %725 = vst [vmem:[%s293 + $0xf8] sm:$0xff] %v691
      %v726 = vadd.f32 %v568, %v571
      %v727 = vadd.f32 %v726, %v576
      %v728 = vadd.f32 %v727, %v579
      %v729 = vadd.f32 %v728, %v584
      %v730 = vadd.f32 %v729, %v587
      %v731 = vadd.f32 %v730, %v592
      %v732 = vadd.f32 %v731, %v595
      %v733 = vadd.f32 %v732, %v600
      %v734 = vadd.f32 %v733, %v603
      %v735 = vadd.f32 %v734, %v608
      %v736 = vadd.f32 %v735, %v611
      %v737 = vadd.f32 %v736, %v616
      %v738 = vadd.f32 %v737, %v619
      %v739 = vadd.f32 %v738, %v624
      %v740 = vadd.f32 %v739, %v627
      %v741 = vadd.f32 %v740, %v632
      %v742 = vadd.f32 %v741, %v635
      %v743 = vadd.f32 %v742, %v640
      %v744 = vadd.f32 %v743, %v643
      %v745 = vadd.f32 %v744, %v648
      %v746 = vadd.f32 %v745, %v651
      %v747 = vadd.f32 %v746, %v656
      %v748 = vadd.f32 %v747, %v659
      %v749 = vadd.f32 %v748, %v664
      %v750 = vadd.f32 %v749, %v667
      %v751 = vadd.f32 %v750, %v672
      %v752 = vadd.f32 %v751, %v675
      %v753 = vadd.f32 %v752, %v680
      %v754 = vadd.f32 %v753, %v683
      %v755 = vadd.f32 %v754, %v688
      %v756 = vadd.f32 %v755, %v691
      %v757 = vrot.slane %v756, 4
      %v758 = vadd.f32 %v756, %v757
      %v759 = vrot.slane %v758, 2
      %v760 = vadd.f32 %v758, %v759
      %v761 = vrot.slane %v760, 1
      %v762 = vadd.f32 %v760, %v761
      %v763 = vmul.f32 %v568, %v568
      %v764 = vmul.f32 %v571, %v571
      %v765 = vmul.f32 %v576, %v576
      %v766 = vmul.f32 %v579, %v579
      %v767 = vmul.f32 %v584, %v584
      %v768 = vmul.f32 %v587, %v587
      %v769 = vmul.f32 %v592, %v592
      %v770 = vmul.f32 %v595, %v595
      %v771 = vmul.f32 %v600, %v600
      %v772 = vmul.f32 %v603, %v603
      %v773 = vmul.f32 %v608, %v608
      %v774 = vmul.f32 %v611, %v611
      %v775 = vmul.f32 %v616, %v616
      %v776 = vmul.f32 %v619, %v619
      %v777 = vmul.f32 %v624, %v624
      %v778 = vmul.f32 %v627, %v627
      %v779 = vmul.f32 %v632, %v632
      %v780 = vmul.f32 %v635, %v635
      %v781 = vmul.f32 %v640, %v640
      %v782 = vmul.f32 %v643, %v643
      %v783 = vmul.f32 %v648, %v648
      %v784 = vmul.f32 %v651, %v651
      %v785 = vmul.f32 %v656, %v656
      %v786 = vmul.f32 %v659, %v659
      %v787 = vmul.f32 %v664, %v664
      %v788 = vmul.f32 %v667, %v667
      %v789 = vmul.f32 %v672, %v672
      %v790 = vmul.f32 %v675, %v675
      %v791 = vmul.f32 %v680, %v680
      %v792 = vmul.f32 %v683, %v683
      %v793 = vmul.f32 %v688, %v688
      %v794 = vmul.f32 %v691, %v691
      %v795 = vadd.f32 %v763, %v764
      %v796 = vadd.f32 %v795, %v765
      %v797 = vadd.f32 %v796, %v766
      %v798 = vadd.f32 %v797, %v767
      %v799 = vadd.f32 %v798, %v768
      %v800 = vadd.f32 %v799, %v769
      %v801 = vadd.f32 %v800, %v770
      %v802 = vadd.f32 %v801, %v771
      %v803 = vadd.f32 %v802, %v772
      %v804 = vadd.f32 %v803, %v773
      %v805 = vadd.f32 %v804, %v774
      %v806 = vadd.f32 %v805, %v775
      %v807 = vadd.f32 %v806, %v776
      %v808 = vadd.f32 %v807, %v777
      %v809 = vadd.f32 %v808, %v778
      %v810 = vadd.f32 %v809, %v779
      %v811 = vadd.f32 %v810, %v780
      %v812 = vadd.f32 %v811, %v781
      %v813 = vadd.f32 %v812, %v782
      %v814 = vadd.f32 %v813, %v783
      %v815 = vadd.f32 %v814, %v784
      %v816 = vadd.f32 %v815, %v785
      %v817 = vadd.f32 %v816, %v786
      %v818 = vadd.f32 %v817, %v787
      %v819 = vadd.f32 %v818, %v788
      %v820 = vadd.f32 %v819, %v789
      %v821 = vadd.f32 %v820, %v790
      %v822 = vadd.f32 %v821, %v791
      %v823 = vadd.f32 %v822, %v792
      %v824 = vadd.f32 %v823, %v793
      %v825 = vadd.f32 %v824, %v794
      %v826 = vrot.slane %v825, 4
      %v827 = vadd.f32 %v825, %v826
      %v828 = vrot.slane %v827, 2
      %v829 = vadd.f32 %v827, %v828
      %v830 = vrot.slane %v829, 1
      %v831 = vadd.f32 %v829, %v830
      %832 = vst [vmem:[%s298] sm:$0xff] %v762
      %833 = vst [vmem:[%s302] sm:$0xff] %v831
      %s834 = smul.u32 32, %s19
      %p835 = scmp.lt.s32.totalorder %s834, 63
      %s836 = scalar_select %p835, %s834, 63
      %s837 = smul.addr %s836, 8
      %s838 = scalar_lea.vmem %s5, %s837
      %p839 = scmp.lt.s32.totalorder %s19, 1
      %s840 = scalar_select %p839, %s19, 1
      %s841 = smul.addr %s840, 8
      %s842 = scalar_lea.vmem %s6, %s841
      %p843 = scmp.lt.s32.totalorder %s19, 1
      %s844 = scalar_select %p843, %s19, 1
      %s845 = smul.addr %s844, 8
      %s846 = scalar_lea.vmem %s7, %s845
      // Predicated region
      $region41: #{residual_forward.5} parent=39 // pred_check
        %p847 = pneg %p147
      $region42: #{residual_forward.5} parent=39 // pred_check_branch
        %849 = sbr.rel (%p847) target = $region44
      $region43: #{residual_forward.5} parent=39 // pred_region
        %s850 = smul.u32 32, %s19
      $region44: #{residual_forward.5} parent=39 // pred_fallthru
        _
      // Predicated region
      $region45: #{residual_forward.5} parent=39 // pred_check
        %p851 = pneg %p173
      $region46: #{residual_forward.5} parent=39 // pred_check_branch
        %853 = sbr.rel (%p851) target = $region48
      $region47: #{residual_forward.5} parent=39 // pred_region
        _
      $region48: #{residual_forward.5} parent=39 // pred_fallthru
        _
      // Predicated region
      $region49: #{residual_forward.5} parent=39 // pred_check
        %p854 = pneg %p199
      $region50: #{residual_forward.5} parent=39 // pred_check_branch
        %856 = sbr.rel (%p854) target = $region52
      $region51: #{residual_forward.5} parent=39 // pred_region
        _
      $region52: #{residual_forward.5} parent=39 // pred_fallthru
        _
    $region40: #{residual_forward.5} parent=5 // pred_fallthru
      _
    %p857 = scmp.le.s32.totalorder 2, %s14
    // Predicated region
    $region53: #{residual_forward.5} parent=5 // pred_check
      %p858 = pneg %p857
    $region54: #{residual_forward.5} parent=5 // pred_check_branch
      %860 = sbr.rel (%p858) target = $region56
    $region55: #{residual_forward.5} parent=5 // pred_region
      %s861 = ssub.s32 %s14, 2
      // Predicated region
      $region57: #{residual_forward.5} parent=55 // pred_check
        %p862 = pneg %p153
      $region58: #{residual_forward.5} parent=55 // pred_check_branch
        %864 = sbr.rel (%p862) target = $region60
      $region59: #{residual_forward.5} parent=55 // pred_region
        %s865 = smul.u32 32, %s20
        %p866 = scmp.lt.s32.totalorder %s865, 63
        %s867 = scalar_select %p866, %s865, 63
        %s868 = smul.addr %s867, 8
        %s869 = scalar_lea.vmem %s5, %s868
      $region60: #{residual_forward.5} parent=55 // pred_fallthru
        _
      // Predicated region
      $region61: #{residual_forward.5} parent=55 // pred_check
        %p870 = pneg %p179
      $region62: #{residual_forward.5} parent=55 // pred_check_branch
        %872 = sbr.rel (%p870) target = $region64
      $region63: #{residual_forward.5} parent=55 // pred_region
        %p873 = scmp.lt.s32.totalorder %s20, 1
        %s874 = scalar_select %p873, %s20, 1
        %s875 = smul.addr %s874, 8
        %s876 = scalar_lea.vmem %s6, %s875
      $region64: #{residual_forward.5} parent=55 // pred_fallthru
        _
      // Predicated region
      $region65: #{residual_forward.5} parent=55 // pred_check
        %p877 = pneg %p205
      $region66: #{residual_forward.5} parent=55 // pred_check_branch
        %879 = sbr.rel (%p877) target = $region68
      $region67: #{residual_forward.5} parent=55 // pred_region
        %p880 = scmp.lt.s32.totalorder %s20, 1
        %s881 = scalar_select %p880, %s20, 1
        %s882 = smul.addr %s881, 8
        %s883 = scalar_lea.vmem %s7, %s882
      $region68: #{residual_forward.5} parent=55 // pred_fallthru
        _
    $region56: #{residual_forward.5} parent=5 // pred_fallthru
      _
  $region6: #{residual_forward.5} parent=0 // loop_footer
    %s18 = sadd.s32 1, %s14
  $region7: #{residual_forward.5} parent=0 // loop_footer_branch
    %13 = sbr.rel target = $region3
  $region8: #{residual_forward.5} parent=0 // loop_exit
    _

// kernel: residual_forward.7
$region0: #{residual_forward.7}
  #allocation0 [shape = 'u32[]', space=smem, size = 0x4, offset = 0x4, fixed_abs, tag = 'smem constant byte address 0x4 - core index']
  #allocation1 [shape = 'u32[144,128]{1,0:T(1,128)}', space=vmem, size = 0x12000, scoped, tag = 'internal scratch']
  %s0 = inlined_call_operand.vmem [shape: f32[512,128], index: 0, kind: input, shape index: {}]
  %s1 = inlined_call_operand.vmem [shape: f32[1,128], index: 1, kind: input, shape index: {}]
  %s2 = inlined_call_operand.vmem [shape: f32[1,128], index: 2, kind: input, shape index: {}]
  %s3 = inlined_call_operand.vmem [shape: bf16[128,128], index: 3, kind: input, shape index: {}]
  %s4 = inlined_call_operand.vmem [shape: f32[1,128], index: 4, kind: input, shape index: {}]
  %s5 = inlined_call_operand.vmem [shape: f32[512,128], index: 5, kind: input, shape index: {}]
  %s6 = inlined_call_operand.vmem [shape: bf16[128,128], index: 6, kind: input, shape index: {}]
  %s7 = inlined_call_operand.vmem [shape: f32[1,128], index: 7, kind: input, shape index: {}]
  %s8 = inlined_call_operand.vmem [shape: f32[512,128], index: 8, kind: output, shape index: {}]
  %s9 = sld [smem:[#allocation0]]
  $region65: #{residual_forward.7} parent=0
    _
  %s11 = ssub.s32 1, %s9
  %s12 = scalar_select 0, %s11, %s9
  loop: start=0, step=1, limit=4
  $region2: #{residual_forward.7} parent=0 // loop_pre_header
    _
  $region3: #{residual_forward.7} parent=0 // loop_header
    %s14 = sphi 0, %s18
    %p15 = scmp.ge.s32.totalorder %s14, 4
    %s24 = sphi 0, %s26
    %s27 = sphi 0, %s24
    %s28 = sphi 0, %s27
    %s44 = sphi 0, %s28
    %s48 = sphi 0, %s48
    %s50 = sphi 0, %s48
    %s51 = sphi 0, %s50
    %s65 = sphi 0, %s51
    %s69 = sphi 0, %s69
    %s71 = sphi 0, %s69
    %s72 = sphi 0, %s71
    %s86 = sphi 0, %s72
    %s90 = sphi 0, %s90
    %s92 = sphi 0, %s90
    %s93 = sphi 0, %s92
    %s107 = sphi 0, %s93
    %s111 = sphi 0, %s111
    %s113 = sphi 0, %s111
    %s114 = sphi 0, %s113
    %s128 = sphi 0, %s114
    %s134 = sphi 0, %s136
    %s137 = sphi 0, %s134
    %s138 = sphi 0, %s137
    %s154 = sphi 0, %s138
    %s158 = sphi 0, %s158
    %s160 = sphi 0, %s158
    %s161 = sphi 0, %s160
    %s175 = sphi 0, %s161
    %s179 = sphi 0, %s179
    %s181 = sphi 0, %s179
    %s182 = sphi 0, %s181
    %s196 = sphi 0, %s182
    %s202 = sphi 0, %s204
    %s205 = sphi 0, %s202
    %s206 = sphi 0, %s205
    %s222 = sphi 0, %s206
  $region4: #{residual_forward.7} parent=0 // loop_header_branch
    %17 = sbr.rel (%p15) target = $region8
  $region5: #{residual_forward.7} parent=0 // loop_body
    %s19 = ssub.s32 %s14, 1
    %s20 = ssub.s32 %s14, 2
    %s21 = sadd.s32 %s14, 1
    %s22 = ssub.s32 %s14, %s21
    %p23 = scmp.eq.s32.totalorder %s22, 0
    %s25 = sadd.s32 %s24, 1
    %s26 = scalar_select %p23, %s24, %s25
    %p29 = pneg %p23
    %p30 = scmp.eq.s32.totalorder %s14, 1
    %p31 = por %p29, %p30
    %p32 = scmp.ne.s32.totalorder %s24, %s27
    %p33 = scmp.eq.s32.totalorder %s14, 0
    %p34 = por %p32, %p33
    %p35 = scmp.ne.s32.totalorder %s24, %s27
    %p36 = scmp.eq.s32.totalorder %s19, 1
    %p37 = por %p35, %p36
    %p38 = scmp.ne.s32.totalorder %s27, %s28
    %p39 = scmp.eq.s32.totalorder %s19, 0
    %p40 = por %p38, %p39
    %p41 = scmp.ne.s32.totalorder %s27, %s28
    %p42 = scmp.eq.s32.totalorder %s20, 1
    %p43 = por %p41, %p42
    %p45 = scmp.ne.s32.totalorder %s28, %s44
    %p46 = scmp.eq.s32.totalorder %s20, 0
    %p47 = por %p45, %p46
    %s49 = sadd.s32 %s48, 1
    %p52 = scmp.eq.s32.totalorder %s14, 1
    %p53 = scmp.ne.s32.totalorder %s48, %s50
    %p54 = scmp.eq.s32.totalorder %s14, 0
    %p55 = por %p53, %p54
    %p56 = scmp.ne.s32.totalorder %s48, %s50
    %p57 = scmp.eq.s32.totalorder %s19, 1
    %p58 = por %p56, %p57
    %p59 = scmp.ne.s32.totalorder %s50, %s51
    %p60 = scmp.eq.s32.totalorder %s19, 0
    %p61 = por %p59, %p60
    %p62 = scmp.ne.s32.totalorder %s50, %s51
    %p63 = scmp.eq.s32.totalorder %s20, 1
    %p64 = por %p62, %p63
    %p66 = scmp.ne.s32.totalorder %s51, %s65
    %p67 = scmp.eq.s32.totalorder %s20, 0
    %p68 = por %p66, %p67
    %s70 = sadd.s32 %s69, 1
    %p73 = scmp.eq.s32.totalorder %s14, 1
    %p74 = scmp.ne.s32.totalorder %s69, %s71
    %p75 = scmp.eq.s32.totalorder %s14, 0
    %p76 = por %p74, %p75
    %p77 = scmp.ne.s32.totalorder %s69, %s71
    %p78 = scmp.eq.s32.totalorder %s19, 1
    %p79 = por %p77, %p78
    %p80 = scmp.ne.s32.totalorder %s71, %s72
    %p81 = scmp.eq.s32.totalorder %s19, 0
    %p82 = por %p80, %p81
    %p83 = scmp.ne.s32.totalorder %s71, %s72
    %p84 = scmp.eq.s32.totalorder %s20, 1
    %p85 = por %p83, %p84
    %p87 = scmp.ne.s32.totalorder %s72, %s86
    %p88 = scmp.eq.s32.totalorder %s20, 0
    %p89 = por %p87, %p88
    %s91 = sadd.s32 %s90, 1
    %p94 = scmp.eq.s32.totalorder %s14, 1
    %p95 = scmp.ne.s32.totalorder %s90, %s92
    %p96 = scmp.eq.s32.totalorder %s14, 0
    %p97 = por %p95, %p96
    %p98 = scmp.ne.s32.totalorder %s90, %s92
    %p99 = scmp.eq.s32.totalorder %s19, 1
    %p100 = por %p98, %p99
    %p101 = scmp.ne.s32.totalorder %s92, %s93
    %p102 = scmp.eq.s32.totalorder %s19, 0
    %p103 = por %p101, %p102
    %p104 = scmp.ne.s32.totalorder %s92, %s93
    %p105 = scmp.eq.s32.totalorder %s20, 1
    %p106 = por %p104, %p105
    %p108 = scmp.ne.s32.totalorder %s93, %s107
    %p109 = scmp.eq.s32.totalorder %s20, 0
    %p110 = por %p108, %p109
    %s112 = sadd.s32 %s111, 1
    %p115 = scmp.eq.s32.totalorder %s14, 1
    %p116 = scmp.ne.s32.totalorder %s111, %s113
    %p117 = scmp.eq.s32.totalorder %s14, 0
    %p118 = por %p116, %p117
    %p119 = scmp.ne.s32.totalorder %s111, %s113
    %p120 = scmp.eq.s32.totalorder %s19, 1
    %p121 = por %p119, %p120
    %p122 = scmp.ne.s32.totalorder %s113, %s114
    %p123 = scmp.eq.s32.totalorder %s19, 0
    %p124 = por %p122, %p123
    %p125 = scmp.ne.s32.totalorder %s113, %s114
    %p126 = scmp.eq.s32.totalorder %s20, 1
    %p127 = por %p125, %p126
    %p129 = scmp.ne.s32.totalorder %s114, %s128
    %p130 = scmp.eq.s32.totalorder %s20, 0
    %p131 = por %p129, %p130
    %s132 = ssub.s32 %s14, %s21
    %p133 = scmp.eq.s32.totalorder %s132, 0
    %s135 = sadd.s32 %s134, 1
    %s136 = scalar_select %p133, %s134, %s135
    %p139 = pneg %p133
    %p140 = scmp.eq.s32.totalorder %s14, 1
    %p141 = por %p139, %p140
    %p142 = scmp.ne.s32.totalorder %s134, %s137
    %p143 = scmp.eq.s32.totalorder %s14, 0
    %p144 = por %p142, %p143
    %p145 = scmp.ne.s32.totalorder %s134, %s137
    %p146 = scmp.eq.s32.totalorder %s19, 1
    %p147 = por %p145, %p146
    %p148 = scmp.ne.s32.totalorder %s137, %s138
    %p149 = scmp.eq.s32.totalorder %s19, 0
    %p150 = por %p148, %p149
    %p151 = scmp.ne.s32.totalorder %s137, %s138
    %p152 = scmp.eq.s32.totalorder %s20, 1
    %p153 = por %p151, %p152
    %p155 = scmp.ne.s32.totalorder %s138, %s154
    %p156 = scmp.eq.s32.totalorder %s20, 0
    %p157 = por %p155, %p156
    %s159 = sadd.s32 %s158, 1
    %p162 = scmp.eq.s32.totalorder %s14, 1
    %p163 = scmp.ne.s32.totalorder %s158, %s160
    %p164 = scmp.eq.s32.totalorder %s14, 0
    %p165 = por %p163, %p164
    %p166 = scmp.ne.s32.totalorder %s158, %s160
    %p167 = scmp.eq.s32.totalorder %s19, 1
    %p168 = por %p166, %p167
    %p169 = scmp.ne.s32.totalorder %s160, %s161
    %p170 = scmp.eq.s32.totalorder %s19, 0
    %p171 = por %p169, %p170
    %p172 = scmp.ne.s32.totalorder %s160, %s161
    %p173 = scmp.eq.s32.totalorder %s20, 1
    %p174 = por %p172, %p173
    %p176 = scmp.ne.s32.totalorder %s161, %s175
    %p177 = scmp.eq.s32.totalorder %s20, 0
    %p178 = por %p176, %p177
    %s180 = sadd.s32 %s179, 1
    %p183 = scmp.eq.s32.totalorder %s14, 1
    %p184 = scmp.ne.s32.totalorder %s179, %s181
    %p185 = scmp.eq.s32.totalorder %s14, 0
    %p186 = por %p184, %p185
    %p187 = scmp.ne.s32.totalorder %s179, %s181
    %p188 = scmp.eq.s32.totalorder %s19, 1
    %p189 = por %p187, %p188
    %p190 = scmp.ne.s32.totalorder %s181, %s182
    %p191 = scmp.eq.s32.totalorder %s19, 0
    %p192 = por %p190, %p191
    %p193 = scmp.ne.s32.totalorder %s181, %s182
    %p194 = scmp.eq.s32.totalorder %s20, 1
    %p195 = por %p193, %p194
    %p197 = scmp.ne.s32.totalorder %s182, %s196
    %p198 = scmp.eq.s32.totalorder %s20, 0
    %p199 = por %p197, %p198
    %s200 = ssub.s32 %s14, %s21
    %p201 = scmp.eq.s32.totalorder %s200, 0
    %s203 = sadd.s32 %s202, 1
    %s204 = scalar_select %p201, %s202, %s203
    %p207 = pneg %p201
    %p208 = scmp.eq.s32.totalorder %s14, 1
    %p209 = por %p207, %p208
    %p210 = scmp.ne.s32.totalorder %s202, %s205
    %p211 = scmp.eq.s32.totalorder %s14, 0
    %p212 = por %p210, %p211
    %p213 = scmp.ne.s32.totalorder %s202, %s205
    %p214 = scmp.eq.s32.totalorder %s19, 1
    %p215 = por %p213, %p214
    %p216 = scmp.ne.s32.totalorder %s205, %s206
    %p217 = scmp.eq.s32.totalorder %s19, 0
    %p218 = por %p216, %p217
    %p219 = scmp.ne.s32.totalorder %s205, %s206
    %p220 = scmp.eq.s32.totalorder %s20, 1
    %p221 = por %p219, %p220
    %p223 = scmp.ne.s32.totalorder %s206, %s222
    %p224 = scmp.eq.s32.totalorder %s20, 0
    %p225 = por %p223, %p224
    %p226 = scmp.le.s32.totalorder 1, %s14
    %p227 = scmp.lt.s32.totalorder %s14, 3
    %p228 = pnand %p226, %p227
    %p229 = pneg %p228
    // Predicated region
    $region9: #{residual_forward.7} parent=5 // pred_check
      _
    $region10: #{residual_forward.7} parent=5 // pred_check_branch
      %231 = sbr.rel (%p228) target = $region12
    $region11: #{residual_forward.7} parent=5 // pred_region
      %s232 = ssub.s32 %s14, 1
      // Predicated region
      $region13: #{residual_forward.7} parent=11 // pred_check
        %p233 = pneg %p61
      $region14: #{residual_forward.7} parent=11 // pred_check_branch
        %235 = sbr.rel (%p233) target = $region16
      $region15: #{residual_forward.7} parent=11 // pred_region
        _
      $region16: #{residual_forward.7} parent=11 // pred_fallthru
        _
      // Predicated region
      $region17: #{residual_forward.7} parent=11 // pred_check
        %p236 = pneg %p82
      $region18: #{residual_forward.7} parent=11 // pred_check_branch
        %238 = sbr.rel (%p236) target = $region20
      $region19: #{residual_forward.7} parent=11 // pred_region
        _
      $region20: #{residual_forward.7} parent=11 // pred_fallthru
        _
      // Predicated region
      $region21: #{residual_forward.7} parent=11 // pred_check
        %p239 = pneg %p103
      $region22: #{residual_forward.7} parent=11 // pred_check_branch
        %241 = sbr.rel (%p239) target = $region24
      $region23: #{residual_forward.7} parent=11 // pred_region
        _
      $region24: #{residual_forward.7} parent=11 // pred_fallthru
        _
      // Predicated region
      $region25: #{residual_forward.7} parent=11 // pred_check
        %p242 = pneg %p124
      $region26: #{residual_forward.7} parent=11 // pred_check_branch
        %244 = sbr.rel (%p242) target = $region28
      $region27: #{residual_forward.7} parent=11 // pred_region
        _
      $region28: #{residual_forward.7} parent=11 // pred_fallthru
        _
      // Predicated region
      $region29: #{residual_forward.7} parent=11 // pred_check
        %p245 = pneg %p171
      $region30: #{residual_forward.7} parent=11 // pred_check_branch
        %247 = sbr.rel (%p245) target = $region32
      $region31: #{residual_forward.7} parent=11 // pred_region
        _
      $region32: #{residual_forward.7} parent=11 // pred_fallthru
        _
      // Predicated region
      $region33: #{residual_forward.7} parent=11 // pred_check
        %p248 = pneg %p192
      $region34: #{residual_forward.7} parent=11 // pred_check_branch
        %250 = sbr.rel (%p248) target = $region36
      $region35: #{residual_forward.7} parent=11 // pred_region
        _
      $region36: #{residual_forward.7} parent=11 // pred_fallthru
        _
    $region12: #{residual_forward.7} parent=5 // pred_fallthru
      _
    %p251 = scmp.lt.s32.totalorder %s14, 2
    // Predicated region
    $region37: #{residual_forward.7} parent=5 // pred_check
      %p252 = pneg %p251
    $region38: #{residual_forward.7} parent=5 // pred_check_branch
      %254 = sbr.rel (%p252) target = $region40
    $region39: #{residual_forward.7} parent=5 // pred_region
      // Predicated region
      $region41: #{residual_forward.7} parent=39 // pred_check
        %p255 = pneg %p34
      $region42: #{residual_forward.7} parent=39 // pred_check_branch
        %257 = sbr.rel (%p255) target = $region44
      $region43: #{residual_forward.7} parent=39 // pred_region
        %s258 = smul.u32 32, %s14
        %p259 = scmp.lt.s32.totalorder %s258, 63
        %s260 = scalar_select %p259, %s258, 63
        %s261 = smul.addr %s260, 8
        %s262 = scalar_lea.vmem %s0, %s261
        %s263 = smul.u32 32, %s14
      $region44: #{residual_forward.7} parent=39 // pred_fallthru
        _
      // Predicated region
      $region45: #{residual_forward.7} parent=39 // pred_check
        %p264 = pneg %p144
      $region46: #{residual_forward.7} parent=39 // pred_check_branch
        %266 = sbr.rel (%p264) target = $region48
      $region47: #{residual_forward.7} parent=39 // pred_region
        %s267 = smul.u32 32, %s14
        %p268 = scmp.lt.s32.totalorder %s267, 63
        %s269 = scalar_select %p268, %s267, 63
        %s270 = smul.addr %s269, 8
        %s271 = scalar_lea.vmem %s5, %s270
        %s272 = smul.u32 32, %s14
      $region48: #{residual_forward.7} parent=39 // pred_fallthru
        _
    $region40: #{residual_forward.7} parent=5 // pred_fallthru
      _
    %p273 = scmp.le.s32.totalorder 1, %s14
    %p274 = scmp.lt.s32.totalorder %s14, 3
    %p275 = pnand %p273, %p274
    %p276 = pneg %p275
    // Predicated region
    $region49: #{residual_forward.7} parent=5 // pred_check
      _
    $region50: #{residual_forward.7} parent=5 // pred_check_branch
      %278 = sbr.rel (%p275) target = $region52
    $region51: #{residual_forward.7} parent=5 // pred_region
      %s279 = ssub.s32 %s14, 1
      %s280 = smul.u32 32, %s19
      %p281 = scmp.lt.s32.totalorder %s280, 63
      %s282 = scalar_select %p281, %s280, 63
      %s283 = smul.addr %s282, 8
      %s284 = scalar_lea.vmem %s0, %s283
      %p285 = pneg %p40
      %p286 = pneg %p37
      %p287 = pneg %p61
      %p288 = pneg %p58
      %p289 = pneg %p82
      %p290 = pneg %p79
      %p291 = pneg %p103
      %p292 = pneg %p100
      %p293 = pneg %p124
      %p294 = pneg %p121
      %s295 = smul.u32 32, %s19
      %p296 = scmp.lt.s32.totalorder %s295, 63
      %s297 = scalar_select %p296, %s295, 63
      %s298 = smul.addr %s297, 8
      %s299 = scalar_lea.vmem %s5, %s298
      %p300 = pneg %p150
      %p301 = pneg %p147
      %p302 = pneg %p171
      %p303 = pneg %p168
      %p304 = pneg %p192
      %p305 = pneg %p189
      %p306 = pneg %p218
      %p307 = pneg %p215
      %s308 = smul.u32 32, %s19
      %p309 = scmp.lt.s32.totalorder %s308, 63
      %s310 = scalar_select %p309, %s308, 63
      %s311 = smul.addr %s310, 8
      %s312 = scalar_lea.vmem %s8, %s311
      %s313 = smul.u32 32, %s19
      %p314 = scmp.lt.s32.totalorder %s313, 63
      %s315 = scalar_select %p314, %s313, 63
      %s316 = smul.addr %s315, 8
      %s317 = scalar_lea.vmem %s0, %s316
      %s318 = smul.u32 32, %s19
      %s319 = smul.u32 32, %s19
      %p320 = scmp.lt.s32.totalorder %s319, 63
      %s321 = scalar_select %p320, %s319, 63
      %s322 = smul.addr %s321, 8
      %s323 = scalar_lea.vmem %s5, %s322
      %s324 = smul.u32 32, %s19
      %s325 = smul.u32 32, %s19
      %p326 = scmp.lt.s32.totalorder %s325, 63
      %s327 = scalar_select %p326, %s325, 63
      %s328 = smul.addr %s327, 8
      %s329 = scalar_lea.vmem %s8, %s328
      %s330 = smul.u32 32, %s19
      %v332 = vld [vmem:[%s317] sm:$0xff]
      %v333 = vld [vmem:[%s317 + $0x8] sm:$0xff]
      %v334 = vld [vmem:[%s317 + $0x10] sm:$0xff]
      %v335 = vld [vmem:[%s317 + $0x18] sm:$0xff]
      %v336 = vld [vmem:[%s317 + $0x20] sm:$0xff]
      %v337 = vld [vmem:[%s317 + $0x28] sm:$0xff]
      %v338 = vld [vmem:[%s317 + $0x30] sm:$0xff]
      %v339 = vld [vmem:[%s317 + $0x38] sm:$0xff]
      %v340 = vld [vmem:[%s317 + $0x40] sm:$0xff]
      %v341 = vld [vmem:[%s317 + $0x48] sm:$0xff]
      %v342 = vld [vmem:[%s317 + $0x50] sm:$0xff]
      %v343 = vld [vmem:[%s317 + $0x58] sm:$0xff]
      %v344 = vld [vmem:[%s317 + $0x60] sm:$0xff]
      %v345 = vld [vmem:[%s317 + $0x68] sm:$0xff]
      %v346 = vld [vmem:[%s317 + $0x70] sm:$0xff]
      %v347 = vld [vmem:[%s317 + $0x78] sm:$0xff]
      %v348 = vld [vmem:[%s317 + $0x80] sm:$0xff]
      %v349 = vld [vmem:[%s317 + $0x88] sm:$0xff]
      %v350 = vld [vmem:[%s317 + $0x90] sm:$0xff]
      %v351 = vld [vmem:[%s317 + $0x98] sm:$0xff]
      %v352 = vld [vmem:[%s317 + $0xa0] sm:$0xff]
      %v353 = vld [vmem:[%s317 + $0xa8] sm:$0xff]
      %v354 = vld [vmem:[%s317 + $0xb0] sm:$0xff]
      %v355 = vld [vmem:[%s317 + $0xb8] sm:$0xff]
      %v356 = vld [vmem:[%s317 + $0xc0] sm:$0xff]
      %v357 = vld [vmem:[%s317 + $0xc8] sm:$0xff]
      %v358 = vld [vmem:[%s317 + $0xd0] sm:$0xff]
      %v359 = vld [vmem:[%s317 + $0xd8] sm:$0xff]
      %v360 = vld [vmem:[%s317 + $0xe0] sm:$0xff]
      %v361 = vld [vmem:[%s317 + $0xe8] sm:$0xff]
      %v362 = vld [vmem:[%s317 + $0xf0] sm:$0xff]
      %v363 = vld [vmem:[%s317 + $0xf8] sm:$0xff]
      %v364 = vld [vmem:[%s1] sm:$0x1]
      %v366 = vlaneseq
      %v367 = vshrl.u32 %v366, 7
      %v368 = vsub.s32 0, %v367
      %v369 = vrot.slane %v364, %v368
      %v371 = vmul.f32 %v332, %v369
      %v372 = vmul.f32 %v333, %v369
      %v373 = vmul.f32 %v334, %v369
      %v374 = vmul.f32 %v335, %v369
      %v375 = vmul.f32 %v336, %v369
      %v376 = vmul.f32 %v337, %v369
      %v377 = vmul.f32 %v338, %v369
      %v378 = vmul.f32 %v339, %v369
      %v379 = vmul.f32 %v340, %v369
      %v380 = vmul.f32 %v341, %v369
      %v381 = vmul.f32 %v342, %v369
      %v382 = vmul.f32 %v343, %v369
      %v383 = vmul.f32 %v344, %v369
      %v384 = vmul.f32 %v345, %v369
      %v385 = vmul.f32 %v346, %v369
      %v386 = vmul.f32 %v347, %v369
      %v387 = vmul.f32 %v348, %v369
      %v388 = vmul.f32 %v349, %v369
      %v389 = vmul.f32 %v350, %v369
      %v390 = vmul.f32 %v351, %v369
      %v391 = vmul.f32 %v352, %v369
      %v392 = vmul.f32 %v353, %v369
      %v393 = vmul.f32 %v354, %v369
      %v394 = vmul.f32 %v355, %v369
      %v395 = vmul.f32 %v356, %v369
      %v396 = vmul.f32 %v357, %v369
      %v397 = vmul.f32 %v358, %v369
      %v398 = vmul.f32 %v359, %v369
      %v399 = vmul.f32 %v360, %v369
      %v400 = vmul.f32 %v361, %v369
      %v401 = vmul.f32 %v362, %v369
      %v402 = vmul.f32 %v363, %v369
      %v403 = vld [vmem:[%s2] sm:$0x1]
      %v405 = vlaneseq
      %v406 = vshrl.u32 %v405, 7
      %v407 = vsub.s32 0, %v406
      %v408 = vrot.slane %v403, %v407
      %v410 = vadd.f32 %v371, %v408
      %v411 = vadd.f32 %v372, %v408
      %v412 = vadd.f32 %v373, %v408
      %v413 = vadd.f32 %v374, %v408
      %v414 = vadd.f32 %v375, %v408
      %v415 = vadd.f32 %v376, %v408
      %v416 = vadd.f32 %v377, %v408
      %v417 = vadd.f32 %v378, %v408
      %v418 = vadd.f32 %v379, %v408
      %v419 = vadd.f32 %v380, %v408
      %v420 = vadd.f32 %v381, %v408
      %v421 = vadd.f32 %v382, %v408
      %v422 = vadd.f32 %v383, %v408
      %v423 = vadd.f32 %v384, %v408
      %v424 = vadd.f32 %v385, %v408
      %v425 = vadd.f32 %v386, %v408
      %v426 = vadd.f32 %v387, %v408
      %v427 = vadd.f32 %v388, %v408
      %v428 = vadd.f32 %v389, %v408
      %v429 = vadd.f32 %v390, %v408
      %v430 = vadd.f32 %v391, %v408
      %v431 = vadd.f32 %v392, %v408
      %v432 = vadd.f32 %v393, %v408
      %v433 = vadd.f32 %v394, %v408
      %v434 = vadd.f32 %v395, %v408
      %v435 = vadd.f32 %v396, %v408
      %v436 = vadd.f32 %v397, %v408
      %v437 = vadd.f32 %v398, %v408
      %v438 = vadd.f32 %v399, %v408
      %v439 = vadd.f32 %v400, %v408
      %v440 = vadd.f32 %v401, %v408
      %v441 = vadd.f32 %v402, %v408
      %v442 = vmax.f32 %v410, 0.0
      %v443 = vmax.f32 %v411, 0.0
      %v444 = vmax.f32 %v412, 0.0
      %v445 = vmax.f32 %v413, 0.0
      %v446 = vmax.f32 %v414, 0.0
      %v447 = vmax.f32 %v415, 0.0
      %v448 = vmax.f32 %v416, 0.0
      %v449 = vmax.f32 %v417, 0.0
      %v450 = vmax.f32 %v418, 0.0
      %v451 = vmax.f32 %v419, 0.0
      %v452 = vmax.f32 %v420, 0.0
      %v453 = vmax.f32 %v421, 0.0
      %v454 = vmax.f32 %v422, 0.0
      %v455 = vmax.f32 %v423, 0.0
      %v456 = vmax.f32 %v424, 0.0
      %v457 = vmax.f32 %v425, 0.0
      %v458 = vmax.f32 %v426, 0.0
      %v459 = vmax.f32 %v427, 0.0
      %v460 = vmax.f32 %v428, 0.0
      %v461 = vmax.f32 %v429, 0.0
      %v462 = vmax.f32 %v430, 0.0
      %v463 = vmax.f32 %v431, 0.0
      %v464 = vmax.f32 %v432, 0.0
      %v465 = vmax.f32 %v433, 0.0
      %v466 = vmax.f32 %v434, 0.0
      %v467 = vmax.f32 %v435, 0.0
      %v468 = vmax.f32 %v436, 0.0
      %v469 = vmax.f32 %v437, 0.0
      %v470 = vmax.f32 %v438, 0.0
      %v471 = vmax.f32 %v439, 0.0
      %v472 = vmax.f32 %v440, 0.0
      %v473 = vmax.f32 %v441, 0.0
      %v474 = vpack.c.bf16 %v443, %v442
      %v475 = vpack.c.bf16 %v445, %v444
      %v476 = vpack.c.bf16 %v447, %v446
      %v477 = vpack.c.bf16 %v449, %v448
      %v478 = vpack.c.bf16 %v451, %v450
      %v479 = vpack.c.bf16 %v453, %v452
      %v480 = vpack.c.bf16 %v455, %v454
      %v481 = vpack.c.bf16 %v457, %v456
      %v482 = vpack.c.bf16 %v459, %v458
      %v483 = vpack.c.bf16 %v461, %v460
      %v484 = vpack.c.bf16 %v463, %v462
      %v485 = vpack.c.bf16 %v465, %v464
      %v486 = vpack.c.bf16 %v467, %v466
      %v487 = vpack.c.bf16 %v469, %v468
      %v488 = vpack.c.bf16 %v471, %v470
      %v489 = vpack.c.bf16 %v473, %v472
      %v490 = vld [vmem:[%s3] sm:$0xf]
      %v491 = vld [vmem:[%s3 + $0x4] sm:$0xf]
      %v492 = vld [vmem:[%s3 + $0x8] sm:$0xf]
      %v493 = vld [vmem:[%s3 + $0xc] sm:$0xf]
      %v494 = vld [vmem:[%s3 + $0x10] sm:$0xf]
      %v495 = vld [vmem:[%s3 + $0x14] sm:$0xf]
      %v496 = vld [vmem:[%s3 + $0x18] sm:$0xf]
      %v497 = vld [vmem:[%s3 + $0x1c] sm:$0xf]
      %v498 = vld [vmem:[%s3 + $0x20] sm:$0xf]
      %v499 = vld [vmem:[%s3 + $0x24] sm:$0xf]
      %v500 = vld [vmem:[%s3 + $0x28] sm:$0xf]
      %v501 = vld [vmem:[%s3 + $0x2c] sm:$0xf]
      %v502 = vld [vmem:[%s3 + $0x30] sm:$0xf]
      %v503 = vld [vmem:[%s3 + $0x34] sm:$0xf]
      %v504 = vld [vmem:[%s3 + $0x38] sm:$0xf]
      %v505 = vld [vmem:[%s3 + $0x3c] sm:$0xf]
      %v506 = vld [vmem:[%s4] sm:$0x1]
      %v508 = vlaneseq
      %v509 = vshrl.u32 %v508, 7
      %v510 = vsub.s32 0, %v509
      %v511 = vrot.slane %v506, %v510
      %v529 = vunpack.c.l.b16 %v490
      %v530 = vunpack.c.l.b16 %v491
      %v531 = vunpack.c.l.b16 %v492
      %v532 = vunpack.c.l.b16 %v493
      %v533 = vunpack.c.l.b16 %v494
      %v534 = vunpack.c.l.b16 %v495
      %v535 = vunpack.c.l.b16 %v496
      %v536 = vunpack.c.l.b16 %v497
      %v537 = vunpack.c.l.b16 %v498
      %v538 = vunpack.c.l.b16 %v499
      %v539 = vunpack.c.l.b16 %v500
      %v540 = vunpack.c.l.b16 %v501
      %v541 = vunpack.c.l.b16 %v502
      %v542 = vunpack.c.l.b16 %v503
      %v543 = vunpack.c.l.b16 %v504
      %v544 = vunpack.c.l.b16 %v505
      %v545 = vpack.c.b16 %v530, %v529
      %v546 = vpack.c.b16 %v532, %v531
      %v547 = vpack.c.b16 %v534, %v533
      %v548 = vpack.c.b16 %v536, %v535
      %v549 = vpack.c.b16 %v538, %v537
      %v550 = vpack.c.b16 %v540, %v539
      %v551 = vpack.c.b16 %v542, %v541
      %v552 = vpack.c.b16 %v544, %v543
      %561 = vmatprep.subr.bf16.mxu0 0
      %562 = vmatpush1.bf16.msra.mxu0 %v552
      %563 = vmatprep.subr.bf16.mxu0 0
      %564 = vmatpush1.bf16.msra.mxu0 %v551
      %565 = vmatprep.subr.bf16.mxu0 0
      %566 = vmatpush1.bf16.msra.mxu0 %v550
      %567 = vmatprep.subr.bf16.mxu0 0
      %568 = vmatpush1.bf16.msra.mxu0 %v549
      %569 = vmatprep.subr.bf16.mxu0 0
      %570 = vmatpush1.bf16.msra.mxu0 %v548
      %571 = vmatprep.subr.bf16.mxu0 0
      %572 = vmatpush1.bf16.msra.mxu0 %v547
      %573 = vmatprep.subr.bf16.mxu0 0
      %574 = vmatpush1.bf16.msra.mxu0 %v546
      %575 = vmatprep.subr.bf16.mxu0 0
      %576 = vmatpush1.bf16.msra.mxu0 %v545
      %577 = vmatprep.subr.bf16.mxu0 0
      %578 = vmatpush2.bf16.msra.mxu0 0
      %579 = vmatprep.subr.bf16.mxu0 0
      %580 = vmatpush2.bf16.msra.mxu0 0
      %581 = vmatprep.subr.bf16.mxu0 0
      %582 = vmatpush2.bf16.msra.mxu0 0
      %583 = vmatprep.subr.bf16.mxu0 0
      %584 = vmatpush2.bf16.msra.mxu0 0
      %585 = vmatprep.subr.bf16.mxu0 0
      %586 = vmatpush2.bf16.msra.mxu0 0
      %587 = vmatprep.subr.bf16.mxu0 0
      %588 = vmatpush2.bf16.msra.mxu0 0
      %589 = vmatprep.subr.bf16.mxu0 0
      %590 = vmatpush2.bf16.msra.mxu0 0
      %591 = vmatprep.subr.bf16.mxu0 0
      %592 = vmatpush2.bf16.msra.mxu0 0
      %593 = vmatprep.mubr.bf16.mxu0 0
      %594 = vmatmul.mubr.bf16.gmra.mxu0 %v474
      %v595 = vpop.f32.mrf.mxu0
      %v596 = vadd.f32 %v511, %v595
      %v597 = vpop.f32.mrf.mxu0
      %v598 = vpop.f32.mrf.mxu0
      %v599 = vadd.f32 %v511, %v598
      %v600 = vpop.f32.mrf.mxu0
      %601 = vmatprep.mubr.bf16.mxu0 0
      %602 = vmatmul.mubr.bf16.gmra.mxu0 %v475
      %v603 = vpop.f32.mrf.mxu0
      %v604 = vadd.f32 %v511, %v603
      %v605 = vpop.f32.mrf.mxu0
      %v606 = vpop.f32.mrf.mxu0
      %v607 = vadd.f32 %v511, %v606
      %v608 = vpop.f32.mrf.mxu0
      %609 = vmatprep.mubr.bf16.mxu0 0
      %610 = vmatmul.mubr.bf16.gmra.mxu0 %v476
      %v611 = vpop.f32.mrf.mxu0
      %v612 = vadd.f32 %v511, %v611
      %v613 = vpop.f32.mrf.mxu0
      %v614 = vpop.f32.mrf.mxu0
      %v615 = vadd.f32 %v511, %v614
      %v616 = vpop.f32.mrf.mxu0
      %617 = vmatprep.mubr.bf16.mxu0 0
      %618 = vmatmul.mubr.bf16.gmra.mxu0 %v477
      %v619 = vpop.f32.mrf.mxu0
      %v620 = vadd.f32 %v511, %v619
      %v621 = vpop.f32.mrf.mxu0
      %v622 = vpop.f32.mrf.mxu0
      %v623 = vadd.f32 %v511, %v622
      %v624 = vpop.f32.mrf.mxu0
      %625 = vmatprep.mubr.bf16.mxu0 0
      %626 = vmatmul.mubr.bf16.gmra.mxu0 %v478
      %v627 = vpop.f32.mrf.mxu0
      %v628 = vadd.f32 %v511, %v627
      %v629 = vpop.f32.mrf.mxu0
      %v630 = vpop.f32.mrf.mxu0
      %v631 = vadd.f32 %v511, %v630
      %v632 = vpop.f32.mrf.mxu0
      %633 = vmatprep.mubr.bf16.mxu0 0
      %634 = vmatmul.mubr.bf16.gmra.mxu0 %v479
      %v635 = vpop.f32.mrf.mxu0
      %v636 = vadd.f32 %v511, %v635
      %v637 = vpop.f32.mrf.mxu0
      %v638 = vpop.f32.mrf.mxu0
      %v639 = vadd.f32 %v511, %v638
      %v640 = vpop.f32.mrf.mxu0
      %641 = vmatprep.mubr.bf16.mxu0 0
      %642 = vmatmul.mubr.bf16.gmra.mxu0 %v480
      %v643 = vpop.f32.mrf.mxu0
      %v644 = vadd.f32 %v511, %v643
      %v645 = vpop.f32.mrf.mxu0
      %v646 = vpop.f32.mrf.mxu0
      %v647 = vadd.f32 %v511, %v646
      %v648 = vpop.f32.mrf.mxu0
      %649 = vmatprep.mubr.bf16.mxu0 0
      %650 = vmatmul.mubr.bf16.gmra.mxu0 %v481
      %v651 = vpop.f32.mrf.mxu0
      %v652 = vadd.f32 %v511, %v651
      %v653 = vpop.f32.mrf.mxu0
      %v654 = vpop.f32.mrf.mxu0
      %v655 = vadd.f32 %v511, %v654
      %v656 = vpop.f32.mrf.mxu0
      %657 = vmatprep.mubr.bf16.mxu0 0
      %658 = vmatmul.mubr.bf16.gmra.mxu0 %v482
      %v659 = vpop.f32.mrf.mxu0
      %v660 = vadd.f32 %v511, %v659
      %v661 = vpop.f32.mrf.mxu0
      %v662 = vpop.f32.mrf.mxu0
      %v663 = vadd.f32 %v511, %v662
      %v664 = vpop.f32.mrf.mxu0
      %665 = vmatprep.mubr.bf16.mxu0 0
      %666 = vmatmul.mubr.bf16.gmra.mxu0 %v483
      %v667 = vpop.f32.mrf.mxu0
      %v668 = vadd.f32 %v511, %v667
      %v669 = vpop.f32.mrf.mxu0
      %v670 = vpop.f32.mrf.mxu0
      %v671 = vadd.f32 %v511, %v670
      %v672 = vpop.f32.mrf.mxu0
      %673 = vmatprep.mubr.bf16.mxu0 0
      %674 = vmatmul.mubr.bf16.gmra.mxu0 %v484
      %v675 = vpop.f32.mrf.mxu0
      %v676 = vadd.f32 %v511, %v675
      %v677 = vpop.f32.mrf.mxu0
      %v678 = vpop.f32.mrf.mxu0
      %v679 = vadd.f32 %v511, %v678
      %v680 = vpop.f32.mrf.mxu0
      %681 = vmatprep.mubr.bf16.mxu0 0
      %682 = vmatmul.mubr.bf16.gmra.mxu0 %v485
      %v683 = vpop.f32.mrf.mxu0
      %v684 = vadd.f32 %v511, %v683
      %v685 = vpop.f32.mrf.mxu0
      %v686 = vpop.f32.mrf.mxu0
      %v687 = vadd.f32 %v511, %v686
      %v688 = vpop.f32.mrf.mxu0
      %689 = vmatprep.mubr.bf16.mxu0 0
      %690 = vmatmul.mubr.bf16.gmra.mxu0 %v486
      %v691 = vpop.f32.mrf.mxu0
      %v692 = vadd.f32 %v511, %v691
      %v693 = vpop.f32.mrf.mxu0
      %v694 = vpop.f32.mrf.mxu0
      %v695 = vadd.f32 %v511, %v694
      %v696 = vpop.f32.mrf.mxu0
      %697 = vmatprep.mubr.bf16.mxu0 0
      %698 = vmatmul.mubr.bf16.gmra.mxu0 %v487
      %v699 = vpop.f32.mrf.mxu0
      %v700 = vadd.f32 %v511, %v699
      %v701 = vpop.f32.mrf.mxu0
      %v702 = vpop.f32.mrf.mxu0
      %v703 = vadd.f32 %v511, %v702
      %v704 = vpop.f32.mrf.mxu0
      %705 = vmatprep.mubr.bf16.mxu0 0
      %706 = vmatmul.mubr.bf16.gmra.mxu0 %v488
      %v707 = vpop.f32.mrf.mxu0
      %v708 = vadd.f32 %v511, %v707
      %v709 = vpop.f32.mrf.mxu0
      %v710 = vpop.f32.mrf.mxu0
      %v711 = vadd.f32 %v511, %v710
      %v712 = vpop.f32.mrf.mxu0
      %713 = vmatprep.mubr.bf16.mxu0 0
      %714 = vmatmul.mubr.bf16.gmra.mxu0 %v489
      %v715 = vpop.f32.mrf.mxu0
      %v716 = vadd.f32 %v511, %v715
      %v717 = vpop.f32.mrf.mxu0
      %v718 = vpop.f32.mrf.mxu0
      %v719 = vadd.f32 %v511, %v718
      %v720 = vpop.f32.mrf.mxu0
      %721 = vdwg.mxu0
      %v722 = vld [vmem:[%s323] sm:$0xff]
      %v723 = vld [vmem:[%s323 + $0x8] sm:$0xff]
      %v724 = vld [vmem:[%s323 + $0x10] sm:$0xff]
      %v725 = vld [vmem:[%s323 + $0x18] sm:$0xff]
      %v726 = vld [vmem:[%s323 + $0x20] sm:$0xff]
      %v727 = vld [vmem:[%s323 + $0x28] sm:$0xff]
      %v728 = vld [vmem:[%s323 + $0x30] sm:$0xff]
      %v729 = vld [vmem:[%s323 + $0x38] sm:$0xff]
      %v730 = vld [vmem:[%s323 + $0x40] sm:$0xff]
      %v731 = vld [vmem:[%s323 + $0x48] sm:$0xff]
      %v732 = vld [vmem:[%s323 + $0x50] sm:$0xff]
      %v733 = vld [vmem:[%s323 + $0x58] sm:$0xff]
      %v734 = vld [vmem:[%s323 + $0x60] sm:$0xff]
      %v735 = vld [vmem:[%s323 + $0x68] sm:$0xff]
      %v736 = vld [vmem:[%s323 + $0x70] sm:$0xff]
      %v737 = vld [vmem:[%s323 + $0x78] sm:$0xff]
      %v738 = vld [vmem:[%s323 + $0x80] sm:$0xff]
      %v739 = vld [vmem:[%s323 + $0x88] sm:$0xff]
      %v740 = vld [vmem:[%s323 + $0x90] sm:$0xff]
      %v741 = vld [vmem:[%s323 + $0x98] sm:$0xff]
      %v742 = vld [vmem:[%s323 + $0xa0] sm:$0xff]
      %v743 = vld [vmem:[%s323 + $0xa8] sm:$0xff]
      %v744 = vld [vmem:[%s323 + $0xb0] sm:$0xff]
      %v745 = vld [vmem:[%s323 + $0xb8] sm:$0xff]
      %v746 = vld [vmem:[%s323 + $0xc0] sm:$0xff]
      %v747 = vld [vmem:[%s323 + $0xc8] sm:$0xff]
      %v748 = vld [vmem:[%s323 + $0xd0] sm:$0xff]
      %v749 = vld [vmem:[%s323 + $0xd8] sm:$0xff]
      %v750 = vld [vmem:[%s323 + $0xe0] sm:$0xff]
      %v751 = vld [vmem:[%s323 + $0xe8] sm:$0xff]
      %v752 = vld [vmem:[%s323 + $0xf0] sm:$0xff]
      %v753 = vld [vmem:[%s323 + $0xf8] sm:$0xff]
      %v754 = vpack.c.bf16 %v723, %v722
      %v755 = vpack.c.bf16 %v725, %v724
      %v756 = vpack.c.bf16 %v727, %v726
      %v757 = vpack.c.bf16 %v729, %v728
      %v758 = vpack.c.bf16 %v731, %v730
      %v759 = vpack.c.bf16 %v733, %v732
      %v760 = vpack.c.bf16 %v735, %v734
      %v761 = vpack.c.bf16 %v737, %v736
      %v762 = vpack.c.bf16 %v739, %v738
      %v763 = vpack.c.bf16 %v741, %v740
      %v764 = vpack.c.bf16 %v743, %v742
      %v765 = vpack.c.bf16 %v745, %v744
      %v766 = vpack.c.bf16 %v747, %v746
      %v767 = vpack.c.bf16 %v749, %v748
      %v768 = vpack.c.bf16 %v751, %v750
      %v769 = vpack.c.bf16 %v753, %v752
      %v770 = vld [vmem:[%s6] sm:$0xf]
      %v771 = vld [vmem:[%s6 + $0x4] sm:$0xf]
      %v772 = vld [vmem:[%s6 + $0x8] sm:$0xf]
      %v773 = vld [vmem:[%s6 + $0xc] sm:$0xf]
      %v774 = vld [vmem:[%s6 + $0x10] sm:$0xf]
      %v775 = vld [vmem:[%s6 + $0x14] sm:$0xf]
      %v776 = vld [vmem:[%s6 + $0x18] sm:$0xf]
      %v777 = vld [vmem:[%s6 + $0x1c] sm:$0xf]
      %v778 = vld [vmem:[%s6 + $0x20] sm:$0xf]
      %v779 = vld [vmem:[%s6 + $0x24] sm:$0xf]
      %v780 = vld [vmem:[%s6 + $0x28] sm:$0xf]
      %v781 = vld [vmem:[%s6 + $0x2c] sm:$0xf]
      %v782 = vld [vmem:[%s6 + $0x30] sm:$0xf]
      %v783 = vld [vmem:[%s6 + $0x34] sm:$0xf]
      %v784 = vld [vmem:[%s6 + $0x38] sm:$0xf]
      %v785 = vld [vmem:[%s6 + $0x3c] sm:$0xf]
      %v802 = vunpack.c.l.b16 %v770
      %v803 = vunpack.c.l.b16 %v771
      %v804 = vunpack.c.l.b16 %v772
      %v805 = vunpack.c.l.b16 %v773
      %v806 = vunpack.c.l.b16 %v774
      %v807 = vunpack.c.l.b16 %v775
      %v808 = vunpack.c.l.b16 %v776
      %v809 = vunpack.c.l.b16 %v777
      %v810 = vunpack.c.l.b16 %v778
      %v811 = vunpack.c.l.b16 %v779
      %v812 = vunpack.c.l.b16 %v780
      %v813 = vunpack.c.l.b16 %v781
      %v814 = vunpack.c.l.b16 %v782
      %v815 = vunpack.c.l.b16 %v783
      %v816 = vunpack.c.l.b16 %v784
      %v817 = vunpack.c.l.b16 %v785
      %v818 = vpack.c.b16 %v803, %v802
      %v819 = vpack.c.b16 %v805, %v804
      %v820 = vpack.c.b16 %v807, %v806
      %v821 = vpack.c.b16 %v809, %v808
      %v822 = vpack.c.b16 %v811, %v810
      %v823 = vpack.c.b16 %v813, %v812
      %v824 = vpack.c.b16 %v815, %v814
      %v825 = vpack.c.b16 %v817, %v816
      %834 = vmatprep.subr.bf16.mxu0 0
      %835 = vmatpush1.bf16.msra.mxu0 %v825
      %836 = vmatprep.subr.bf16.mxu0 0
      %837 = vmatpush1.bf16.msra.mxu0 %v824
      %838 = vmatprep.subr.bf16.mxu0 0
      %839 = vmatpush1.bf16.msra.mxu0 %v823
      %840 = vmatprep.subr.bf16.mxu0 0
      %841 = vmatpush1.bf16.msra.mxu0 %v822
      %842 = vmatprep.subr.bf16.mxu0 0
      %843 = vmatpush1.bf16.msra.mxu0 %v821
      %844 = vmatprep.subr.bf16.mxu0 0
      %845 = vmatpush1.bf16.msra.mxu0 %v820
      %846 = vmatprep.subr.bf16.mxu0 0
      %847 = vmatpush1.bf16.msra.mxu0 %v819
      %848 = vmatprep.subr.bf16.mxu0 0
      %849 = vmatpush1.bf16.msra.mxu0 %v818
      %850 = vmatprep.subr.bf16.mxu0 0
      %851 = vmatpush2.bf16.msra.mxu0 0
      %852 = vmatprep.subr.bf16.mxu0 0
      %853 = vmatpush2.bf16.msra.mxu0 0
      %854 = vmatprep.subr.bf16.mxu0 0
      %855 = vmatpush2.bf16.msra.mxu0 0
      %856 = vmatprep.subr.bf16.mxu0 0
      %857 = vmatpush2.bf16.msra.mxu0 0
      %858 = vmatprep.subr.bf16.mxu0 0
      %859 = vmatpush2.bf16.msra.mxu0 0
      %860 = vmatprep.subr.bf16.mxu0 0
      %861 = vmatpush2.bf16.msra.mxu0 0
      %862 = vmatprep.subr.bf16.mxu0 0
      %863 = vmatpush2.bf16.msra.mxu0 0
      %864 = vmatprep.subr.bf16.mxu0 0
      %865 = vmatpush2.bf16.msra.mxu0 0
      %866 = vmatprep.mubr.bf16.mxu0 0
      %867 = vmatmul.mubr.bf16.gmra.mxu0 %v754
      %v868 = vpop.f32.mrf.mxu0
      %v869 = vadd.f32 0.0, %v868
      %v870 = vpop.f32.mrf.mxu0
      %v871 = vpop.f32.mrf.mxu0
      %v872 = vadd.f32 0.0, %v871
      %v873 = vpop.f32.mrf.mxu0
      %874 = vmatprep.mubr.bf16.mxu0 0
      %875 = vmatmul.mubr.bf16.gmra.mxu0 %v755
      %v876 = vpop.f32.mrf.mxu0
      %v877 = vadd.f32 0.0, %v876
      %v878 = vpop.f32.mrf.mxu0
      %v879 = vpop.f32.mrf.mxu0
      %v880 = vadd.f32 0.0, %v879
      %v881 = vpop.f32.mrf.mxu0
      %882 = vmatprep.mubr.bf16.mxu0 0
      %883 = vmatmul.mubr.bf16.gmra.mxu0 %v756
      %v884 = vpop.f32.mrf.mxu0
      %v885 = vadd.f32 0.0, %v884
      %v886 = vpop.f32.mrf.mxu0
      %v887 = vpop.f32.mrf.mxu0
      %v888 = vadd.f32 0.0, %v887
      %v889 = vpop.f32.mrf.mxu0
      %890 = vmatprep.mubr.bf16.mxu0 0
      %891 = vmatmul.mubr.bf16.gmra.mxu0 %v757
      %v892 = vpop.f32.mrf.mxu0
      %v893 = vadd.f32 0.0, %v892
      %v894 = vpop.f32.mrf.mxu0
      %v895 = vpop.f32.mrf.mxu0
      %v896 = vadd.f32 0.0, %v895
      %v897 = vpop.f32.mrf.mxu0
      %898 = vmatprep.mubr.bf16.mxu0 0
      %899 = vmatmul.mubr.bf16.gmra.mxu0 %v758
      %v900 = vpop.f32.mrf.mxu0
      %v901 = vadd.f32 0.0, %v900
      %v902 = vpop.f32.mrf.mxu0
      %v903 = vpop.f32.mrf.mxu0
      %v904 = vadd.f32 0.0, %v903
      %v905 = vpop.f32.mrf.mxu0
      %906 = vmatprep.mubr.bf16.mxu0 0
      %907 = vmatmul.mubr.bf16.gmra.mxu0 %v759
      %v908 = vpop.f32.mrf.mxu0
      %v909 = vadd.f32 0.0, %v908
      %v910 = vpop.f32.mrf.mxu0
      %v911 = vpop.f32.mrf.mxu0
      %v912 = vadd.f32 0.0, %v911
      %v913 = vpop.f32.mrf.mxu0
      %914 = vmatprep.mubr.bf16.mxu0 0
      %915 = vmatmul.mubr.bf16.gmra.mxu0 %v760
      %v916 = vpop.f32.mrf.mxu0
      %v917 = vadd.f32 0.0, %v916
      %v918 = vpop.f32.mrf.mxu0
      %v919 = vpop.f32.mrf.mxu0
      %v920 = vadd.f32 0.0, %v919
      %v921 = vpop.f32.mrf.mxu0
      %922 = vmatprep.mubr.bf16.mxu0 0
      %923 = vmatmul.mubr.bf16.gmra.mxu0 %v761
      %v924 = vpop.f32.mrf.mxu0
      %v925 = vadd.f32 0.0, %v924
      %v926 = vpop.f32.mrf.mxu0
      %v927 = vpop.f32.mrf.mxu0
      %v928 = vadd.f32 0.0, %v927
      %v929 = vpop.f32.mrf.mxu0
      %930 = vmatprep.mubr.bf16.mxu0 0
      %931 = vmatmul.mubr.bf16.gmra.mxu0 %v762
      %v932 = vpop.f32.mrf.mxu0
      %v933 = vadd.f32 0.0, %v932
      %v934 = vpop.f32.mrf.mxu0
      %v935 = vpop.f32.mrf.mxu0
      %v936 = vadd.f32 0.0, %v935
      %v937 = vpop.f32.mrf.mxu0
      %938 = vmatprep.mubr.bf16.mxu0 0
      %939 = vmatmul.mubr.bf16.gmra.mxu0 %v763
      %v940 = vpop.f32.mrf.mxu0
      %v941 = vadd.f32 0.0, %v940
      %v942 = vpop.f32.mrf.mxu0
      %v943 = vpop.f32.mrf.mxu0
      %v944 = vadd.f32 0.0, %v943
      %v945 = vpop.f32.mrf.mxu0
      %946 = vmatprep.mubr.bf16.mxu0 0
      %947 = vmatmul.mubr.bf16.gmra.mxu0 %v764
      %v948 = vpop.f32.mrf.mxu0
      %v949 = vadd.f32 0.0, %v948
      %v950 = vpop.f32.mrf.mxu0
      %v951 = vpop.f32.mrf.mxu0
      %v952 = vadd.f32 0.0, %v951
      %v953 = vpop.f32.mrf.mxu0
      %954 = vmatprep.mubr.bf16.mxu0 0
      %955 = vmatmul.mubr.bf16.gmra.mxu0 %v765
      %v956 = vpop.f32.mrf.mxu0
      %v957 = vadd.f32 0.0, %v956
      %v958 = vpop.f32.mrf.mxu0
      %v959 = vpop.f32.mrf.mxu0
      %v960 = vadd.f32 0.0, %v959
      %v961 = vpop.f32.mrf.mxu0
      %962 = vmatprep.mubr.bf16.mxu0 0
      %963 = vmatmul.mubr.bf16.gmra.mxu0 %v766
      %v964 = vpop.f32.mrf.mxu0
      %v965 = vadd.f32 0.0, %v964
      %v966 = vpop.f32.mrf.mxu0
      %v967 = vpop.f32.mrf.mxu0
      %v968 = vadd.f32 0.0, %v967
      %v969 = vpop.f32.mrf.mxu0
      %970 = vmatprep.mubr.bf16.mxu0 0
      %971 = vmatmul.mubr.bf16.gmra.mxu0 %v767
      %v972 = vpop.f32.mrf.mxu0
      %v973 = vadd.f32 0.0, %v972
      %v974 = vpop.f32.mrf.mxu0
      %v975 = vpop.f32.mrf.mxu0
      %v976 = vadd.f32 0.0, %v975
      %v977 = vpop.f32.mrf.mxu0
      %978 = vmatprep.mubr.bf16.mxu0 0
      %979 = vmatmul.mubr.bf16.gmra.mxu0 %v768
      %v980 = vpop.f32.mrf.mxu0
      %v981 = vadd.f32 0.0, %v980
      %v982 = vpop.f32.mrf.mxu0
      %v983 = vpop.f32.mrf.mxu0
      %v984 = vadd.f32 0.0, %v983
      %v985 = vpop.f32.mrf.mxu0
      %986 = vmatprep.mubr.bf16.mxu0 0
      %987 = vmatmul.mubr.bf16.gmra.mxu0 %v769
      %v988 = vpop.f32.mrf.mxu0
      %v989 = vadd.f32 0.0, %v988
      %v990 = vpop.f32.mrf.mxu0
      %v991 = vpop.f32.mrf.mxu0
      %v992 = vadd.f32 0.0, %v991
      %v993 = vpop.f32.mrf.mxu0
      %994 = vdwg.mxu0
      %v995 = vadd.f32 %v596, %v869
      %v996 = vadd.f32 %v599, %v872
      %v997 = vadd.f32 %v604, %v877
      %v998 = vadd.f32 %v607, %v880
      %v999 = vadd.f32 %v612, %v885
      %v1000 = vadd.f32 %v615, %v888
      %v1001 = vadd.f32 %v620, %v893
      %v1002 = vadd.f32 %v623, %v896
      %v1003 = vadd.f32 %v628, %v901
      %v1004 = vadd.f32 %v631, %v904
      %v1005 = vadd.f32 %v636, %v909
      %v1006 = vadd.f32 %v639, %v912
      %v1007 = vadd.f32 %v644, %v917
      %v1008 = vadd.f32 %v647, %v920
      %v1009 = vadd.f32 %v652, %v925
      %v1010 = vadd.f32 %v655, %v928
      %v1011 = vadd.f32 %v660, %v933
      %v1012 = vadd.f32 %v663, %v936
      %v1013 = vadd.f32 %v668, %v941
      %v1014 = vadd.f32 %v671, %v944
      %v1015 = vadd.f32 %v676, %v949
      %v1016 = vadd.f32 %v679, %v952
      %v1017 = vadd.f32 %v684, %v957
      %v1018 = vadd.f32 %v687, %v960
      %v1019 = vadd.f32 %v692, %v965
      %v1020 = vadd.f32 %v695, %v968
      %v1021 = vadd.f32 %v700, %v973
      %v1022 = vadd.f32 %v703, %v976
      %v1023 = vadd.f32 %v708, %v981
      %v1024 = vadd.f32 %v711, %v984
      %v1025 = vadd.f32 %v716, %v989
      %v1026 = vadd.f32 %v719, %v992
      %v1027 = vld [vmem:[%s7] sm:$0x1]
      %v1029 = vlaneseq
      %v1030 = vshrl.u32 %v1029, 7
      %v1031 = vsub.s32 0, %v1030
      %v1032 = vrot.slane %v1027, %v1031
      %v1034 = vadd.f32 %v995, %v1032
      %v1035 = vadd.f32 %v996, %v1032
      %v1036 = vadd.f32 %v997, %v1032
      %v1037 = vadd.f32 %v998, %v1032
      %v1038 = vadd.f32 %v999, %v1032
      %v1039 = vadd.f32 %v1000, %v1032
      %v1040 = vadd.f32 %v1001, %v1032
      %v1041 = vadd.f32 %v1002, %v1032
      %v1042 = vadd.f32 %v1003, %v1032
      %v1043 = vadd.f32 %v1004, %v1032
      %v1044 = vadd.f32 %v1005, %v1032
      %v1045 = vadd.f32 %v1006, %v1032
      %v1046 = vadd.f32 %v1007, %v1032
      %v1047 = vadd.f32 %v1008, %v1032
      %v1048 = vadd.f32 %v1009, %v1032
      %v1049 = vadd.f32 %v1010, %v1032
      %v1050 = vadd.f32 %v1011, %v1032
      %v1051 = vadd.f32 %v1012, %v1032
      %v1052 = vadd.f32 %v1013, %v1032
      %v1053 = vadd.f32 %v1014, %v1032
      %v1054 = vadd.f32 %v1015, %v1032
      %v1055 = vadd.f32 %v1016, %v1032
      %v1056 = vadd.f32 %v1017, %v1032
      %v1057 = vadd.f32 %v1018, %v1032
      %v1058 = vadd.f32 %v1019, %v1032
      %v1059 = vadd.f32 %v1020, %v1032
      %v1060 = vadd.f32 %v1021, %v1032
      %v1061 = vadd.f32 %v1022, %v1032
      %v1062 = vadd.f32 %v1023, %v1032
      %v1063 = vadd.f32 %v1024, %v1032
      %v1064 = vadd.f32 %v1025, %v1032
      %v1065 = vadd.f32 %v1026, %v1032
      %1066 = vst [vmem:[%s329] sm:$0xff] %v1034
      %1067 = vst [vmem:[%s329 + $0x8] sm:$0xff] %v1035
      %1068 = vst [vmem:[%s329 + $0x10] sm:$0xff] %v1036
      %1069 = vst [vmem:[%s329 + $0x18] sm:$0xff] %v1037
      %1070 = vst [vmem:[%s329 + $0x20] sm:$0xff] %v1038
      %1071 = vst [vmem:[%s329 + $0x28] sm:$0xff] %v1039
      %1072 = vst [vmem:[%s329 + $0x30] sm:$0xff] %v1040
      %1073 = vst [vmem:[%s329 + $0x38] sm:$0xff] %v1041
      %1074 = vst [vmem:[%s329 + $0x40] sm:$0xff] %v1042
      %1075 = vst [vmem:[%s329 + $0x48] sm:$0xff] %v1043
      %1076 = vst [vmem:[%s329 + $0x50] sm:$0xff] %v1044
      %1077 = vst [vmem:[%s329 + $0x58] sm:$0xff] %v1045
      %1078 = vst [vmem:[%s329 + $0x60] sm:$0xff] %v1046
      %1079 = vst [vmem:[%s329 + $0x68] sm:$0xff] %v1047
      %1080 = vst [vmem:[%s329 + $0x70] sm:$0xff] %v1048
      %1081 = vst [vmem:[%s329 + $0x78] sm:$0xff] %v1049
      %1082 = vst [vmem:[%s329 + $0x80] sm:$0xff] %v1050
      %1083 = vst [vmem:[%s329 + $0x88] sm:$0xff] %v1051
      %1084 = vst [vmem:[%s329 + $0x90] sm:$0xff] %v1052
      %1085 = vst [vmem:[%s329 + $0x98] sm:$0xff] %v1053
      %1086 = vst [vmem:[%s329 + $0xa0] sm:$0xff] %v1054
      %1087 = vst [vmem:[%s329 + $0xa8] sm:$0xff] %v1055
      %1088 = vst [vmem:[%s329 + $0xb0] sm:$0xff] %v1056
      %1089 = vst [vmem:[%s329 + $0xb8] sm:$0xff] %v1057
      %1090 = vst [vmem:[%s329 + $0xc0] sm:$0xff] %v1058
      %1091 = vst [vmem:[%s329 + $0xc8] sm:$0xff] %v1059
      %1092 = vst [vmem:[%s329 + $0xd0] sm:$0xff] %v1060
      %1093 = vst [vmem:[%s329 + $0xd8] sm:$0xff] %v1061
      %1094 = vst [vmem:[%s329 + $0xe0] sm:$0xff] %v1062
      %1095 = vst [vmem:[%s329 + $0xe8] sm:$0xff] %v1063
      %1096 = vst [vmem:[%s329 + $0xf0] sm:$0xff] %v1064
      %1097 = vst [vmem:[%s329 + $0xf8] sm:$0xff] %v1065
      %s1098 = smul.u32 32, %s19
      %p1099 = scmp.lt.s32.totalorder %s1098, 63
      %s1100 = scalar_select %p1099, %s1098, 63
      %s1101 = smul.addr %s1100, 8
      %s1102 = scalar_lea.vmem %s8, %s1101
      // Predicated region
      $region53: #{residual_forward.7} parent=51 // pred_check
        %p1103 = pneg %p215
      $region54: #{residual_forward.7} parent=51 // pred_check_branch
        %1105 = sbr.rel (%p1103) target = $region56
      $region55: #{residual_forward.7} parent=51 // pred_region
        %s1106 = smul.u32 32, %s19
      $region56: #{residual_forward.7} parent=51 // pred_fallthru
        _
    $region52: #{residual_forward.7} parent=5 // pred_fallthru
      _
    %p1107 = scmp.le.s32.totalorder 2, %s14
    // Predicated region
    $region57: #{residual_forward.7} parent=5 // pred_check
      %p1108 = pneg %p1107
    $region58: #{residual_forward.7} parent=5 // pred_check_branch
      %1110 = sbr.rel (%p1108) target = $region60
    $region59: #{residual_forward.7} parent=5 // pred_region
      %s1111 = ssub.s32 %s14, 2
      // Predicated region
      $region61: #{residual_forward.7} parent=59 // pred_check
        %p1112 = pneg %p221
      $region62: #{residual_forward.7} parent=59 // pred_check_branch
        %1114 = sbr.rel (%p1112) target = $region64
      $region63: #{residual_forward.7} parent=59 // pred_region
        %s1115 = smul.u32 32, %s20
        %p1116 = scmp.lt.s32.totalorder %s1115, 63
        %s1117 = scalar_select %p1116, %s1115, 63
        %s1118 = smul.addr %s1117, 8
        %s1119 = scalar_lea.vmem %s8, %s1118
      $region64: #{residual_forward.7} parent=59 // pred_fallthru
        _
    $region60: #{residual_forward.7} parent=5 // pred_fallthru
      _
  $region6: #{residual_forward.7} parent=0 // loop_footer
    %s18 = sadd.s32 1, %s14
  $region7: #{residual_forward.7} parent=0 // loop_footer_branch
    %13 = sbr.rel target = $region3
  $region8: #{residual_forward.7} parent=0 // loop_exit
    _

// kernel: residual_forward.6
$region0: #{residual_forward.6}
  #allocation0 [shape = 'u32[]', space=smem, size = 0x4, offset = 0x4, fixed_abs, tag = 'smem constant byte address 0x4 - core index']
  #allocation1 [shape = 'u32[144,128]{1,0:T(1,128)}', space=vmem, size = 0x12000, scoped, tag = 'internal scratch']
  %s0 = inlined_call_operand.vmem [shape: f32[2,16,16,128], index: 0, kind: input, shape index: {}]
  %s1 = inlined_call_operand.vmem [shape: f32[1,128], index: 1, kind: input, shape index: {}]
  %s2 = inlined_call_operand.vmem [shape: f32[1,128], index: 2, kind: input, shape index: {}]
  %s3 = inlined_call_operand.vmem [shape: bf16[9,128,128], index: 3, kind: input, shape index: {}]
  %s4 = inlined_call_operand.vmem [shape: f32[1,128], index: 4, kind: input, shape index: {}]
  %s5 = inlined_call_operand.vmem [shape: f32[2,16,16,128], index: 5, kind: output, shape index: {0}]
  %s6 = inlined_call_operand.vmem [shape: f32[2,8,128], index: 6, kind: output, shape index: {1}]
  %s7 = inlined_call_operand.vmem [shape: f32[2,8,128], index: 7, kind: output, shape index: {2}]
  %8 = xla_tuple %s5, %s6, %s7
  %s9 = sld [smem:[#allocation0]]
  $region69: #{residual_forward.6} parent=0
    _
  %s11 = ssub.s32 1, %s9
  %s12 = scalar_select 0, %s11, %s9
  loop: start=0, step=1, limit=4
  $region2: #{residual_forward.6} parent=0 // loop_pre_header
    _
  $region3: #{residual_forward.6} parent=0 // loop_header
    %s14 = sphi 0, %s18
    %p15 = scmp.ge.s32.totalorder %s14, 4
    %s24 = sphi 0, %s26
    %s27 = sphi 0, %s24
    %s28 = sphi 0, %s27
    %s44 = sphi 0, %s28
    %s48 = sphi 0, %s48
    %s50 = sphi 0, %s48
    %s51 = sphi 0, %s50
    %s65 = sphi 0, %s51
    %s69 = sphi 0, %s69
    %s71 = sphi 0, %s69
    %s72 = sphi 0, %s71
    %s86 = sphi 0, %s72
    %s90 = sphi 0, %s90
    %s92 = sphi 0, %s90
    %s93 = sphi 0, %s92
    %s107 = sphi 0, %s93
    %s111 = sphi 0, %s111
    %s113 = sphi 0, %s111
    %s114 = sphi 0, %s113
    %s128 = sphi 0, %s114
    %s134 = sphi 0, %s136
    %s137 = sphi 0, %s134
    %s138 = sphi 0, %s137
    %s154 = sphi 0, %s138
    %s160 = sphi 0, %s162
    %s163 = sphi 0, %s160
    %s164 = sphi 0, %s163
    %s180 = sphi 0, %s164
    %s186 = sphi 0, %s188
    %s189 = sphi 0, %s186
    %s190 = sphi 0, %s189
    %s206 = sphi 0, %s190
  $region4: #{residual_forward.6} parent=0 // loop_header_branch
    %17 = sbr.rel (%p15) target = $region8
  $region5: #{residual_forward.6} parent=0 // loop_body
    %s19 = ssub.s32 %s14, 1
    %s20 = ssub.s32 %s14, 2
    %s21 = sadd.s32 %s14, 1
    %s22 = ssub.s32 %s14, %s21
    %p23 = scmp.eq.s32.totalorder %s22, 0
    %s25 = sadd.s32 %s24, 1
    %s26 = scalar_select %p23, %s24, %s25
    %p29 = pneg %p23
    %p30 = scmp.eq.s32.totalorder %s14, 1
    %p31 = por %p29, %p30
    %p32 = scmp.ne.s32.totalorder %s24, %s27
    %p33 = scmp.eq.s32.totalorder %s14, 0
    %p34 = por %p32, %p33
    %p35 = scmp.ne.s32.totalorder %s24, %s27
    %p36 = scmp.eq.s32.totalorder %s19, 1
    %p37 = por %p35, %p36
    %p38 = scmp.ne.s32.totalorder %s27, %s28
    %p39 = scmp.eq.s32.totalorder %s19, 0
    %p40 = por %p38, %p39
    %p41 = scmp.ne.s32.totalorder %s27, %s28
    %p42 = scmp.eq.s32.totalorder %s20, 1
    %p43 = por %p41, %p42
    %p45 = scmp.ne.s32.totalorder %s28, %s44
    %p46 = scmp.eq.s32.totalorder %s20, 0
    %p47 = por %p45, %p46
    %s49 = sadd.s32 %s48, 1
    %p52 = scmp.eq.s32.totalorder %s14, 1
    %p53 = scmp.ne.s32.totalorder %s48, %s50
    %p54 = scmp.eq.s32.totalorder %s14, 0
    %p55 = por %p53, %p54
    %p56 = scmp.ne.s32.totalorder %s48, %s50
    %p57 = scmp.eq.s32.totalorder %s19, 1
    %p58 = por %p56, %p57
    %p59 = scmp.ne.s32.totalorder %s50, %s51
    %p60 = scmp.eq.s32.totalorder %s19, 0
    %p61 = por %p59, %p60
    %p62 = scmp.ne.s32.totalorder %s50, %s51
    %p63 = scmp.eq.s32.totalorder %s20, 1
    %p64 = por %p62, %p63
    %p66 = scmp.ne.s32.totalorder %s51, %s65
    %p67 = scmp.eq.s32.totalorder %s20, 0
    %p68 = por %p66, %p67
    %s70 = sadd.s32 %s69, 1
    %p73 = scmp.eq.s32.totalorder %s14, 1
    %p74 = scmp.ne.s32.totalorder %s69, %s71
    %p75 = scmp.eq.s32.totalorder %s14, 0
    %p76 = por %p74, %p75
    %p77 = scmp.ne.s32.totalorder %s69, %s71
    %p78 = scmp.eq.s32.totalorder %s19, 1
    %p79 = por %p77, %p78
    %p80 = scmp.ne.s32.totalorder %s71, %s72
    %p81 = scmp.eq.s32.totalorder %s19, 0
    %p82 = por %p80, %p81
    %p83 = scmp.ne.s32.totalorder %s71, %s72
    %p84 = scmp.eq.s32.totalorder %s20, 1
    %p85 = por %p83, %p84
    %p87 = scmp.ne.s32.totalorder %s72, %s86
    %p88 = scmp.eq.s32.totalorder %s20, 0
    %p89 = por %p87, %p88
    %s91 = sadd.s32 %s90, 1
    %p94 = scmp.eq.s32.totalorder %s14, 1
    %p95 = scmp.ne.s32.totalorder %s90, %s92
    %p96 = scmp.eq.s32.totalorder %s14, 0
    %p97 = por %p95, %p96
    %p98 = scmp.ne.s32.totalorder %s90, %s92
    %p99 = scmp.eq.s32.totalorder %s19, 1
    %p100 = por %p98, %p99
    %p101 = scmp.ne.s32.totalorder %s92, %s93
    %p102 = scmp.eq.s32.totalorder %s19, 0
    %p103 = por %p101, %p102
    %p104 = scmp.ne.s32.totalorder %s92, %s93
    %p105 = scmp.eq.s32.totalorder %s20, 1
    %p106 = por %p104, %p105
    %p108 = scmp.ne.s32.totalorder %s93, %s107
    %p109 = scmp.eq.s32.totalorder %s20, 0
    %p110 = por %p108, %p109
    %s112 = sadd.s32 %s111, 1
    %p115 = scmp.eq.s32.totalorder %s14, 1
    %p116 = scmp.ne.s32.totalorder %s111, %s113
    %p117 = scmp.eq.s32.totalorder %s14, 0
    %p118 = por %p116, %p117
    %p119 = scmp.ne.s32.totalorder %s111, %s113
    %p120 = scmp.eq.s32.totalorder %s19, 1
    %p121 = por %p119, %p120
    %p122 = scmp.ne.s32.totalorder %s113, %s114
    %p123 = scmp.eq.s32.totalorder %s19, 0
    %p124 = por %p122, %p123
    %p125 = scmp.ne.s32.totalorder %s113, %s114
    %p126 = scmp.eq.s32.totalorder %s20, 1
    %p127 = por %p125, %p126
    %p129 = scmp.ne.s32.totalorder %s114, %s128
    %p130 = scmp.eq.s32.totalorder %s20, 0
    %p131 = por %p129, %p130
    %s132 = ssub.s32 %s14, %s21
    %p133 = scmp.eq.s32.totalorder %s132, 0
    %s135 = sadd.s32 %s134, 1
    %s136 = scalar_select %p133, %s134, %s135
    %p139 = pneg %p133
    %p140 = scmp.eq.s32.totalorder %s14, 1
    %p141 = por %p139, %p140
    %p142 = scmp.ne.s32.totalorder %s134, %s137
    %p143 = scmp.eq.s32.totalorder %s14, 0
    %p144 = por %p142, %p143
    %p145 = scmp.ne.s32.totalorder %s134, %s137
    %p146 = scmp.eq.s32.totalorder %s19, 1
    %p147 = por %p145, %p146
    %p148 = scmp.ne.s32.totalorder %s137, %s138
    %p149 = scmp.eq.s32.totalorder %s19, 0
    %p150 = por %p148, %p149
    %p151 = scmp.ne.s32.totalorder %s137, %s138
    %p152 = scmp.eq.s32.totalorder %s20, 1
    %p153 = por %p151, %p152
    %p155 = scmp.ne.s32.totalorder %s138, %s154
    %p156 = scmp.eq.s32.totalorder %s20, 0
    %p157 = por %p155, %p156
    %s158 = ssub.s32 %s14, %s21
    %p159 = scmp.eq.s32.totalorder %s158, 0
    %s161 = sadd.s32 %s160, 1
    %s162 = scalar_select %p159, %s160, %s161
    %p165 = pneg %p159
    %p166 = scmp.eq.s32.totalorder %s14, 1
    %p167 = por %p165, %p166
    %p168 = scmp.ne.s32.totalorder %s160, %s163
    %p169 = scmp.eq.s32.totalorder %s14, 0
    %p170 = por %p168, %p169
    %p171 = scmp.ne.s32.totalorder %s160, %s163
    %p172 = scmp.eq.s32.totalorder %s19, 1
    %p173 = por %p171, %p172
    %p174 = scmp.ne.s32.totalorder %s163, %s164
    %p175 = scmp.eq.s32.totalorder %s19, 0
    %p176 = por %p174, %p175
    %p177 = scmp.ne.s32.totalorder %s163, %s164
    %p178 = scmp.eq.s32.totalorder %s20, 1
    %p179 = por %p177, %p178
    %p181 = scmp.ne.s32.totalorder %s164, %s180
    %p182 = scmp.eq.s32.totalorder %s20, 0
    %p183 = por %p181, %p182
    %s184 = ssub.s32 %s14, %s21
    %p185 = scmp.eq.s32.totalorder %s184, 0
    %s187 = sadd.s32 %s186, 1
    %s188 = scalar_select %p185, %s186, %s187
    %p191 = pneg %p185
    %p192 = scmp.eq.s32.totalorder %s14, 1
    %p193 = por %p191, %p192
    %p194 = scmp.ne.s32.totalorder %s186, %s189
    %p195 = scmp.eq.s32.totalorder %s14, 0
    %p196 = por %p194, %p195
    %p197 = scmp.ne.s32.totalorder %s186, %s189
    %p198 = scmp.eq.s32.totalorder %s19, 1
    %p199 = por %p197, %p198
    %p200 = scmp.ne.s32.totalorder %s189, %s190
    %p201 = scmp.eq.s32.totalorder %s19, 0
    %p202 = por %p200, %p201
    %p203 = scmp.ne.s32.totalorder %s189, %s190
    %p204 = scmp.eq.s32.totalorder %s20, 1
    %p205 = por %p203, %p204
    %p207 = scmp.ne.s32.totalorder %s190, %s206
    %p208 = scmp.eq.s32.totalorder %s20, 0
    %p209 = por %p207, %p208
    %p210 = scmp.le.s32.totalorder 1, %s14
    %p211 = scmp.lt.s32.totalorder %s14, 3
    %p212 = pnand %p210, %p211
    %p213 = pneg %p212
    // Predicated region
    $region9: #{residual_forward.6} parent=5 // pred_check
      _
    $region10: #{residual_forward.6} parent=5 // pred_check_branch
      %215 = sbr.rel (%p212) target = $region12
    $region11: #{residual_forward.6} parent=5 // pred_region
      %s216 = ssub.s32 %s14, 1
      // Predicated region
      $region13: #{residual_forward.6} parent=11 // pred_check
        %p217 = pneg %p61
      $region14: #{residual_forward.6} parent=11 // pred_check_branch
        %219 = sbr.rel (%p217) target = $region16
      $region15: #{residual_forward.6} parent=11 // pred_region
        _
      $region16: #{residual_forward.6} parent=11 // pred_fallthru
        _
      // Predicated region
      $region17: #{residual_forward.6} parent=11 // pred_check
        %p220 = pneg %p82
      $region18: #{residual_forward.6} parent=11 // pred_check_branch
        %222 = sbr.rel (%p220) target = $region20
      $region19: #{residual_forward.6} parent=11 // pred_region
        _
      $region20: #{residual_forward.6} parent=11 // pred_fallthru
        _
      // Predicated region
      $region21: #{residual_forward.6} parent=11 // pred_check
        %p223 = pneg %p103
      $region22: #{residual_forward.6} parent=11 // pred_check_branch
        %225 = sbr.rel (%p223) target = $region24
      $region23: #{residual_forward.6} parent=11 // pred_region
        _
      $region24: #{residual_forward.6} parent=11 // pred_fallthru
        _
      // Predicated region
      $region25: #{residual_forward.6} parent=11 // pred_check
        %p226 = pneg %p124
      $region26: #{residual_forward.6} parent=11 // pred_check_branch
        %228 = sbr.rel (%p226) target = $region28
      $region27: #{residual_forward.6} parent=11 // pred_region
        _
      $region28: #{residual_forward.6} parent=11 // pred_fallthru
        _
    $region12: #{residual_forward.6} parent=5 // pred_fallthru
      _
    %p229 = scmp.lt.s32.totalorder %s14, 2
    // Predicated region
    $region29: #{residual_forward.6} parent=5 // pred_check
      %p230 = pneg %p229
    $region30: #{residual_forward.6} parent=5 // pred_check_branch
      %232 = sbr.rel (%p230) target = $region32
    $region31: #{residual_forward.6} parent=5 // pred_region
      // Predicated region
      $region33: #{residual_forward.6} parent=31 // pred_check
        %p233 = pneg %p34
      $region34: #{residual_forward.6} parent=31 // pred_check_branch
        %235 = sbr.rel (%p233) target = $region36
      $region35: #{residual_forward.6} parent=31 // pred_region
        %p236 = scmp.lt.s32.totalorder %s14, 1
        %s237 = scalar_select %p236, %s14, 1
        %s238 = smul.addr %s237, 32
        %s239 = smul.addr %s238, 8
        %s240 = scalar_lea.vmem %s0, %s239
      $region36: #{residual_forward.6} parent=31 // pred_fallthru
        _
    $region32: #{residual_forward.6} parent=5 // pred_fallthru
      _
    %p241 = scmp.le.s32.totalorder 1, %s14
    %p242 = scmp.lt.s32.totalorder %s14, 3
    %p243 = pnand %p241, %p242
    %p244 = pneg %p243
    // Predicated region
    $region37: #{residual_forward.6} parent=5 // pred_check
      _
    $region38: #{residual_forward.6} parent=5 // pred_check_branch
      %246 = sbr.rel (%p243) target = $region40
    $region39: #{residual_forward.6} parent=5 // pred_region
      %s247 = ssub.s32 %s14, 1
      %p248 = scmp.lt.s32.totalorder %s19, 1
      %s249 = scalar_select %p248, %s19, 1
      %s250 = smul.addr %s249, 32
      %s251 = smul.addr %s250, 8
      %s252 = scalar_lea.vmem %s0, %s251
      %p253 = pneg %p40
      %p254 = pneg %p37
      %p255 = pneg %p61
      %p256 = pneg %p58
      %p257 = pneg %p82
      %p258 = pneg %p79
      %p259 = pneg %p103
      %p260 = pneg %p100
      %p261 = pneg %p124
      %p262 = pneg %p121
      %p263 = pneg %p150
      %p264 = pneg %p147
      %p265 = scmp.lt.s32.totalorder %s19, 1
      %s266 = scalar_select %p265, %s19, 1
      %s267 = smul.addr %s266, 32
      %s268 = smul.addr %s267, 8
      %s269 = scalar_lea.vmem %s5, %s268
      %p270 = pneg %p176
      %p271 = pneg %p173
      %p272 = scmp.lt.s32.totalorder %s19, 1
      %s273 = scalar_select %p272, %s19, 1
      %s274 = smul.addr %s273, 8
      %s275 = scalar_lea.vmem %s6, %s274
      %p276 = pneg %p202
      %p277 = pneg %p199
      %p278 = scmp.lt.s32.totalorder %s19, 1
      %s279 = scalar_select %p278, %s19, 1
      %s280 = smul.addr %s279, 8
      %s281 = scalar_lea.vmem %s7, %s280
      %p282 = scmp.lt.s32.totalorder %s19, 1
      %s283 = scalar_select %p282, %s19, 1
      %s284 = smul.addr %s283, 32
      %s285 = smul.addr %s284, 8
      %s286 = scalar_lea.vmem %s0, %s285
      %p287 = scmp.lt.s32.totalorder %s19, 1
      %s288 = scalar_select %p287, %s19, 1
      %s289 = smul.addr %s288, 32
      %s290 = smul.addr %s289, 8
      %s291 = scalar_lea.vmem %s5, %s290
      %p292 = scmp.lt.s32.totalorder %s19, 1
      %s293 = scalar_select %p292, %s19, 1
      %s294 = smul.addr %s293, 8
      %s295 = scalar_lea.vmem %s6, %s294
      %p296 = scmp.lt.s32.totalorder %s19, 1
      %s297 = scalar_select %p296, %s19, 1
      %s298 = smul.addr %s297, 8
      %s299 = scalar_lea.vmem %s7, %s298
      %v301 = vld [vmem:[%s286] sm:$0xff]
      %v302 = vld [vmem:[%s286 + $0x8] sm:$0xff]
      %v303 = vld [vmem:[%s286 + $0x10] sm:$0xff]
      %v304 = vld [vmem:[%s286 + $0x18] sm:$0xff]
      %v305 = vld [vmem:[%s286 + $0x20] sm:$0xff]
      %v306 = vld [vmem:[%s286 + $0x28] sm:$0xff]
      %v307 = vld [vmem:[%s286 + $0x30] sm:$0xff]
      %v308 = vld [vmem:[%s286 + $0x38] sm:$0xff]
      %v309 = vld [vmem:[%s286 + $0x40] sm:$0xff]
      %v310 = vld [vmem:[%s286 + $0x48] sm:$0xff]
      %v311 = vld [vmem:[%s286 + $0x50] sm:$0xff]
      %v312 = vld [vmem:[%s286 + $0x58] sm:$0xff]
      %v313 = vld [vmem:[%s286 + $0x60] sm:$0xff]
      %v314 = vld [vmem:[%s286 + $0x68] sm:$0xff]
      %v315 = vld [vmem:[%s286 + $0x70] sm:$0xff]
      %v316 = vld [vmem:[%s286 + $0x78] sm:$0xff]
      %v317 = vld [vmem:[%s286 + $0x80] sm:$0xff]
      %v318 = vld [vmem:[%s286 + $0x88] sm:$0xff]
      %v319 = vld [vmem:[%s286 + $0x90] sm:$0xff]
      %v320 = vld [vmem:[%s286 + $0x98] sm:$0xff]
      %v321 = vld [vmem:[%s286 + $0xa0] sm:$0xff]
      %v322 = vld [vmem:[%s286 + $0xa8] sm:$0xff]
      %v323 = vld [vmem:[%s286 + $0xb0] sm:$0xff]
      %v324 = vld [vmem:[%s286 + $0xb8] sm:$0xff]
      %v325 = vld [vmem:[%s286 + $0xc0] sm:$0xff]
      %v326 = vld [vmem:[%s286 + $0xc8] sm:$0xff]
      %v327 = vld [vmem:[%s286 + $0xd0] sm:$0xff]
      %v328 = vld [vmem:[%s286 + $0xd8] sm:$0xff]
      %v329 = vld [vmem:[%s286 + $0xe0] sm:$0xff]
      %v330 = vld [vmem:[%s286 + $0xe8] sm:$0xff]
      %v331 = vld [vmem:[%s286 + $0xf0] sm:$0xff]
      %v332 = vld [vmem:[%s286 + $0xf8] sm:$0xff]
      %v333 = vld [vmem:[%s1] sm:$0x1]
      %v335 = vlaneseq
      %v336 = vshrl.u32 %v335, 7
      %v337 = vsub.s32 0, %v336
      %v338 = vrot.slane %v333, %v337
      %v340 = vmul.f32 %v301, %v338
      %v341 = vmul.f32 %v302, %v338
      %v342 = vmul.f32 %v303, %v338
      %v343 = vmul.f32 %v304, %v338
      %v344 = vmul.f32 %v305, %v338
      %v345 = vmul.f32 %v306, %v338
      %v346 = vmul.f32 %v307, %v338
      %v347 = vmul.f32 %v308, %v338
      %v348 = vmul.f32 %v309, %v338
      %v349 = vmul.f32 %v310, %v338
      %v350 = vmul.f32 %v311, %v338
      %v351 = vmul.f32 %v312, %v338
      %v352 = vmul.f32 %v313, %v338
      %v353 = vmul.f32 %v314, %v338
      %v354 = vmul.f32 %v315, %v338
      %v355 = vmul.f32 %v316, %v338
      %v356 = vmul.f32 %v317, %v338
      %v357 = vmul.f32 %v318, %v338
      %v358 = vmul.f32 %v319, %v338
      %v359 = vmul.f32 %v320, %v338
      %v360 = vmul.f32 %v321, %v338
      %v361 = vmul.f32 %v322, %v338
      %v362 = vmul.f32 %v323, %v338
      %v363 = vmul.f32 %v324, %v338
      %v364 = vmul.f32 %v325, %v338
      %v365 = vmul.f32 %v326, %v338
      %v366 = vmul.f32 %v327, %v338
      %v367 = vmul.f32 %v328, %v338
      %v368 = vmul.f32 %v329, %v338
      %v369 = vmul.f32 %v330, %v338
      %v370 = vmul.f32 %v331, %v338
      %v371 = vmul.f32 %v332, %v338
      %v372 = vld [vmem:[%s2] sm:$0x1]
      %v374 = vlaneseq
      %v375 = vshrl.u32 %v374, 7
      %v376 = vsub.s32 0, %v375
      %v377 = vrot.slane %v372, %v376
      %v379 = vadd.f32 %v340, %v377
      %v380 = vadd.f32 %v341, %v377
      %v381 = vadd.f32 %v342, %v377
      %v382 = vadd.f32 %v343, %v377
      %v383 = vadd.f32 %v344, %v377
      %v384 = vadd.f32 %v345, %v377
      %v385 = vadd.f32 %v346, %v377
      %v386 = vadd.f32 %v347, %v377
      %v387 = vadd.f32 %v348, %v377
      %v388 = vadd.f32 %v349, %v377
      %v389 = vadd.f32 %v350, %v377
      %v390 = vadd.f32 %v351, %v377
      %v391 = vadd.f32 %v352, %v377
      %v392 = vadd.f32 %v353, %v377
      %v393 = vadd.f32 %v354, %v377
      %v394 = vadd.f32 %v355, %v377
      %v395 = vadd.f32 %v356, %v377
      %v396 = vadd.f32 %v357, %v377
      %v397 = vadd.f32 %v358, %v377
      %v398 = vadd.f32 %v359, %v377
      %v399 = vadd.f32 %v360, %v377
      %v400 = vadd.f32 %v361, %v377
      %v401 = vadd.f32 %v362, %v377
      %v402 = vadd.f32 %v363, %v377
      %v403 = vadd.f32 %v364, %v377
      %v404 = vadd.f32 %v365, %v377
      %v405 = vadd.f32 %v366, %v377
      %v406 = vadd.f32 %v367, %v377
      %v407 = vadd.f32 %v368, %v377
      %v408 = vadd.f32 %v369, %v377
      %v409 = vadd.f32 %v370, %v377
      %v410 = vadd.f32 %v371, %v377
      %v411 = vmax.f32 %v379, 0.0
      %v412 = vmax.f32 %v380, 0.0
      %v413 = vmax.f32 %v381, 0.0
      %v414 = vmax.f32 %v382, 0.0
      %v415 = vmax.f32 %v383, 0.0
      %v416 = vmax.f32 %v384, 0.0
      %v417 = vmax.f32 %v385, 0.0
      %v418 = vmax.f32 %v386, 0.0
      %v419 = vmax.f32 %v387, 0.0
      %v420 = vmax.f32 %v388, 0.0
      %v421 = vmax.f32 %v389, 0.0
      %v422 = vmax.f32 %v390, 0.0
      %v423 = vmax.f32 %v391, 0.0
      %v424 = vmax.f32 %v392, 0.0
      %v425 = vmax.f32 %v393, 0.0
      %v426 = vmax.f32 %v394, 0.0
      %v427 = vmax.f32 %v395, 0.0
      %v428 = vmax.f32 %v396, 0.0
      %v429 = vmax.f32 %v397, 0.0
      %v430 = vmax.f32 %v398, 0.0
      %v431 = vmax.f32 %v399, 0.0
      %v432 = vmax.f32 %v400, 0.0
      %v433 = vmax.f32 %v401, 0.0
      %v434 = vmax.f32 %v402, 0.0
      %v435 = vmax.f32 %v403, 0.0
      %v436 = vmax.f32 %v404, 0.0
      %v437 = vmax.f32 %v405, 0.0
      %v438 = vmax.f32 %v406, 0.0
      %v439 = vmax.f32 %v407, 0.0
      %v440 = vmax.f32 %v408, 0.0
      %v441 = vmax.f32 %v409, 0.0
      %v442 = vmax.f32 %v410, 0.0
      %vm476 = vcmask 1040384
      %v477 = vrot.slane 0.0, 7
      %v478 = vsel %vm476, %v477, %v477
      %v479 = vrot.slane %v411, 7
      %v480 = vrot.slane %v412, 7
      %v481 = vsel %vm476, %v479, %v480
      %v482 = vrot.slane %v413, 7
      %v483 = vrot.slane %v414, 7
      %v484 = vsel %vm476, %v482, %v483
      %v485 = vrot.slane %v415, 7
      %v486 = vrot.slane %v416, 7
      %v487 = vsel %vm476, %v485, %v486
      %v488 = vrot.slane %v417, 7
      %v489 = vrot.slane %v418, 7
      %v490 = vsel %vm476, %v488, %v489
      %v491 = vrot.slane %v419, 7
      %v492 = vrot.slane %v420, 7
      %v493 = vsel %vm476, %v491, %v492
      %v494 = vrot.slane %v421, 7
      %v495 = vrot.slane %v422, 7
      %v496 = vsel %vm476, %v494, %v495
      %v497 = vrot.slane %v423, 7
      %v498 = vrot.slane %v424, 7
      %v499 = vsel %vm476, %v497, %v498
      %v500 = vrot.slane %v425, 7
      %v501 = vrot.slane %v426, 7
      %v502 = vsel %vm476, %v500, %v501
      %v503 = vrot.slane %v427, 7
      %v504 = vrot.slane %v428, 7
      %v505 = vsel %vm476, %v503, %v504
      %v506 = vrot.slane %v429, 7
      %v507 = vrot.slane %v430, 7
      %v508 = vsel %vm476, %v506, %v507
      %v509 = vrot.slane %v431, 7
      %v510 = vrot.slane %v432, 7
      %v511 = vsel %vm476, %v509, %v510
      %v512 = vrot.slane %v433, 7
      %v513 = vrot.slane %v434, 7
      %v514 = vsel %vm476, %v512, %v513
      %v515 = vrot.slane %v435, 7
      %v516 = vrot.slane %v436, 7
      %v517 = vsel %vm476, %v515, %v516
      %v518 = vrot.slane %v437, 7
      %v519 = vrot.slane %v438, 7
      %v520 = vsel %vm476, %v518, %v519
      %v521 = vrot.slane %v439, 7
      %v522 = vrot.slane %v440, 7
      %v523 = vsel %vm476, %v521, %v522
      %v524 = vrot.slane %v441, 7
      %v525 = vrot.slane %v442, 7
      %v526 = vsel %vm476, %v524, %v525
      %v577 = vsel %vm476, 0.0, %v477
      %v578 = vsel %vm476, 0.0, %v479
      %v579 = vsel %vm476, 0.0, %v482
      %v580 = vsel %vm476, 0.0, %v485
      %v581 = vsel %vm476, 0.0, %v488
      %v582 = vsel %vm476, 0.0, %v491
      %v583 = vsel %vm476, 0.0, %v494
      %v584 = vsel %vm476, 0.0, %v497
      %v585 = vsel %vm476, 0.0, %v500
      %v586 = vsel %vm476, 0.0, %v503
      %v587 = vsel %vm476, 0.0, %v506
      %v588 = vsel %vm476, 0.0, %v509
      %v589 = vsel %vm476, 0.0, %v512
      %v590 = vsel %vm476, 0.0, %v515
      %v591 = vsel %vm476, 0.0, %v518
      %v592 = vsel %vm476, 0.0, %v521
      %v593 = vsel %vm476, 0.0, %v524
      %v594 = vsel %vm476, %v477, 0.0
      %v595 = vsel %vm476, %v480, 0.0
      %v596 = vsel %vm476, %v483, 0.0
      %v597 = vsel %vm476, %v486, 0.0
      %v598 = vsel %vm476, %v489, 0.0
      %v599 = vsel %vm476, %v492, 0.0
      %v600 = vsel %vm476, %v495, 0.0
      %v601 = vsel %vm476, %v498, 0.0
      %v602 = vsel %vm476, %v501, 0.0
      %v603 = vsel %vm476, %v504, 0.0
      %v604 = vsel %vm476, %v507, 0.0
      %v605 = vsel %vm476, %v510, 0.0
      %v606 = vsel %vm476, %v513, 0.0
      %v607 = vsel %vm476, %v516, 0.0
      %v608 = vsel %vm476, %v519, 0.0
      %v609 = vsel %vm476, %v522, 0.0
      %v610 = vsel %vm476, %v525, 0.0
      %v611 = vpack.c.bf16 %v478, %v577
      %v612 = vpack.c.bf16 %v481, %v578
      %v613 = vpack.c.bf16 %v484, %v579
      %v614 = vpack.c.bf16 %v487, %v580
      %v615 = vpack.c.bf16 %v490, %v581
      %v616 = vpack.c.bf16 %v493, %v582
      %v617 = vpack.c.bf16 %v496, %v583
      %v618 = vpack.c.bf16 %v499, %v584
      %v619 = vpack.c.bf16 %v502, %v585
      %v620 = vpack.c.bf16 %v505, %v586
      %v621 = vpack.c.bf16 %v508, %v587
      %v622 = vpack.c.bf16 %v511, %v588
      %v623 = vpack.c.bf16 %v514, %v589
      %v624 = vpack.c.bf16 %v517, %v590
      %v625 = vpack.c.bf16 %v520, %v591
      %v626 = vpack.c.bf16 %v523, %v592
      %v627 = vld [vmem:[%s3] sm:$0xf]
      %v628 = vld [vmem:[%s3 + $0x4] sm:$0xf]
      %v629 = vld [vmem:[%s3 + $0x8] sm:$0xf]
      %v630 = vld [vmem:[%s3 + $0xc] sm:$0xf]
      %v631 = vld [vmem:[%s3 + $0x10] sm:$0xf]
      %v632 = vld [vmem:[%s3 + $0x14] sm:$0xf]
      %v633 = vld [vmem:[%s3 + $0x18] sm:$0xf]
      %v634 = vld [vmem:[%s3 + $0x1c] sm:$0xf]
      %v635 = vld [vmem:[%s3 + $0x20] sm:$0xf]
      %v636 = vld [vmem:[%s3 + $0x24] sm:$0xf]
      %v637 = vld [vmem:[%s3 + $0x28] sm:$0xf]
      %v638 = vld [vmem:[%s3 + $0x2c] sm:$0xf]
      %v639 = vld [vmem:[%s3 + $0x30] sm:$0xf]
      %v640 = vld [vmem:[%s3 + $0x34] sm:$0xf]
      %v641 = vld [vmem:[%s3 + $0x38] sm:$0xf]
      %v642 = vld [vmem:[%s3 + $0x3c] sm:$0xf]
      %vm675 = vcmask 1046528
      %v676 = vrot.slane %v577, 1
      %v677 = vrot.slane %v478, 1
      %v678 = vsel %vm675, %v676, %v677
      %v679 = vrot.slane %v594, 1
      %v680 = vsel %vm675, %v677, %v679
      %v681 = vrot.slane %v578, 1
      %v682 = vrot.slane %v481, 1
      %v683 = vsel %vm675, %v681, %v682
      %v684 = vrot.slane %v595, 1
      %v685 = vsel %vm675, %v682, %v684
      %v686 = vrot.slane %v579, 1
      %v687 = vrot.slane %v484, 1
      %v688 = vsel %vm675, %v686, %v687
      %v689 = vrot.slane %v596, 1
      %v690 = vsel %vm675, %v687, %v689
      %v691 = vrot.slane %v580, 1
      %v692 = vrot.slane %v487, 1
      %v693 = vsel %vm675, %v691, %v692
      %v694 = vrot.slane %v597, 1
      %v695 = vsel %vm675, %v692, %v694
      %v696 = vrot.slane %v581, 1
      %v697 = vrot.slane %v490, 1
      %v698 = vsel %vm675, %v696, %v697
      %v699 = vrot.slane %v598, 1
      %v700 = vsel %vm675, %v697, %v699
      %v701 = vrot.slane %v582, 1
      %v702 = vrot.slane %v493, 1
      %v703 = vsel %vm675, %v701, %v702
      %v704 = vrot.slane %v599, 1
      %v705 = vsel %vm675, %v702, %v704
      %v706 = vrot.slane %v583, 1
      %v707 = vrot.slane %v496, 1
      %v708 = vsel %vm675, %v706, %v707
      %v709 = vrot.slane %v600, 1
      %v710 = vsel %vm675, %v707, %v709
      %v711 = vrot.slane %v584, 1
      %v712 = vrot.slane %v499, 1
      %v713 = vsel %vm675, %v711, %v712
      %v714 = vrot.slane %v601, 1
      %v715 = vsel %vm675, %v712, %v714
      %v716 = vrot.slane %v585, 1
      %v717 = vrot.slane %v502, 1
      %v718 = vsel %vm675, %v716, %v717
      %v719 = vrot.slane %v602, 1
      %v720 = vsel %vm675, %v717, %v719
      %v721 = vrot.slane %v586, 1
      %v722 = vrot.slane %v505, 1
      %v723 = vsel %vm675, %v721, %v722
      %v724 = vrot.slane %v603, 1
      %v725 = vsel %vm675, %v722, %v724
      %v726 = vrot.slane %v587, 1
      %v727 = vrot.slane %v508, 1
      %v728 = vsel %vm675, %v726, %v727
      %v729 = vrot.slane %v604, 1
      %v730 = vsel %vm675, %v727, %v729
      %v731 = vrot.slane %v588, 1
      %v732 = vrot.slane %v511, 1
      %v733 = vsel %vm675, %v731, %v732
      %v734 = vrot.slane %v605, 1
      %v735 = vsel %vm675, %v732, %v734
      %v736 = vrot.slane %v589, 1
      %v737 = vrot.slane %v514, 1
      %v738 = vsel %vm675, %v736, %v737
      %v739 = vrot.slane %v606, 1
      %v740 = vsel %vm675, %v737, %v739
      %v741 = vrot.slane %v590, 1
      %v742 = vrot.slane %v517, 1
      %v743 = vsel %vm675, %v741, %v742
      %v744 = vrot.slane %v607, 1
      %v745 = vsel %vm675, %v742, %v744
      %v746 = vrot.slane %v591, 1
      %v747 = vrot.slane %v520, 1
      %v748 = vsel %vm675, %v746, %v747
      %v749 = vrot.slane %v608, 1
      %v750 = vsel %vm675, %v747, %v749
      %v751 = vrot.slane %v592, 1
      %v752 = vrot.slane %v523, 1
      %v753 = vsel %vm675, %v751, %v752
      %v754 = vrot.slane %v609, 1
      %v755 = vsel %vm675, %v752, %v754
      %v788 = vpack.c.bf16 %v680, %v678
      %v789 = vpack.c.bf16 %v685, %v683
      %v790 = vpack.c.bf16 %v690, %v688
      %v791 = vpack.c.bf16 %v695, %v693
      %v792 = vpack.c.bf16 %v700, %v698
      %v793 = vpack.c.bf16 %v705, %v703
      %v794 = vpack.c.bf16 %v710, %v708
      %v795 = vpack.c.bf16 %v715, %v713
      %v796 = vpack.c.bf16 %v720, %v718
      %v797 = vpack.c.bf16 %v725, %v723
      %v798 = vpack.c.bf16 %v730, %v728
      %v799 = vpack.c.bf16 %v735, %v733
      %v800 = vpack.c.bf16 %v740, %v738
      %v801 = vpack.c.bf16 %v745, %v743
      %v802 = vpack.c.bf16 %v750, %v748
      %v803 = vpack.c.bf16 %v755, %v753
      %s804 = scalar_lea.vmem %s3, 64
      %v805 = vld [vmem:[%s804] sm:$0xf]
      %v806 = vld [vmem:[%s804 + $0x4] sm:$0xf]
      %v807 = vld [vmem:[%s804 + $0x8] sm:$0xf]
      %v808 = vld [vmem:[%s804 + $0xc] sm:$0xf]
      %v809 = vld [vmem:[%s804 + $0x10] sm:$0xf]
      %v810 = vld [vmem:[%s804 + $0x14] sm:$0xf]
      %v811 = vld [vmem:[%s804 + $0x18] sm:$0xf]
      %v812 = vld [vmem:[%s804 + $0x1c] sm:$0xf]
      %v813 = vld [vmem:[%s804 + $0x20] sm:$0xf]
      %v814 = vld [vmem:[%s804 + $0x24] sm:$0xf]
      %v815 = vld [vmem:[%s804 + $0x28] sm:$0xf]
      %v816 = vld [vmem:[%s804 + $0x2c] sm:$0xf]
      %v817 = vld [vmem:[%s804 + $0x30] sm:$0xf]
      %v818 = vld [vmem:[%s804 + $0x34] sm:$0xf]
      %v819 = vld [vmem:[%s804 + $0x38] sm:$0xf]
      %v820 = vld [vmem:[%s804 + $0x3c] sm:$0xf]
      %v837 = vunpack.c.l.b16 %v805
      %v838 = vunpack.c.l.b16 %v806
      %v839 = vunpack.c.l.b16 %v807
      %v840 = vunpack.c.l.b16 %v808
      %v841 = vunpack.c.l.b16 %v809
      %v842 = vunpack.c.l.b16 %v810
      %v843 = vunpack.c.l.b16 %v811
      %v844 = vunpack.c.l.b16 %v812
      %v845 = vunpack.c.l.b16 %v813
      %v846 = vunpack.c.l.b16 %v814
      %v847 = vunpack.c.l.b16 %v815
      %v848 = vunpack.c.l.b16 %v816
      %v849 = vunpack.c.l.b16 %v817
      %v850 = vunpack.c.l.b16 %v818
      %v851 = vunpack.c.l.b16 %v819
      %v852 = vunpack.c.l.b16 %v820
      %v853 = vpack.c.b16 %v838, %v837
      %v854 = vpack.c.b16 %v840, %v839
      %v855 = vpack.c.b16 %v842, %v841
      %v856 = vpack.c.b16 %v844, %v843
      %v857 = vpack.c.b16 %v846, %v845
      %v858 = vpack.c.b16 %v848, %v847
      %v859 = vpack.c.b16 %v850, %v849
      %v860 = vpack.c.b16 %v852, %v851
      %869 = vmatprep.subr.bf16.mxu0 0
      %870 = vmatpush1.bf16.msra.mxu0 %v860
      %871 = vmatprep.subr.bf16.mxu0 0
      %872 = vmatpush1.bf16.msra.mxu0 %v859
      %873 = vmatprep.subr.bf16.mxu0 0
      %874 = vmatpush1.bf16.msra.mxu0 %v858
      %875 = vmatprep.subr.bf16.mxu0 0
      %876 = vmatpush1.bf16.msra.mxu0 %v857
      %877 = vmatprep.subr.bf16.mxu0 0
      %878 = vmatpush1.bf16.msra.mxu0 %v856
      %879 = vmatprep.subr.bf16.mxu0 0
      %880 = vmatpush1.bf16.msra.mxu0 %v855
      %881 = vmatprep.subr.bf16.mxu0 0
      %882 = vmatpush1.bf16.msra.mxu0 %v854
      %883 = vmatprep.subr.bf16.mxu0 0
      %884 = vmatpush1.bf16.msra.mxu0 %v853
      %885 = vmatprep.subr.bf16.mxu0 0
      %886 = vmatpush2.bf16.msra.mxu0 0
      %887 = vmatprep.subr.bf16.mxu0 0
      %888 = vmatpush2.bf16.msra.mxu0 0
      %889 = vmatprep.subr.bf16.mxu0 0
      %890 = vmatpush2.bf16.msra.mxu0 0
      %891 = vmatprep.subr.bf16.mxu0 0
      %892 = vmatpush2.bf16.msra.mxu0 0
      %893 = vmatprep.subr.bf16.mxu0 0
      %894 = vmatpush2.bf16.msra.mxu0 0
      %895 = vmatprep.subr.bf16.mxu0 0
      %896 = vmatpush2.bf16.msra.mxu0 0
      %897 = vmatprep.subr.bf16.mxu0 0
      %898 = vmatpush2.bf16.msra.mxu0 0
      %899 = vmatprep.subr.bf16.mxu0 0
      %900 = vmatpush2.bf16.msra.mxu0 0
      %901 = vmatprep.mubr.bf16.mxu0 0
      %902 = vmatmul.mubr.bf16.gmra.mxu0 %v788
      %v903 = vpop.f32.mrf.mxu0
      %v904 = vadd.f32 0.0, %v903
      %v905 = vpop.f32.mrf.mxu0
      %v906 = vpop.f32.mrf.mxu0
      %v907 = vadd.f32 0.0, %v906
      %v908 = vpop.f32.mrf.mxu0
      %909 = vmatprep.mubr.bf16.mxu0 0
      %910 = vmatmul.mubr.bf16.gmra.mxu0 %v789
      %v911 = vpop.f32.mrf.mxu0
      %v912 = vadd.f32 0.0, %v911
      %v913 = vpop.f32.mrf.mxu0
      %v914 = vpop.f32.mrf.mxu0
      %v915 = vadd.f32 0.0, %v914
      %v916 = vpop.f32.mrf.mxu0
      %917 = vmatprep.mubr.bf16.mxu0 0
      %918 = vmatmul.mubr.bf16.gmra.mxu0 %v790
      %v919 = vpop.f32.mrf.mxu0
      %v920 = vadd.f32 0.0, %v919
      %v921 = vpop.f32.mrf.mxu0
      %v922 = vpop.f32.mrf.mxu0
      %v923 = vadd.f32 0.0, %v922
      %v924 = vpop.f32.mrf.mxu0
      %925 = vmatprep.mubr.bf16.mxu0 0
      %926 = vmatmul.mubr.bf16.gmra.mxu0 %v791
      %v927 = vpop.f32.mrf.mxu0
      %v928 = vadd.f32 0.0, %v927
      %v929 = vpop.f32.mrf.mxu0
      %v930 = vpop.f32.mrf.mxu0
      %v931 = vadd.f32 0.0, %v930
      %v932 = vpop.f32.mrf.mxu0
      %933 = vmatprep.mubr.bf16.mxu0 0
      %934 = vmatmul.mubr.bf16.gmra.mxu0 %v792
      %v935 = vpop.f32.mrf.mxu0
      %v936 = vadd.f32 0.0, %v935
      %v937 = vpop.f32.mrf.mxu0
      %v938 = vpop.f32.mrf.mxu0
      %v939 = vadd.f32 0.0, %v938
      %v940 = vpop.f32.mrf.mxu0
      %941 = vmatprep.mubr.bf16.mxu0 0
      %942 = vmatmul.mubr.bf16.gmra.mxu0 %v793
      %v943 = vpop.f32.mrf.mxu0
      %v944 = vadd.f32 0.0, %v943
      %v945 = vpop.f32.mrf.mxu0
      %v946 = vpop.f32.mrf.mxu0
      %v947 = vadd.f32 0.0, %v946
      %v948 = vpop.f32.mrf.mxu0
      %949 = vmatprep.mubr.bf16.mxu0 0
      %950 = vmatmul.mubr.bf16.gmra.mxu0 %v794
      %v951 = vpop.f32.mrf.mxu0
      %v952 = vadd.f32 0.0, %v951
      %v953 = vpop.f32.mrf.mxu0
      %v954 = vpop.f32.mrf.mxu0
      %v955 = vadd.f32 0.0, %v954
      %v956 = vpop.f32.mrf.mxu0
      %957 = vmatprep.mubr.bf16.mxu0 0
      %958 = vmatmul.mubr.bf16.gmra.mxu0 %v795
      %v959 = vpop.f32.mrf.mxu0
      %v960 = vadd.f32 0.0, %v959
      %v961 = vpop.f32.mrf.mxu0
      %v962 = vpop.f32.mrf.mxu0
      %v963 = vadd.f32 0.0, %v962
      %v964 = vpop.f32.mrf.mxu0
      %965 = vmatprep.mubr.bf16.mxu0 0
      %966 = vmatmul.mubr.bf16.gmra.mxu0 %v796
      %v967 = vpop.f32.mrf.mxu0
      %v968 = vadd.f32 0.0, %v967
      %v969 = vpop.f32.mrf.mxu0
      %v970 = vpop.f32.mrf.mxu0
      %v971 = vadd.f32 0.0, %v970
      %v972 = vpop.f32.mrf.mxu0
      %973 = vmatprep.mubr.bf16.mxu0 0
      %974 = vmatmul.mubr.bf16.gmra.mxu0 %v797
      %v975 = vpop.f32.mrf.mxu0
      %v976 = vadd.f32 0.0, %v975
      %v977 = vpop.f32.mrf.mxu0
      %v978 = vpop.f32.mrf.mxu0
      %v979 = vadd.f32 0.0, %v978
      %v980 = vpop.f32.mrf.mxu0
      %981 = vmatprep.mubr.bf16.mxu0 0
      %982 = vmatmul.mubr.bf16.gmra.mxu0 %v798
      %v983 = vpop.f32.mrf.mxu0
      %v984 = vadd.f32 0.0, %v983
      %v985 = vpop.f32.mrf.mxu0
      %v986 = vpop.f32.mrf.mxu0
      %v987 = vadd.f32 0.0, %v986
      %v988 = vpop.f32.mrf.mxu0
      %989 = vmatprep.mubr.bf16.mxu0 0
      %990 = vmatmul.mubr.bf16.gmra.mxu0 %v799
      %v991 = vpop.f32.mrf.mxu0
      %v992 = vadd.f32 0.0, %v991
      %v993 = vpop.f32.mrf.mxu0
      %v994 = vpop.f32.mrf.mxu0
      %v995 = vadd.f32 0.0, %v994
      %v996 = vpop.f32.mrf.mxu0
      %997 = vmatprep.mubr.bf16.mxu0 0
      %998 = vmatmul.mubr.bf16.gmra.mxu0 %v800
      %v999 = vpop.f32.mrf.mxu0
      %v1000 = vadd.f32 0.0, %v999
      %v1001 = vpop.f32.mrf.mxu0
      %v1002 = vpop.f32.mrf.mxu0
      %v1003 = vadd.f32 0.0, %v1002
      %v1004 = vpop.f32.mrf.mxu0
      %1005 = vmatprep.mubr.bf16.mxu0 0
      %1006 = vmatmul.mubr.bf16.gmra.mxu0 %v801
      %v1007 = vpop.f32.mrf.mxu0
      %v1008 = vadd.f32 0.0, %v1007
      %v1009 = vpop.f32.mrf.mxu0
      %v1010 = vpop.f32.mrf.mxu0
      %v1011 = vadd.f32 0.0, %v1010
      %v1012 = vpop.f32.mrf.mxu0
      %1013 = vmatprep.mubr.bf16.mxu0 0
      %1014 = vmatmul.mubr.bf16.gmra.mxu0 %v802
      %v1015 = vpop.f32.mrf.mxu0
      %v1016 = vadd.f32 0.0, %v1015
      %v1017 = vpop.f32.mrf.mxu0
      %v1018 = vpop.f32.mrf.mxu0
      %v1019 = vadd.f32 0.0, %v1018
      %v1020 = vpop.f32.mrf.mxu0
      %1021 = vmatprep.mubr.bf16.mxu0 0
      %1022 = vmatmul.mubr.bf16.gmra.mxu0 %v803
      %v1023 = vpop.f32.mrf.mxu0
      %v1024 = vadd.f32 0.0, %v1023
      %v1025 = vpop.f32.mrf.mxu0
      %v1026 = vpop.f32.mrf.mxu0
      %v1027 = vadd.f32 0.0, %v1026
      %v1028 = vpop.f32.mrf.mxu0
      %1029 = vdwg.mxu0
      %v1046 = vunpack.c.l.b16 %v627
      %v1047 = vunpack.c.l.b16 %v628
      %v1048 = vunpack.c.l.b16 %v629
      %v1049 = vunpack.c.l.b16 %v630
      %v1050 = vunpack.c.l.b16 %v631
      %v1051 = vunpack.c.l.b16 %v632
      %v1052 = vunpack.c.l.b16 %v633
      %v1053 = vunpack.c.l.b16 %v634
      %v1054 = vunpack.c.l.b16 %v635
      %v1055 = vunpack.c.l.b16 %v636
      %v1056 = vunpack.c.l.b16 %v637
      %v1057 = vunpack.c.l.b16 %v638
      %v1058 = vunpack.c.l.b16 %v639
      %v1059 = vunpack.c.l.b16 %v640
      %v1060 = vunpack.c.l.b16 %v641
      %v1061 = vunpack.c.l.b16 %v642
      %v1062 = vpack.c.b16 %v1047, %v1046
      %v1063 = vpack.c.b16 %v1049, %v1048
      %v1064 = vpack.c.b16 %v1051, %v1050
      %v1065 = vpack.c.b16 %v1053, %v1052
      %v1066 = vpack.c.b16 %v1055, %v1054
      %v1067 = vpack.c.b16 %v1057, %v1056
      %v1068 = vpack.c.b16 %v1059, %v1058
      %v1069 = vpack.c.b16 %v1061, %v1060
      %1078 = vmatprep.subr.bf16.mxu0 0
      %1079 = vmatpush1.bf16.msra.mxu0 %v1069
      %1080 = vmatprep.subr.bf16.mxu0 0
      %1081 = vmatpush1.bf16.msra.mxu0 %v1068
      %1082 = vmatprep.subr.bf16.mxu0 0
      %1083 = vmatpush1.bf16.msra.mxu0 %v1067
      %1084 = vmatprep.subr.bf16.mxu0 0
      %1085 = vmatpush1.bf16.msra.mxu0 %v1066
      %1086 = vmatprep.subr.bf16.mxu0 0
      %1087 = vmatpush1.bf16.msra.mxu0 %v1065
      %1088 = vmatprep.subr.bf16.mxu0 0
      %1089 = vmatpush1.bf16.msra.mxu0 %v1064
      %1090 = vmatprep.subr.bf16.mxu0 0
      %1091 = vmatpush1.bf16.msra.mxu0 %v1063
      %1092 = vmatprep.subr.bf16.mxu0 0
      %1093 = vmatpush1.bf16.msra.mxu0 %v1062
      %1094 = vmatprep.subr.bf16.mxu0 0
      %1095 = vmatpush2.bf16.msra.mxu0 0
      %1096 = vmatprep.subr.bf16.mxu0 0
      %1097 = vmatpush2.bf16.msra.mxu0 0
      %1098 = vmatprep.subr.bf16.mxu0 0
      %1099 = vmatpush2.bf16.msra.mxu0 0
      %1100 = vmatprep.subr.bf16.mxu0 0
      %1101 = vmatpush2.bf16.msra.mxu0 0
      %1102 = vmatprep.subr.bf16.mxu0 0
      %1103 = vmatpush2.bf16.msra.mxu0 0
      %1104 = vmatprep.subr.bf16.mxu0 0
      %1105 = vmatpush2.bf16.msra.mxu0 0
      %1106 = vmatprep.subr.bf16.mxu0 0
      %1107 = vmatpush2.bf16.msra.mxu0 0
      %1108 = vmatprep.subr.bf16.mxu0 0
      %1109 = vmatpush2.bf16.msra.mxu0 0
      %1110 = vmatprep.mubr.bf16.mxu0 0
      %1111 = vmatmul.mubr.bf16.gmra.mxu0 %v611
      %v1112 = vpop.f32.mrf.mxu0
      %v1113 = vadd.f32 %v904, %v1112
      %v1114 = vpop.f32.mrf.mxu0
      %v1115 = vpop.f32.mrf.mxu0
      %v1116 = vadd.f32 %v907, %v1115
      %v1117 = vpop.f32.mrf.mxu0
      %1118 = vmatprep.mubr.bf16.mxu0 0
      %1119 = vmatmul.mubr.bf16.gmra.mxu0 %v612
      %v1120 = vpop.f32.mrf.mxu0
      %v1121 = vadd.f32 %v912, %v1120
      %v1122 = vpop.f32.mrf.mxu0
      %v1123 = vpop.f32.mrf.mxu0
      %v1124 = vadd.f32 %v915, %v1123
      %v1125 = vpop.f32.mrf.mxu0
      %1126 = vmatprep.mubr.bf16.mxu0 0
      %1127 = vmatmul.mubr.bf16.gmra.mxu0 %v613
      %v1128 = vpop.f32.mrf.mxu0
      %v1129 = vadd.f32 %v920, %v1128
      %v1130 = vpop.f32.mrf.mxu0
      %v1131 = vpop.f32.mrf.mxu0
      %v1132 = vadd.f32 %v923, %v1131
      %v1133 = vpop.f32.mrf.mxu0
      %1134 = vmatprep.mubr.bf16.mxu0 0
      %1135 = vmatmul.mubr.bf16.gmra.mxu0 %v614
      %v1136 = vpop.f32.mrf.mxu0
      %v1137 = vadd.f32 %v928, %v1136
      %v1138 = vpop.f32.mrf.mxu0
      %v1139 = vpop.f32.mrf.mxu0
      %v1140 = vadd.f32 %v931, %v1139
      %v1141 = vpop.f32.mrf.mxu0
      %1142 = vmatprep.mubr.bf16.mxu0 0
      %1143 = vmatmul.mubr.bf16.gmra.mxu0 %v615
      %v1144 = vpop.f32.mrf.mxu0
      %v1145 = vadd.f32 %v936, %v1144
      %v1146 = vpop.f32.mrf.mxu0
      %v1147 = vpop.f32.mrf.mxu0
      %v1148 = vadd.f32 %v939, %v1147
      %v1149 = vpop.f32.mrf.mxu0
      %1150 = vmatprep.mubr.bf16.mxu0 0
      %1151 = vmatmul.mubr.bf16.gmra.mxu0 %v616
      %v1152 = vpop.f32.mrf.mxu0
      %v1153 = vadd.f32 %v944, %v1152
      %v1154 = vpop.f32.mrf.mxu0
      %v1155 = vpop.f32.mrf.mxu0
      %v1156 = vadd.f32 %v947, %v1155
      %v1157 = vpop.f32.mrf.mxu0
      %1158 = vmatprep.mubr.bf16.mxu0 0
      %1159 = vmatmul.mubr.bf16.gmra.mxu0 %v617
      %v1160 = vpop.f32.mrf.mxu0
      %v1161 = vadd.f32 %v952, %v1160
      %v1162 = vpop.f32.mrf.mxu0
      %v1163 = vpop.f32.mrf.mxu0
      %v1164 = vadd.f32 %v955, %v1163
      %v1165 = vpop.f32.mrf.mxu0
      %1166 = vmatprep.mubr.bf16.mxu0 0
      %1167 = vmatmul.mubr.bf16.gmra.mxu0 %v618
      %v1168 = vpop.f32.mrf.mxu0
      %v1169 = vadd.f32 %v960, %v1168
      %v1170 = vpop.f32.mrf.mxu0
      %v1171 = vpop.f32.mrf.mxu0
      %v1172 = vadd.f32 %v963, %v1171
      %v1173 = vpop.f32.mrf.mxu0
      %1174 = vmatprep.mubr.bf16.mxu0 0
      %1175 = vmatmul.mubr.bf16.gmra.mxu0 %v619
      %v1176 = vpop.f32.mrf.mxu0
      %v1177 = vadd.f32 %v968, %v1176
      %v1178 = vpop.f32.mrf.mxu0
      %v1179 = vpop.f32.mrf.mxu0
      %v1180 = vadd.f32 %v971, %v1179
      %v1181 = vpop.f32.mrf.mxu0
      %1182 = vmatprep.mubr.bf16.mxu0 0
      %1183 = vmatmul.mubr.bf16.gmra.mxu0 %v620
      %v1184 = vpop.f32.mrf.mxu0
      %v1185 = vadd.f32 %v976, %v1184
      %v1186 = vpop.f32.mrf.mxu0
      %v1187 = vpop.f32.mrf.mxu0
      %v1188 = vadd.f32 %v979, %v1187
      %v1189 = vpop.f32.mrf.mxu0
      %1190 = vmatprep.mubr.bf16.mxu0 0
      %1191 = vmatmul.mubr.bf16.gmra.mxu0 %v621
      %v1192 = vpop.f32.mrf.mxu0
      %v1193 = vadd.f32 %v984, %v1192
      %v1194 = vpop.f32.mrf.mxu0
      %v1195 = vpop.f32.mrf.mxu0
      %v1196 = vadd.f32 %v987, %v1195
      %v1197 = vpop.f32.mrf.mxu0
      %1198 = vmatprep.mubr.bf16.mxu0 0
      %1199 = vmatmul.mubr.bf16.gmra.mxu0 %v622
      %v1200 = vpop.f32.mrf.mxu0
      %v1201 = vadd.f32 %v992, %v1200
      %v1202 = vpop.f32.mrf.mxu0
      %v1203 = vpop.f32.mrf.mxu0
      %v1204 = vadd.f32 %v995, %v1203
      %v1205 = vpop.f32.mrf.mxu0
      %1206 = vmatprep.mubr.bf16.mxu0 0
      %1207 = vmatmul.mubr.bf16.gmra.mxu0 %v623
      %v1208 = vpop.f32.mrf.mxu0
      %v1209 = vadd.f32 %v1000, %v1208
      %v1210 = vpop.f32.mrf.mxu0
      %v1211 = vpop.f32.mrf.mxu0
      %v1212 = vadd.f32 %v1003, %v1211
      %v1213 = vpop.f32.mrf.mxu0
      %1214 = vmatprep.mubr.bf16.mxu0 0
      %1215 = vmatmul.mubr.bf16.gmra.mxu0 %v624
      %v1216 = vpop.f32.mrf.mxu0
      %v1217 = vadd.f32 %v1008, %v1216
      %v1218 = vpop.f32.mrf.mxu0
      %v1219 = vpop.f32.mrf.mxu0
      %v1220 = vadd.f32 %v1011, %v1219
      %v1221 = vpop.f32.mrf.mxu0
      %1222 = vmatprep.mubr.bf16.mxu0 0
      %1223 = vmatmul.mubr.bf16.gmra.mxu0 %v625
      %v1224 = vpop.f32.mrf.mxu0
      %v1225 = vadd.f32 %v1016, %v1224
      %v1226 = vpop.f32.mrf.mxu0
      %v1227 = vpop.f32.mrf.mxu0
      %v1228 = vadd.f32 %v1019, %v1227
      %v1229 = vpop.f32.mrf.mxu0
      %1230 = vmatprep.mubr.bf16.mxu0 0
      %1231 = vmatmul.mubr.bf16.gmra.mxu0 %v626
      %v1232 = vpop.f32.mrf.mxu0
      %v1233 = vadd.f32 %v1024, %v1232
      %v1234 = vpop.f32.mrf.mxu0
      %v1235 = vpop.f32.mrf.mxu0
      %v1236 = vadd.f32 %v1027, %v1235
      %v1237 = vpop.f32.mrf.mxu0
      %1238 = vdwg.mxu0
      %vm1239 = vcmask 1045504
      %v1240 = vrot.slane %v577, 2
      %v1241 = vrot.slane %v478, 2
      %v1242 = vsel %vm1239, %v1240, %v1241
      %v1243 = vrot.slane %v594, 2
      %v1244 = vsel %vm1239, %v1241, %v1243
      %v1245 = vrot.slane %v578, 2
      %v1246 = vrot.slane %v481, 2
      %v1247 = vsel %vm1239, %v1245, %v1246
      %v1248 = vrot.slane %v595, 2
      %v1249 = vsel %vm1239, %v1246, %v1248
      %v1250 = vrot.slane %v579, 2
      %v1251 = vrot.slane %v484, 2
      %v1252 = vsel %vm1239, %v1250, %v1251
      %v1253 = vrot.slane %v596, 2
      %v1254 = vsel %vm1239, %v1251, %v1253
      %v1255 = vrot.slane %v580, 2
      %v1256 = vrot.slane %v487, 2
      %v1257 = vsel %vm1239, %v1255, %v1256
      %v1258 = vrot.slane %v597, 2
      %v1259 = vsel %vm1239, %v1256, %v1258
      %v1260 = vrot.slane %v581, 2
      %v1261 = vrot.slane %v490, 2
      %v1262 = vsel %vm1239, %v1260, %v1261
      %v1263 = vrot.slane %v598, 2
      %v1264 = vsel %vm1239, %v1261, %v1263
      %v1265 = vrot.slane %v582, 2
      %v1266 = vrot.slane %v493, 2
      %v1267 = vsel %vm1239, %v1265, %v1266
      %v1268 = vrot.slane %v599, 2
      %v1269 = vsel %vm1239, %v1266, %v1268
      %v1270 = vrot.slane %v583, 2
      %v1271 = vrot.slane %v496, 2
      %v1272 = vsel %vm1239, %v1270, %v1271
      %v1273 = vrot.slane %v600, 2
      %v1274 = vsel %vm1239, %v1271, %v1273
      %v1275 = vrot.slane %v584, 2
      %v1276 = vrot.slane %v499, 2
      %v1277 = vsel %vm1239, %v1275, %v1276
      %v1278 = vrot.slane %v601, 2
      %v1279 = vsel %vm1239, %v1276, %v1278
      %v1280 = vrot.slane %v585, 2
      %v1281 = vrot.slane %v502, 2
      %v1282 = vsel %vm1239, %v1280, %v1281
      %v1283 = vrot.slane %v602, 2
      %v1284 = vsel %vm1239, %v1281, %v1283
      %v1285 = vrot.slane %v586, 2
      %v1286 = vrot.slane %v505, 2
      %v1287 = vsel %vm1239, %v1285, %v1286
      %v1288 = vrot.slane %v603, 2
      %v1289 = vsel %vm1239, %v1286, %v1288
      %v1290 = vrot.slane %v587, 2
      %v1291 = vrot.slane %v508, 2
      %v1292 = vsel %vm1239, %v1290, %v1291
      %v1293 = vrot.slane %v604, 2
      %v1294 = vsel %vm1239, %v1291, %v1293
      %v1295 = vrot.slane %v588, 2
      %v1296 = vrot.slane %v511, 2
      %v1297 = vsel %vm1239, %v1295, %v1296
      %v1298 = vrot.slane %v605, 2
      %v1299 = vsel %vm1239, %v1296, %v1298
      %v1300 = vrot.slane %v589, 2
      %v1301 = vrot.slane %v514, 2
      %v1302 = vsel %vm1239, %v1300, %v1301
      %v1303 = vrot.slane %v606, 2
      %v1304 = vsel %vm1239, %v1301, %v1303
      %v1305 = vrot.slane %v590, 2
      %v1306 = vrot.slane %v517, 2
      %v1307 = vsel %vm1239, %v1305, %v1306
      %v1308 = vrot.slane %v607, 2
      %v1309 = vsel %vm1239, %v1306, %v1308
      %v1310 = vrot.slane %v591, 2
      %v1311 = vrot.slane %v520, 2
      %v1312 = vsel %vm1239, %v1310, %v1311
      %v1313 = vrot.slane %v608, 2
      %v1314 = vsel %vm1239, %v1311, %v1313
      %v1315 = vrot.slane %v592, 2
      %v1316 = vrot.slane %v523, 2
      %v1317 = vsel %vm1239, %v1315, %v1316
      %v1318 = vrot.slane %v609, 2
      %v1319 = vsel %vm1239, %v1316, %v1318
      %v1352 = vpack.c.bf16 %v1244, %v1242
      %v1353 = vpack.c.bf16 %v1249, %v1247
      %v1354 = vpack.c.bf16 %v1254, %v1252
      %v1355 = vpack.c.bf16 %v1259, %v1257
      %v1356 = vpack.c.bf16 %v1264, %v1262
      %v1357 = vpack.c.bf16 %v1269, %v1267
      %v1358 = vpack.c.bf16 %v1274, %v1272
      %v1359 = vpack.c.bf16 %v1279, %v1277
      %v1360 = vpack.c.bf16 %v1284, %v1282
      %v1361 = vpack.c.bf16 %v1289, %v1287
      %v1362 = vpack.c.bf16 %v1294, %v1292
      %v1363 = vpack.c.bf16 %v1299, %v1297
      %v1364 = vpack.c.bf16 %v1304, %v1302
      %v1365 = vpack.c.bf16 %v1309, %v1307
      %v1366 = vpack.c.bf16 %v1314, %v1312
      %v1367 = vpack.c.bf16 %v1319, %v1317
      %s1368 = scalar_lea.vmem %s3, 128
      %v1369 = vld [vmem:[%s1368] sm:$0xf]
      %v1370 = vld [vmem:[%s1368 + $0x4] sm:$0xf]
      %v1371 = vld [vmem:[%s1368 + $0x8] sm:$0xf]
      %v1372 = vld [vmem:[%s1368 + $0xc] sm:$0xf]
      %v1373 = vld [vmem:[%s1368 + $0x10] sm:$0xf]
      %v1374 = vld [vmem:[%s1368 + $0x14] sm:$0xf]
      %v1375 = vld [vmem:[%s1368 + $0x18] sm:$0xf]
      %v1376 = vld [vmem:[%s1368 + $0x1c] sm:$0xf]
      %v1377 = vld [vmem:[%s1368 + $0x20] sm:$0xf]
      %v1378 = vld [vmem:[%s1368 + $0x24] sm:$0xf]
      %v1379 = vld [vmem:[%s1368 + $0x28] sm:$0xf]
      %v1380 = vld [vmem:[%s1368 + $0x2c] sm:$0xf]
      %v1381 = vld [vmem:[%s1368 + $0x30] sm:$0xf]
      %v1382 = vld [vmem:[%s1368 + $0x34] sm:$0xf]
      %v1383 = vld [vmem:[%s1368 + $0x38] sm:$0xf]
      %v1384 = vld [vmem:[%s1368 + $0x3c] sm:$0xf]
      %v1401 = vunpack.c.l.b16 %v1369
      %v1402 = vunpack.c.l.b16 %v1370
      %v1403 = vunpack.c.l.b16 %v1371
      %v1404 = vunpack.c.l.b16 %v1372
      %v1405 = vunpack.c.l.b16 %v1373
      %v1406 = vunpack.c.l.b16 %v1374
      %v1407 = vunpack.c.l.b16 %v1375
      %v1408 = vunpack.c.l.b16 %v1376
      %v1409 = vunpack.c.l.b16 %v1377
      %v1410 = vunpack.c.l.b16 %v1378
      %v1411 = vunpack.c.l.b16 %v1379
      %v1412 = vunpack.c.l.b16 %v1380
      %v1413 = vunpack.c.l.b16 %v1381
      %v1414 = vunpack.c.l.b16 %v1382
      %v1415 = vunpack.c.l.b16 %v1383
      %v1416 = vunpack.c.l.b16 %v1384
      %v1417 = vpack.c.b16 %v1402, %v1401
      %v1418 = vpack.c.b16 %v1404, %v1403
      %v1419 = vpack.c.b16 %v1406, %v1405
      %v1420 = vpack.c.b16 %v1408, %v1407
      %v1421 = vpack.c.b16 %v1410, %v1409
      %v1422 = vpack.c.b16 %v1412, %v1411
      %v1423 = vpack.c.b16 %v1414, %v1413
      %v1424 = vpack.c.b16 %v1416, %v1415
      %1433 = vmatprep.subr.bf16.mxu0 0
      %1434 = vmatpush1.bf16.msra.mxu0 %v1424
      %1435 = vmatprep.subr.bf16.mxu0 0
      %1436 = vmatpush1.bf16.msra.mxu0 %v1423
      %1437 = vmatprep.subr.bf16.mxu0 0
      %1438 = vmatpush1.bf16.msra.mxu0 %v1422
      %1439 = vmatprep.subr.bf16.mxu0 0
      %1440 = vmatpush1.bf16.msra.mxu0 %v1421
      %1441 = vmatprep.subr.bf16.mxu0 0
      %1442 = vmatpush1.bf16.msra.mxu0 %v1420
      %1443 = vmatprep.subr.bf16.mxu0 0
      %1444 = vmatpush1.bf16.msra.mxu0 %v1419
      %1445 = vmatprep.subr.bf16.mxu0 0
      %1446 = vmatpush1.bf16.msra.mxu0 %v1418
      %1447 = vmatprep.subr.bf16.mxu0 0
      %1448 = vmatpush1.bf16.msra.mxu0 %v1417
      %1449 = vmatprep.subr.bf16.mxu0 0
      %1450 = vmatpush2.bf16.msra.mxu0 0
      %1451 = vmatprep.subr.bf16.mxu0 0
      %1452 = vmatpush2.bf16.msra.mxu0 0
      %1453 = vmatprep.subr.bf16.mxu0 0
      %1454 = vmatpush2.bf16.msra.mxu0 0
      %1455 = vmatprep.subr.bf16.mxu0 0
      %1456 = vmatpush2.bf16.msra.mxu0 0
      %1457 = vmatprep.subr.bf16.mxu0 0
      %1458 = vmatpush2.bf16.msra.mxu0 0
      %1459 = vmatprep.subr.bf16.mxu0 0
      %1460 = vmatpush2.bf16.msra.mxu0 0
      %1461 = vmatprep.subr.bf16.mxu0 0
      %1462 = vmatpush2.bf16.msra.mxu0 0
      %1463 = vmatprep.subr.bf16.mxu0 0
      %1464 = vmatpush2.bf16.msra.mxu0 0
      %1465 = vmatprep.mubr.bf16.mxu0 0
      %1466 = vmatmul.mubr.bf16.gmra.mxu0 %v1352
      %v1467 = vpop.f32.mrf.mxu0
      %v1468 = vadd.f32 0.0, %v1467
      %v1469 = vpop.f32.mrf.mxu0
      %v1470 = vpop.f32.mrf.mxu0
      %v1471 = vadd.f32 0.0, %v1470
      %v1472 = vpop.f32.mrf.mxu0
      %1473 = vmatprep.mubr.bf16.mxu0 0
      %1474 = vmatmul.mubr.bf16.gmra.mxu0 %v1353
      %v1475 = vpop.f32.mrf.mxu0
      %v1476 = vadd.f32 0.0, %v1475
      %v1477 = vpop.f32.mrf.mxu0
      %v1478 = vpop.f32.mrf.mxu0
      %v1479 = vadd.f32 0.0, %v1478
      %v1480 = vpop.f32.mrf.mxu0
      %1481 = vmatprep.mubr.bf16.mxu0 0
      %1482 = vmatmul.mubr.bf16.gmra.mxu0 %v1354
      %v1483 = vpop.f32.mrf.mxu0
      %v1484 = vadd.f32 0.0, %v1483
      %v1485 = vpop.f32.mrf.mxu0
      %v1486 = vpop.f32.mrf.mxu0
      %v1487 = vadd.f32 0.0, %v1486
      %v1488 = vpop.f32.mrf.mxu0
      %1489 = vmatprep.mubr.bf16.mxu0 0
      %1490 = vmatmul.mubr.bf16.gmra.mxu0 %v1355
      %v1491 = vpop.f32.mrf.mxu0
      %v1492 = vadd.f32 0.0, %v1491
      %v1493 = vpop.f32.mrf.mxu0
      %v1494 = vpop.f32.mrf.mxu0
      %v1495 = vadd.f32 0.0, %v1494
      %v1496 = vpop.f32.mrf.mxu0
      %1497 = vmatprep.mubr.bf16.mxu0 0
      %1498 = vmatmul.mubr.bf16.gmra.mxu0 %v1356
      %v1499 = vpop.f32.mrf.mxu0
      %v1500 = vadd.f32 0.0, %v1499
      %v1501 = vpop.f32.mrf.mxu0
      %v1502 = vpop.f32.mrf.mxu0
      %v1503 = vadd.f32 0.0, %v1502
      %v1504 = vpop.f32.mrf.mxu0
      %1505 = vmatprep.mubr.bf16.mxu0 0
      %1506 = vmatmul.mubr.bf16.gmra.mxu0 %v1357
      %v1507 = vpop.f32.mrf.mxu0
      %v1508 = vadd.f32 0.0, %v1507
      %v1509 = vpop.f32.mrf.mxu0
      %v1510 = vpop.f32.mrf.mxu0
      %v1511 = vadd.f32 0.0, %v1510
      %v1512 = vpop.f32.mrf.mxu0
      %1513 = vmatprep.mubr.bf16.mxu0 0
      %1514 = vmatmul.mubr.bf16.gmra.mxu0 %v1358
      %v1515 = vpop.f32.mrf.mxu0
      %v1516 = vadd.f32 0.0, %v1515
      %v1517 = vpop.f32.mrf.mxu0
      %v1518 = vpop.f32.mrf.mxu0
      %v1519 = vadd.f32 0.0, %v1518
      %v1520 = vpop.f32.mrf.mxu0
      %1521 = vmatprep.mubr.bf16.mxu0 0
      %1522 = vmatmul.mubr.bf16.gmra.mxu0 %v1359
      %v1523 = vpop.f32.mrf.mxu0
      %v1524 = vadd.f32 0.0, %v1523
      %v1525 = vpop.f32.mrf.mxu0
      %v1526 = vpop.f32.mrf.mxu0
      %v1527 = vadd.f32 0.0, %v1526
      %v1528 = vpop.f32.mrf.mxu0
      %1529 = vmatprep.mubr.bf16.mxu0 0
      %1530 = vmatmul.mubr.bf16.gmra.mxu0 %v1360
      %v1531 = vpop.f32.mrf.mxu0
      %v1532 = vadd.f32 0.0, %v1531
      %v1533 = vpop.f32.mrf.mxu0
      %v1534 = vpop.f32.mrf.mxu0
      %v1535 = vadd.f32 0.0, %v1534
      %v1536 = vpop.f32.mrf.mxu0
      %1537 = vmatprep.mubr.bf16.mxu0 0
      %1538 = vmatmul.mubr.bf16.gmra.mxu0 %v1361
      %v1539 = vpop.f32.mrf.mxu0
      %v1540 = vadd.f32 0.0, %v1539
      %v1541 = vpop.f32.mrf.mxu0
      %v1542 = vpop.f32.mrf.mxu0
      %v1543 = vadd.f32 0.0, %v1542
      %v1544 = vpop.f32.mrf.mxu0
      %1545 = vmatprep.mubr.bf16.mxu0 0
      %1546 = vmatmul.mubr.bf16.gmra.mxu0 %v1362
      %v1547 = vpop.f32.mrf.mxu0
      %v1548 = vadd.f32 0.0, %v1547
      %v1549 = vpop.f32.mrf.mxu0
      %v1550 = vpop.f32.mrf.mxu0
      %v1551 = vadd.f32 0.0, %v1550
      %v1552 = vpop.f32.mrf.mxu0
      %1553 = vmatprep.mubr.bf16.mxu0 0
      %1554 = vmatmul.mubr.bf16.gmra.mxu0 %v1363
      %v1555 = vpop.f32.mrf.mxu0
      %v1556 = vadd.f32 0.0, %v1555
      %v1557 = vpop.f32.mrf.mxu0
      %v1558 = vpop.f32.mrf.mxu0
      %v1559 = vadd.f32 0.0, %v1558
      %v1560 = vpop.f32.mrf.mxu0
      %1561 = vmatprep.mubr.bf16.mxu0 0
      %1562 = vmatmul.mubr.bf16.gmra.mxu0 %v1364
      %v1563 = vpop.f32.mrf.mxu0
      %v1564 = vadd.f32 0.0, %v1563
      %v1565 = vpop.f32.mrf.mxu0
      %v1566 = vpop.f32.mrf.mxu0
      %v1567 = vadd.f32 0.0, %v1566
      %v1568 = vpop.f32.mrf.mxu0
      %1569 = vmatprep.mubr.bf16.mxu0 0
      %1570 = vmatmul.mubr.bf16.gmra.mxu0 %v1365
      %v1571 = vpop.f32.mrf.mxu0
      %v1572 = vadd.f32 0.0, %v1571
      %v1573 = vpop.f32.mrf.mxu0
      %v1574 = vpop.f32.mrf.mxu0
      %v1575 = vadd.f32 0.0, %v1574
      %v1576 = vpop.f32.mrf.mxu0
      %1577 = vmatprep.mubr.bf16.mxu0 0
      %1578 = vmatmul.mubr.bf16.gmra.mxu0 %v1366
      %v1579 = vpop.f32.mrf.mxu0
      %v1580 = vadd.f32 0.0, %v1579
      %v1581 = vpop.f32.mrf.mxu0
      %v1582 = vpop.f32.mrf.mxu0
      %v1583 = vadd.f32 0.0, %v1582
      %v1584 = vpop.f32.mrf.mxu0
      %1585 = vmatprep.mubr.bf16.mxu0 0
      %1586 = vmatmul.mubr.bf16.gmra.mxu0 %v1367
      %v1587 = vpop.f32.mrf.mxu0
      %v1588 = vadd.f32 0.0, %v1587
      %v1589 = vpop.f32.mrf.mxu0
      %v1590 = vpop.f32.mrf.mxu0
      %v1591 = vadd.f32 0.0, %v1590
      %v1592 = vpop.f32.mrf.mxu0
      %1593 = vdwg.mxu0
      %v1594 = vadd.f32 %v1113, %v1468
      %v1595 = vadd.f32 %v1116, %v1471
      %v1596 = vadd.f32 %v1121, %v1476
      %v1597 = vadd.f32 %v1124, %v1479
      %v1598 = vadd.f32 %v1129, %v1484
      %v1599 = vadd.f32 %v1132, %v1487
      %v1600 = vadd.f32 %v1137, %v1492
      %v1601 = vadd.f32 %v1140, %v1495
      %v1602 = vadd.f32 %v1145, %v1500
      %v1603 = vadd.f32 %v1148, %v1503
      %v1604 = vadd.f32 %v1153, %v1508
      %v1605 = vadd.f32 %v1156, %v1511
      %v1606 = vadd.f32 %v1161, %v1516
      %v1607 = vadd.f32 %v1164, %v1519
      %v1608 = vadd.f32 %v1169, %v1524
      %v1609 = vadd.f32 %v1172, %v1527
      %v1610 = vadd.f32 %v1177, %v1532
      %v1611 = vadd.f32 %v1180, %v1535
      %v1612 = vadd.f32 %v1185, %v1540
      %v1613 = vadd.f32 %v1188, %v1543
      %v1614 = vadd.f32 %v1193, %v1548
      %v1615 = vadd.f32 %v1196, %v1551
      %v1616 = vadd.f32 %v1201, %v1556
      %v1617 = vadd.f32 %v1204, %v1559
      %v1618 = vadd.f32 %v1209, %v1564
      %v1619 = vadd.f32 %v1212, %v1567
      %v1620 = vadd.f32 %v1217, %v1572
      %v1621 = vadd.f32 %v1220, %v1575
      %v1622 = vadd.f32 %v1225, %v1580
      %v1623 = vadd.f32 %v1228, %v1583
      %v1624 = vadd.f32 %v1233, %v1588
      %v1625 = vadd.f32 %v1236, %v1591
      %v1626 = vpack.c.bf16 %v526, %v593
      %s1627 = scalar_lea.vmem %s3, 192
      %v1628 = vld [vmem:[%s1627] sm:$0xf]
      %v1629 = vld [vmem:[%s1627 + $0x4] sm:$0xf]
      %v1630 = vld [vmem:[%s1627 + $0x8] sm:$0xf]
      %v1631 = vld [vmem:[%s1627 + $0xc] sm:$0xf]
      %v1632 = vld [vmem:[%s1627 + $0x10] sm:$0xf]
      %v1633 = vld [vmem:[%s1627 + $0x14] sm:$0xf]
      %v1634 = vld [vmem:[%s1627 + $0x18] sm:$0xf]
      %v1635 = vld [vmem:[%s1627 + $0x1c] sm:$0xf]
      %v1636 = vld [vmem:[%s1627 + $0x20] sm:$0xf]
      %v1637 = vld [vmem:[%s1627 + $0x24] sm:$0xf]
      %v1638 = vld [vmem:[%s1627 + $0x28] sm:$0xf]
      %v1639 = vld [vmem:[%s1627 + $0x2c] sm:$0xf]
      %v1640 = vld [vmem:[%s1627 + $0x30] sm:$0xf]
      %v1641 = vld [vmem:[%s1627 + $0x34] sm:$0xf]
      %v1642 = vld [vmem:[%s1627 + $0x38] sm:$0xf]
      %v1643 = vld [vmem:[%s1627 + $0x3c] sm:$0xf]
      %v1660 = vunpack.c.l.b16 %v1628
      %v1661 = vunpack.c.l.b16 %v1629
      %v1662 = vunpack.c.l.b16 %v1630
      %v1663 = vunpack.c.l.b16 %v1631
      %v1664 = vunpack.c.l.b16 %v1632
      %v1665 = vunpack.c.l.b16 %v1633
      %v1666 = vunpack.c.l.b16 %v1634
      %v1667 = vunpack.c.l.b16 %v1635
      %v1668 = vunpack.c.l.b16 %v1636
      %v1669 = vunpack.c.l.b16 %v1637
      %v1670 = vunpack.c.l.b16 %v1638
      %v1671 = vunpack.c.l.b16 %v1639
      %v1672 = vunpack.c.l.b16 %v1640
      %v1673 = vunpack.c.l.b16 %v1641
      %v1674 = vunpack.c.l.b16 %v1642
      %v1675 = vunpack.c.l.b16 %v1643
      %v1676 = vpack.c.b16 %v1661, %v1660
      %v1677 = vpack.c.b16 %v1663, %v1662
      %v1678 = vpack.c.b16 %v1665, %v1664
      %v1679 = vpack.c.b16 %v1667, %v1666
      %v1680 = vpack.c.b16 %v1669, %v1668
      %v1681 = vpack.c.b16 %v1671, %v1670
      %v1682 = vpack.c.b16 %v1673, %v1672
      %v1683 = vpack.c.b16 %v1675, %v1674
      %1692 = vmatprep.subr.bf16.mxu0 0
      %1693 = vmatpush1.bf16.msra.mxu0 %v1683
      %1694 = vmatprep.subr.bf16.mxu0 0
      %1695 = vmatpush1.bf16.msra.mxu0 %v1682
      %1696 = vmatprep.subr.bf16.mxu0 0
      %1697 = vmatpush1.bf16.msra.mxu0 %v1681
      %1698 = vmatprep.subr.bf16.mxu0 0
      %1699 = vmatpush1.bf16.msra.mxu0 %v1680
      %1700 = vmatprep.subr.bf16.mxu0 0
      %1701 = vmatpush1.bf16.msra.mxu0 %v1679
      %1702 = vmatprep.subr.bf16.mxu0 0
      %1703 = vmatpush1.bf16.msra.mxu0 %v1678
      %1704 = vmatprep.subr.bf16.mxu0 0
      %1705 = vmatpush1.bf16.msra.mxu0 %v1677
      %1706 = vmatprep.subr.bf16.mxu0 0
      %1707 = vmatpush1.bf16.msra.mxu0 %v1676
      %1708 = vmatprep.subr.bf16.mxu0 0
      %1709 = vmatpush2.bf16.msra.mxu0 0
      %1710 = vmatprep.subr.bf16.mxu0 0
      %1711 = vmatpush2.bf16.msra.mxu0 0
      %1712 = vmatprep.subr.bf16.mxu0 0
      %1713 = vmatpush2.bf16.msra.mxu0 0
      %1714 = vmatprep.subr.bf16.mxu0 0
      %1715 = vmatpush2.bf16.msra.mxu0 0
      %1716 = vmatprep.subr.bf16.mxu0 0
      %1717 = vmatpush2.bf16.msra.mxu0 0
      %1718 = vmatprep.subr.bf16.mxu0 0
      %1719 = vmatpush2.bf16.msra.mxu0 0
      %1720 = vmatprep.subr.bf16.mxu0 0
      %1721 = vmatpush2.bf16.msra.mxu0 0
      %1722 = vmatprep.subr.bf16.mxu0 0
      %1723 = vmatpush2.bf16.msra.mxu0 0
      %1724 = vmatprep.mubr.bf16.mxu0 0
      %1725 = vmatmul.mubr.bf16.gmra.mxu0 %v612
      %v1726 = vpop.f32.mrf.mxu0
      %v1727 = vadd.f32 0.0, %v1726
      %v1728 = vpop.f32.mrf.mxu0
      %v1729 = vpop.f32.mrf.mxu0
      %v1730 = vadd.f32 0.0, %v1729
      %v1731 = vpop.f32.mrf.mxu0
      %1732 = vmatprep.mubr.bf16.mxu0 0
      %1733 = vmatmul.mubr.bf16.gmra.mxu0 %v613
      %v1734 = vpop.f32.mrf.mxu0
      %v1735 = vadd.f32 0.0, %v1734
      %v1736 = vpop.f32.mrf.mxu0
      %v1737 = vpop.f32.mrf.mxu0
      %v1738 = vadd.f32 0.0, %v1737
      %v1739 = vpop.f32.mrf.mxu0
      %1740 = vmatprep.mubr.bf16.mxu0 0
      %1741 = vmatmul.mubr.bf16.gmra.mxu0 %v614
      %v1742 = vpop.f32.mrf.mxu0
      %v1743 = vadd.f32 0.0, %v1742
      %v1744 = vpop.f32.mrf.mxu0
      %v1745 = vpop.f32.mrf.mxu0
      %v1746 = vadd.f32 0.0, %v1745
      %v1747 = vpop.f32.mrf.mxu0
      %1748 = vmatprep.mubr.bf16.mxu0 0
      %1749 = vmatmul.mubr.bf16.gmra.mxu0 %v615
      %v1750 = vpop.f32.mrf.mxu0
      %v1751 = vadd.f32 0.0, %v1750
      %v1752 = vpop.f32.mrf.mxu0
      %v1753 = vpop.f32.mrf.mxu0
      %v1754 = vadd.f32 0.0, %v1753
      %v1755 = vpop.f32.mrf.mxu0
      %1756 = vmatprep.mubr.bf16.mxu0 0
      %1757 = vmatmul.mubr.bf16.gmra.mxu0 %v616
      %v1758 = vpop.f32.mrf.mxu0
      %v1759 = vadd.f32 0.0, %v1758
      %v1760 = vpop.f32.mrf.mxu0
      %v1761 = vpop.f32.mrf.mxu0
      %v1762 = vadd.f32 0.0, %v1761
      %v1763 = vpop.f32.mrf.mxu0
      %1764 = vmatprep.mubr.bf16.mxu0 0
      %1765 = vmatmul.mubr.bf16.gmra.mxu0 %v617
      %v1766 = vpop.f32.mrf.mxu0
      %v1767 = vadd.f32 0.0, %v1766
      %v1768 = vpop.f32.mrf.mxu0
      %v1769 = vpop.f32.mrf.mxu0
      %v1770 = vadd.f32 0.0, %v1769
      %v1771 = vpop.f32.mrf.mxu0
      %1772 = vmatprep.mubr.bf16.mxu0 0
      %1773 = vmatmul.mubr.bf16.gmra.mxu0 %v618
      %v1774 = vpop.f32.mrf.mxu0
      %v1775 = vadd.f32 0.0, %v1774
      %v1776 = vpop.f32.mrf.mxu0
      %v1777 = vpop.f32.mrf.mxu0
      %v1778 = vadd.f32 0.0, %v1777
      %v1779 = vpop.f32.mrf.mxu0
      %1780 = vmatprep.mubr.bf16.mxu0 0
      %1781 = vmatmul.mubr.bf16.gmra.mxu0 %v619
      %v1782 = vpop.f32.mrf.mxu0
      %v1783 = vadd.f32 0.0, %v1782
      %v1784 = vpop.f32.mrf.mxu0
      %v1785 = vpop.f32.mrf.mxu0
      %v1786 = vadd.f32 0.0, %v1785
      %v1787 = vpop.f32.mrf.mxu0
      %1788 = vmatprep.mubr.bf16.mxu0 0
      %1789 = vmatmul.mubr.bf16.gmra.mxu0 %v620
      %v1790 = vpop.f32.mrf.mxu0
      %v1791 = vadd.f32 0.0, %v1790
      %v1792 = vpop.f32.mrf.mxu0
      %v1793 = vpop.f32.mrf.mxu0
      %v1794 = vadd.f32 0.0, %v1793
      %v1795 = vpop.f32.mrf.mxu0
      %1796 = vmatprep.mubr.bf16.mxu0 0
      %1797 = vmatmul.mubr.bf16.gmra.mxu0 %v621
      %v1798 = vpop.f32.mrf.mxu0
      %v1799 = vadd.f32 0.0, %v1798
      %v1800 = vpop.f32.mrf.mxu0
      %v1801 = vpop.f32.mrf.mxu0
      %v1802 = vadd.f32 0.0, %v1801
      %v1803 = vpop.f32.mrf.mxu0
      %1804 = vmatprep.mubr.bf16.mxu0 0
      %1805 = vmatmul.mubr.bf16.gmra.mxu0 %v622
      %v1806 = vpop.f32.mrf.mxu0
      %v1807 = vadd.f32 0.0, %v1806
      %v1808 = vpop.f32.mrf.mxu0
      %v1809 = vpop.f32.mrf.mxu0
      %v1810 = vadd.f32 0.0, %v1809
      %v1811 = vpop.f32.mrf.mxu0
      %1812 = vmatprep.mubr.bf16.mxu0 0
      %1813 = vmatmul.mubr.bf16.gmra.mxu0 %v623
      %v1814 = vpop.f32.mrf.mxu0
      %v1815 = vadd.f32 0.0, %v1814
      %v1816 = vpop.f32.mrf.mxu0
      %v1817 = vpop.f32.mrf.mxu0
      %v1818 = vadd.f32 0.0, %v1817
      %v1819 = vpop.f32.mrf.mxu0
      %1820 = vmatprep.mubr.bf16.mxu0 0
      %1821 = vmatmul.mubr.bf16.gmra.mxu0 %v624
      %v1822 = vpop.f32.mrf.mxu0
      %v1823 = vadd.f32 0.0, %v1822
      %v1824 = vpop.f32.mrf.mxu0
      %v1825 = vpop.f32.mrf.mxu0
      %v1826 = vadd.f32 0.0, %v1825
      %v1827 = vpop.f32.mrf.mxu0
      %1828 = vmatprep.mubr.bf16.mxu0 0
      %1829 = vmatmul.mubr.bf16.gmra.mxu0 %v625
      %v1830 = vpop.f32.mrf.mxu0
      %v1831 = vadd.f32 0.0, %v1830
      %v1832 = vpop.f32.mrf.mxu0
      %v1833 = vpop.f32.mrf.mxu0
      %v1834 = vadd.f32 0.0, %v1833
      %v1835 = vpop.f32.mrf.mxu0
      %1836 = vmatprep.mubr.bf16.mxu0 0
      %1837 = vmatmul.mubr.bf16.gmra.mxu0 %v626
      %v1838 = vpop.f32.mrf.mxu0
      %v1839 = vadd.f32 0.0, %v1838
      %v1840 = vpop.f32.mrf.mxu0
      %v1841 = vpop.f32.mrf.mxu0
      %v1842 = vadd.f32 0.0, %v1841
      %v1843 = vpop.f32.mrf.mxu0
      %1844 = vmatprep.mubr.bf16.mxu0 0
      %1845 = vmatmul.mubr.bf16.gmra.mxu0 %v1626
      %v1846 = vpop.f32.mrf.mxu0
      %v1847 = vadd.f32 0.0, %v1846
      %v1848 = vpop.f32.mrf.mxu0
      %v1849 = vpop.f32.mrf.mxu0
      %v1850 = vadd.f32 0.0, %v1849
      %v1851 = vpop.f32.mrf.mxu0
      %1852 = vdwg.mxu0
      %v1853 = vadd.f32 %v1594, %v1727
      %v1854 = vadd.f32 %v1595, %v1730
      %v1855 = vadd.f32 %v1596, %v1735
      %v1856 = vadd.f32 %v1597, %v1738
      %v1857 = vadd.f32 %v1598, %v1743
      %v1858 = vadd.f32 %v1599, %v1746
      %v1859 = vadd.f32 %v1600, %v1751
      %v1860 = vadd.f32 %v1601, %v1754
      %v1861 = vadd.f32 %v1602, %v1759
      %v1862 = vadd.f32 %v1603, %v1762
      %v1863 = vadd.f32 %v1604, %v1767
      %v1864 = vadd.f32 %v1605, %v1770
      %v1865 = vadd.f32 %v1606, %v1775
      %v1866 = vadd.f32 %v1607, %v1778
      %v1867 = vadd.f32 %v1608, %v1783
      %v1868 = vadd.f32 %v1609, %v1786
      %v1869 = vadd.f32 %v1610, %v1791
      %v1870 = vadd.f32 %v1611, %v1794
      %v1871 = vadd.f32 %v1612, %v1799
      %v1872 = vadd.f32 %v1613, %v1802
      %v1873 = vadd.f32 %v1614, %v1807
      %v1874 = vadd.f32 %v1615, %v1810
      %v1875 = vadd.f32 %v1616, %v1815
      %v1876 = vadd.f32 %v1617, %v1818
      %v1877 = vadd.f32 %v1618, %v1823
      %v1878 = vadd.f32 %v1619, %v1826
      %v1879 = vadd.f32 %v1620, %v1831
      %v1880 = vadd.f32 %v1621, %v1834
      %v1881 = vadd.f32 %v1622, %v1839
      %v1882 = vadd.f32 %v1623, %v1842
      %v1883 = vadd.f32 %v1624, %v1847
      %v1884 = vadd.f32 %v1625, %v1850
      %v1887 = vrot.slane %v593, 1
      %v1888 = vrot.slane %v526, 1
      %v1889 = vsel %vm675, %v1887, %v1888
      %v1890 = vrot.slane %v610, 1
      %v1891 = vsel %vm675, %v1888, %v1890
      %v1894 = vpack.c.bf16 %v1891, %v1889
      %s1895 = scalar_lea.vmem %s3, 256
      %v1896 = vld [vmem:[%s1895] sm:$0xf]
      %v1897 = vld [vmem:[%s1895 + $0x4] sm:$0xf]
      %v1898 = vld [vmem:[%s1895 + $0x8] sm:$0xf]
      %v1899 = vld [vmem:[%s1895 + $0xc] sm:$0xf]
      %v1900 = vld [vmem:[%s1895 + $0x10] sm:$0xf]
      %v1901 = vld [vmem:[%s1895 + $0x14] sm:$0xf]
      %v1902 = vld [vmem:[%s1895 + $0x18] sm:$0xf]
      %v1903 = vld [vmem:[%s1895 + $0x1c] sm:$0xf]
      %v1904 = vld [vmem:[%s1895 + $0x20] sm:$0xf]
      %v1905 = vld [vmem:[%s1895 + $0x24] sm:$0xf]
      %v1906 = vld [vmem:[%s1895 + $0x28] sm:$0xf]
      %v1907 = vld [vmem:[%s1895 + $0x2c] sm:$0xf]
      %v1908 = vld [vmem:[%s1895 + $0x30] sm:$0xf]
      %v1909 = vld [vmem:[%s1895 + $0x34] sm:$0xf]
      %v1910 = vld [vmem:[%s1895 + $0x38] sm:$0xf]
      %v1911 = vld [vmem:[%s1895 + $0x3c] sm:$0xf]
      %v1928 = vunpack.c.l.b16 %v1896
      %v1929 = vunpack.c.l.b16 %v1897
      %v1930 = vunpack.c.l.b16 %v1898
      %v1931 = vunpack.c.l.b16 %v1899
      %v1932 = vunpack.c.l.b16 %v1900
      %v1933 = vunpack.c.l.b16 %v1901
      %v1934 = vunpack.c.l.b16 %v1902
      %v1935 = vunpack.c.l.b16 %v1903
      %v1936 = vunpack.c.l.b16 %v1904
      %v1937 = vunpack.c.l.b16 %v1905
      %v1938 = vunpack.c.l.b16 %v1906
      %v1939 = vunpack.c.l.b16 %v1907
      %v1940 = vunpack.c.l.b16 %v1908
      %v1941 = vunpack.c.l.b16 %v1909
      %v1942 = vunpack.c.l.b16 %v1910
      %v1943 = vunpack.c.l.b16 %v1911
      %v1944 = vpack.c.b16 %v1929, %v1928
      %v1945 = vpack.c.b16 %v1931, %v1930
      %v1946 = vpack.c.b16 %v1933, %v1932
      %v1947 = vpack.c.b16 %v1935, %v1934
      %v1948 = vpack.c.b16 %v1937, %v1936
      %v1949 = vpack.c.b16 %v1939, %v1938
      %v1950 = vpack.c.b16 %v1941, %v1940
      %v1951 = vpack.c.b16 %v1943, %v1942
      %1960 = vmatprep.subr.bf16.mxu0 0
      %1961 = vmatpush1.bf16.msra.mxu0 %v1951
      %1962 = vmatprep.subr.bf16.mxu0 0
      %1963 = vmatpush1.bf16.msra.mxu0 %v1950
      %1964 = vmatprep.subr.bf16.mxu0 0
      %1965 = vmatpush1.bf16.msra.mxu0 %v1949
      %1966 = vmatprep.subr.bf16.mxu0 0
      %1967 = vmatpush1.bf16.msra.mxu0 %v1948
      %1968 = vmatprep.subr.bf16.mxu0 0
      %1969 = vmatpush1.bf16.msra.mxu0 %v1947
      %1970 = vmatprep.subr.bf16.mxu0 0
      %1971 = vmatpush1.bf16.msra.mxu0 %v1946
      %1972 = vmatprep.subr.bf16.mxu0 0
      %1973 = vmatpush1.bf16.msra.mxu0 %v1945
      %1974 = vmatprep.subr.bf16.mxu0 0
      %1975 = vmatpush1.bf16.msra.mxu0 %v1944
      %1976 = vmatprep.subr.bf16.mxu0 0
      %1977 = vmatpush2.bf16.msra.mxu0 0
      %1978 = vmatprep.subr.bf16.mxu0 0
      %1979 = vmatpush2.bf16.msra.mxu0 0
      %1980 = vmatprep.subr.bf16.mxu0 0
      %1981 = vmatpush2.bf16.msra.mxu0 0
      %1982 = vmatprep.subr.bf16.mxu0 0
      %1983 = vmatpush2.bf16.msra.mxu0 0
      %1984 = vmatprep.subr.bf16.mxu0 0
      %1985 = vmatpush2.bf16.msra.mxu0 0
      %1986 = vmatprep.subr.bf16.mxu0 0
      %1987 = vmatpush2.bf16.msra.mxu0 0
      %1988 = vmatprep.subr.bf16.mxu0 0
      %1989 = vmatpush2.bf16.msra.mxu0 0
      %1990 = vmatprep.subr.bf16.mxu0 0
      %1991 = vmatpush2.bf16.msra.mxu0 0
      %1992 = vmatprep.mubr.bf16.mxu0 0
      %1993 = vmatmul.mubr.bf16.gmra.mxu0 %v789
      %v1994 = vpop.f32.mrf.mxu0
      %v1995 = vadd.f32 0.0, %v1994
      %v1996 = vpop.f32.mrf.mxu0
      %v1997 = vpop.f32.mrf.mxu0
      %v1998 = vadd.f32 0.0, %v1997
      %v1999 = vpop.f32.mrf.mxu0
      %2000 = vmatprep.mubr.bf16.mxu0 0
      %2001 = vmatmul.mubr.bf16.gmra.mxu0 %v790
      %v2002 = vpop.f32.mrf.mxu0
      %v2003 = vadd.f32 0.0, %v2002
      %v2004 = vpop.f32.mrf.mxu0
      %v2005 = vpop.f32.mrf.mxu0
      %v2006 = vadd.f32 0.0, %v2005
      %v2007 = vpop.f32.mrf.mxu0
      %2008 = vmatprep.mubr.bf16.mxu0 0
      %2009 = vmatmul.mubr.bf16.gmra.mxu0 %v791
      %v2010 = vpop.f32.mrf.mxu0
      %v2011 = vadd.f32 0.0, %v2010
      %v2012 = vpop.f32.mrf.mxu0
      %v2013 = vpop.f32.mrf.mxu0
      %v2014 = vadd.f32 0.0, %v2013
      %v2015 = vpop.f32.mrf.mxu0
      %2016 = vmatprep.mubr.bf16.mxu0 0
      %2017 = vmatmul.mubr.bf16.gmra.mxu0 %v792
      %v2018 = vpop.f32.mrf.mxu0
      %v2019 = vadd.f32 0.0, %v2018
      %v2020 = vpop.f32.mrf.mxu0
      %v2021 = vpop.f32.mrf.mxu0
      %v2022 = vadd.f32 0.0, %v2021
      %v2023 = vpop.f32.mrf.mxu0
      %2024 = vmatprep.mubr.bf16.mxu0 0
      %2025 = vmatmul.mubr.bf16.gmra.mxu0 %v793
      %v2026 = vpop.f32.mrf.mxu0
      %v2027 = vadd.f32 0.0, %v2026
      %v2028 = vpop.f32.mrf.mxu0
      %v2029 = vpop.f32.mrf.mxu0
      %v2030 = vadd.f32 0.0, %v2029
      %v2031 = vpop.f32.mrf.mxu0
      %2032 = vmatprep.mubr.bf16.mxu0 0
      %2033 = vmatmul.mubr.bf16.gmra.mxu0 %v794
      %v2034 = vpop.f32.mrf.mxu0
      %v2035 = vadd.f32 0.0, %v2034
      %v2036 = vpop.f32.mrf.mxu0
      %v2037 = vpop.f32.mrf.mxu0
      %v2038 = vadd.f32 0.0, %v2037
      %v2039 = vpop.f32.mrf.mxu0
      %2040 = vmatprep.mubr.bf16.mxu0 0
      %2041 = vmatmul.mubr.bf16.gmra.mxu0 %v795
      %v2042 = vpop.f32.mrf.mxu0
      %v2043 = vadd.f32 0.0, %v2042
      %v2044 = vpop.f32.mrf.mxu0
      %v2045 = vpop.f32.mrf.mxu0
      %v2046 = vadd.f32 0.0, %v2045
      %v2047 = vpop.f32.mrf.mxu0
      %2048 = vmatprep.mubr.bf16.mxu0 0
      %2049 = vmatmul.mubr.bf16.gmra.mxu0 %v796
      %v2050 = vpop.f32.mrf.mxu0
      %v2051 = vadd.f32 0.0, %v2050
      %v2052 = vpop.f32.mrf.mxu0
      %v2053 = vpop.f32.mrf.mxu0
      %v2054 = vadd.f32 0.0, %v2053
      %v2055 = vpop.f32.mrf.mxu0
      %2056 = vmatprep.mubr.bf16.mxu0 0
      %2057 = vmatmul.mubr.bf16.gmra.mxu0 %v797
      %v2058 = vpop.f32.mrf.mxu0
      %v2059 = vadd.f32 0.0, %v2058
      %v2060 = vpop.f32.mrf.mxu0
      %v2061 = vpop.f32.mrf.mxu0
      %v2062 = vadd.f32 0.0, %v2061
      %v2063 = vpop.f32.mrf.mxu0
      %2064 = vmatprep.mubr.bf16.mxu0 0
      %2065 = vmatmul.mubr.bf16.gmra.mxu0 %v798
      %v2066 = vpop.f32.mrf.mxu0
      %v2067 = vadd.f32 0.0, %v2066
      %v2068 = vpop.f32.mrf.mxu0
      %v2069 = vpop.f32.mrf.mxu0
      %v2070 = vadd.f32 0.0, %v2069
      %v2071 = vpop.f32.mrf.mxu0
      %2072 = vmatprep.mubr.bf16.mxu0 0
      %2073 = vmatmul.mubr.bf16.gmra.mxu0 %v799
      %v2074 = vpop.f32.mrf.mxu0
      %v2075 = vadd.f32 0.0, %v2074
      %v2076 = vpop.f32.mrf.mxu0
      %v2077 = vpop.f32.mrf.mxu0
      %v2078 = vadd.f32 0.0, %v2077
      %v2079 = vpop.f32.mrf.mxu0
      %2080 = vmatprep.mubr.bf16.mxu0 0
      %2081 = vmatmul.mubr.bf16.gmra.mxu0 %v800
      %v2082 = vpop.f32.mrf.mxu0
      %v2083 = vadd.f32 0.0, %v2082
      %v2084 = vpop.f32.mrf.mxu0
      %v2085 = vpop.f32.mrf.mxu0
      %v2086 = vadd.f32 0.0, %v2085
      %v2087 = vpop.f32.mrf.mxu0
      %2088 = vmatprep.mubr.bf16.mxu0 0
      %2089 = vmatmul.mubr.bf16.gmra.mxu0 %v801
      %v2090 = vpop.f32.mrf.mxu0
      %v2091 = vadd.f32 0.0, %v2090
      %v2092 = vpop.f32.mrf.mxu0
      %v2093 = vpop.f32.mrf.mxu0
      %v2094 = vadd.f32 0.0, %v2093
      %v2095 = vpop.f32.mrf.mxu0
      %2096 = vmatprep.mubr.bf16.mxu0 0
      %2097 = vmatmul.mubr.bf16.gmra.mxu0 %v802
      %v2098 = vpop.f32.mrf.mxu0
      %v2099 = vadd.f32 0.0, %v2098
      %v2100 = vpop.f32.mrf.mxu0
      %v2101 = vpop.f32.mrf.mxu0
      %v2102 = vadd.f32 0.0, %v2101
      %v2103 = vpop.f32.mrf.mxu0
      %2104 = vmatprep.mubr.bf16.mxu0 0
      %2105 = vmatmul.mubr.bf16.gmra.mxu0 %v803
      %v2106 = vpop.f32.mrf.mxu0
      %v2107 = vadd.f32 0.0, %v2106
      %v2108 = vpop.f32.mrf.mxu0
      %v2109 = vpop.f32.mrf.mxu0
      %v2110 = vadd.f32 0.0, %v2109
      %v2111 = vpop.f32.mrf.mxu0
      %2112 = vmatprep.mubr.bf16.mxu0 0
      %2113 = vmatmul.mubr.bf16.gmra.mxu0 %v1894
      %v2114 = vpop.f32.mrf.mxu0
      %v2115 = vadd.f32 0.0, %v2114
      %v2116 = vpop.f32.mrf.mxu0
      %v2117 = vpop.f32.mrf.mxu0
      %v2118 = vadd.f32 0.0, %v2117
      %v2119 = vpop.f32.mrf.mxu0
      %2120 = vdwg.mxu0
      %v2121 = vadd.f32 %v1853, %v1995
      %v2122 = vadd.f32 %v1854, %v1998
      %v2123 = vadd.f32 %v1855, %v2003
      %v2124 = vadd.f32 %v1856, %v2006
      %v2125 = vadd.f32 %v1857, %v2011
      %v2126 = vadd.f32 %v1858, %v2014
      %v2127 = vadd.f32 %v1859, %v2019
      %v2128 = vadd.f32 %v1860, %v2022
      %v2129 = vadd.f32 %v1861, %v2027
      %v2130 = vadd.f32 %v1862, %v2030
      %v2131 = vadd.f32 %v1863, %v2035
      %v2132 = vadd.f32 %v1864, %v2038
      %v2133 = vadd.f32 %v1865, %v2043
      %v2134 = vadd.f32 %v1866, %v2046
      %v2135 = vadd.f32 %v1867, %v2051
      %v2136 = vadd.f32 %v1868, %v2054
      %v2137 = vadd.f32 %v1869, %v2059
      %v2138 = vadd.f32 %v1870, %v2062
      %v2139 = vadd.f32 %v1871, %v2067
      %v2140 = vadd.f32 %v1872, %v2070
      %v2141 = vadd.f32 %v1873, %v2075
      %v2142 = vadd.f32 %v1874, %v2078
      %v2143 = vadd.f32 %v1875, %v2083
      %v2144 = vadd.f32 %v1876, %v2086
      %v2145 = vadd.f32 %v1877, %v2091
      %v2146 = vadd.f32 %v1878, %v2094
      %v2147 = vadd.f32 %v1879, %v2099
      %v2148 = vadd.f32 %v1880, %v2102
      %v2149 = vadd.f32 %v1881, %v2107
      %v2150 = vadd.f32 %v1882, %v2110
      %v2151 = vadd.f32 %v1883, %v2115
      %v2152 = vadd.f32 %v1884, %v2118
      %v2153 = vrot.slane %v593, 2
      %v2154 = vrot.slane %v526, 2
      %v2155 = vsel %vm1239, %v2153, %v2154
      %v2156 = vrot.slane %v610, 2
      %v2157 = vsel %vm1239, %v2154, %v2156
      %v2160 = vpack.c.bf16 %v2157, %v2155
      %s2161 = scalar_lea.vmem %s3, 320
      %v2162 = vld [vmem:[%s2161] sm:$0xf]
      %v2163 = vld [vmem:[%s2161 + $0x4] sm:$0xf]
      %v2164 = vld [vmem:[%s2161 + $0x8] sm:$0xf]
      %v2165 = vld [vmem:[%s2161 + $0xc] sm:$0xf]
      %v2166 = vld [vmem:[%s2161 + $0x10] sm:$0xf]
      %v2167 = vld [vmem:[%s2161 + $0x14] sm:$0xf]
      %v2168 = vld [vmem:[%s2161 + $0x18] sm:$0xf]
      %v2169 = vld [vmem:[%s2161 + $0x1c] sm:$0xf]
      %v2170 = vld [vmem:[%s2161 + $0x20] sm:$0xf]
      %v2171 = vld [vmem:[%s2161 + $0x24] sm:$0xf]
      %v2172 = vld [vmem:[%s2161 + $0x28] sm:$0xf]
      %v2173 = vld [vmem:[%s2161 + $0x2c] sm:$0xf]
      %v2174 = vld [vmem:[%s2161 + $0x30] sm:$0xf]
      %v2175 = vld [vmem:[%s2161 + $0x34] sm:$0xf]
      %v2176 = vld [vmem:[%s2161 + $0x38] sm:$0xf]
      %v2177 = vld [vmem:[%s2161 + $0x3c] sm:$0xf]
      %v2194 = vunpack.c.l.b16 %v2162
      %v2195 = vunpack.c.l.b16 %v2163
      %v2196 = vunpack.c.l.b16 %v2164
      %v2197 = vunpack.c.l.b16 %v2165
      %v2198 = vunpack.c.l.b16 %v2166
      %v2199 = vunpack.c.l.b16 %v2167
      %v2200 = vunpack.c.l.b16 %v2168
      %v2201 = vunpack.c.l.b16 %v2169
      %v2202 = vunpack.c.l.b16 %v2170
      %v2203 = vunpack.c.l.b16 %v2171
      %v2204 = vunpack.c.l.b16 %v2172
      %v2205 = vunpack.c.l.b16 %v2173
      %v2206 = vunpack.c.l.b16 %v2174
      %v2207 = vunpack.c.l.b16 %v2175
      %v2208 = vunpack.c.l.b16 %v2176
      %v2209 = vunpack.c.l.b16 %v2177
      %v2210 = vpack.c.b16 %v2195, %v2194
      %v2211 = vpack.c.b16 %v2197, %v2196
      %v2212 = vpack.c.b16 %v2199, %v2198
      %v2213 = vpack.c.b16 %v2201, %v2200
      %v2214 = vpack.c.b16 %v2203, %v2202
      %v2215 = vpack.c.b16 %v2205, %v2204
      %v2216 = vpack.c.b16 %v2207, %v2206
      %v2217 = vpack.c.b16 %v2209, %v2208
      %2226 = vmatprep.subr.bf16.mxu0 0
      %2227 = vmatpush1.bf16.msra.mxu0 %v2217
      %2228 = vmatprep.subr.bf16.mxu0 0
      %2229 = vmatpush1.bf16.msra.mxu0 %v2216
      %2230 = vmatprep.subr.bf16.mxu0 0
      %2231 = vmatpush1.bf16.msra.mxu0 %v2215
      %2232 = vmatprep.subr.bf16.mxu0 0
      %2233 = vmatpush1.bf16.msra.mxu0 %v2214
      %2234 = vmatprep.subr.bf16.mxu0 0
      %2235 = vmatpush1.bf16.msra.mxu0 %v2213
      %2236 = vmatprep.subr.bf16.mxu0 0
      %2237 = vmatpush1.bf16.msra.mxu0 %v2212
      %2238 = vmatprep.subr.bf16.mxu0 0
      %2239 = vmatpush1.bf16.msra.mxu0 %v2211
      %2240 = vmatprep.subr.bf16.mxu0 0
      %2241 = vmatpush1.bf16.msra.mxu0 %v2210
      %2242 = vmatprep.subr.bf16.mxu0 0
      %2243 = vmatpush2.bf16.msra.mxu0 0
      %2244 = vmatprep.subr.bf16.mxu0 0
      %2245 = vmatpush2.bf16.msra.mxu0 0
      %2246 = vmatprep.subr.bf16.mxu0 0
      %2247 = vmatpush2.bf16.msra.mxu0 0
      %2248 = vmatprep.subr.bf16.mxu0 0
      %2249 = vmatpush2.bf16.msra.mxu0 0
      %2250 = vmatprep.subr.bf16.mxu0 0
      %2251 = vmatpush2.bf16.msra.mxu0 0
      %2252 = vmatprep.subr.bf16.mxu0 0
      %2253 = vmatpush2.bf16.msra.mxu0 0
      %2254 = vmatprep.subr.bf16.mxu0 0
      %2255 = vmatpush2.bf16.msra.mxu0 0
      %2256 = vmatprep.subr.bf16.mxu0 0
      %2257 = vmatpush2.bf16.msra.mxu0 0
      %2258 = vmatprep.mubr.bf16.mxu0 0
      %2259 = vmatmul.mubr.bf16.gmra.mxu0 %v1353
      %v2260 = vpop.f32.mrf.mxu0
      %v2261 = vadd.f32 0.0, %v2260
      %v2262 = vpop.f32.mrf.mxu0
      %v2263 = vpop.f32.mrf.mxu0
      %v2264 = vadd.f32 0.0, %v2263
      %v2265 = vpop.f32.mrf.mxu0
      %2266 = vmatprep.mubr.bf16.mxu0 0
      %2267 = vmatmul.mubr.bf16.gmra.mxu0 %v1354
      %v2268 = vpop.f32.mrf.mxu0
      %v2269 = vadd.f32 0.0, %v2268
      %v2270 = vpop.f32.mrf.mxu0
      %v2271 = vpop.f32.mrf.mxu0
      %v2272 = vadd.f32 0.0, %v2271
      %v2273 = vpop.f32.mrf.mxu0
      %2274 = vmatprep.mubr.bf16.mxu0 0
      %2275 = vmatmul.mubr.bf16.gmra.mxu0 %v1355
      %v2276 = vpop.f32.mrf.mxu0
      %v2277 = vadd.f32 0.0, %v2276
      %v2278 = vpop.f32.mrf.mxu0
      %v2279 = vpop.f32.mrf.mxu0
      %v2280 = vadd.f32 0.0, %v2279
      %v2281 = vpop.f32.mrf.mxu0
      %2282 = vmatprep.mubr.bf16.mxu0 0
      %2283 = vmatmul.mubr.bf16.gmra.mxu0 %v1356
      %v2284 = vpop.f32.mrf.mxu0
      %v2285 = vadd.f32 0.0, %v2284
      %v2286 = vpop.f32.mrf.mxu0
      %v2287 = vpop.f32.mrf.mxu0
      %v2288 = vadd.f32 0.0, %v2287
      %v2289 = vpop.f32.mrf.mxu0
      %2290 = vmatprep.mubr.bf16.mxu0 0
      %2291 = vmatmul.mubr.bf16.gmra.mxu0 %v1357
      %v2292 = vpop.f32.mrf.mxu0
      %v2293 = vadd.f32 0.0, %v2292
      %v2294 = vpop.f32.mrf.mxu0
      %v2295 = vpop.f32.mrf.mxu0
      %v2296 = vadd.f32 0.0, %v2295
      %v2297 = vpop.f32.mrf.mxu0
      %2298 = vmatprep.mubr.bf16.mxu0 0
      %2299 = vmatmul.mubr.bf16.gmra.mxu0 %v1358
      %v2300 = vpop.f32.mrf.mxu0
      %v2301 = vadd.f32 0.0, %v2300
      %v2302 = vpop.f32.mrf.mxu0
      %v2303 = vpop.f32.mrf.mxu0
      %v2304 = vadd.f32 0.0, %v2303
      %v2305 = vpop.f32.mrf.mxu0
      %2306 = vmatprep.mubr.bf16.mxu0 0
      %2307 = vmatmul.mubr.bf16.gmra.mxu0 %v1359
      %v2308 = vpop.f32.mrf.mxu0
      %v2309 = vadd.f32 0.0, %v2308
      %v2310 = vpop.f32.mrf.mxu0
      %v2311 = vpop.f32.mrf.mxu0
      %v2312 = vadd.f32 0.0, %v2311
      %v2313 = vpop.f32.mrf.mxu0
      %2314 = vmatprep.mubr.bf16.mxu0 0
      %2315 = vmatmul.mubr.bf16.gmra.mxu0 %v1360
      %v2316 = vpop.f32.mrf.mxu0
      %v2317 = vadd.f32 0.0, %v2316
      %v2318 = vpop.f32.mrf.mxu0
      %v2319 = vpop.f32.mrf.mxu0
      %v2320 = vadd.f32 0.0, %v2319
      %v2321 = vpop.f32.mrf.mxu0
      %2322 = vmatprep.mubr.bf16.mxu0 0
      %2323 = vmatmul.mubr.bf16.gmra.mxu0 %v1361
      %v2324 = vpop.f32.mrf.mxu0
      %v2325 = vadd.f32 0.0, %v2324
      %v2326 = vpop.f32.mrf.mxu0
      %v2327 = vpop.f32.mrf.mxu0
      %v2328 = vadd.f32 0.0, %v2327
      %v2329 = vpop.f32.mrf.mxu0
      %2330 = vmatprep.mubr.bf16.mxu0 0
      %2331 = vmatmul.mubr.bf16.gmra.mxu0 %v1362
      %v2332 = vpop.f32.mrf.mxu0
      %v2333 = vadd.f32 0.0, %v2332
      %v2334 = vpop.f32.mrf.mxu0
      %v2335 = vpop.f32.mrf.mxu0
      %v2336 = vadd.f32 0.0, %v2335
      %v2337 = vpop.f32.mrf.mxu0
      %2338 = vmatprep.mubr.bf16.mxu0 0
      %2339 = vmatmul.mubr.bf16.gmra.mxu0 %v1363
      %v2340 = vpop.f32.mrf.mxu0
      %v2341 = vadd.f32 0.0, %v2340
      %v2342 = vpop.f32.mrf.mxu0
      %v2343 = vpop.f32.mrf.mxu0
      %v2344 = vadd.f32 0.0, %v2343
      %v2345 = vpop.f32.mrf.mxu0
      %2346 = vmatprep.mubr.bf16.mxu0 0
      %2347 = vmatmul.mubr.bf16.gmra.mxu0 %v1364
      %v2348 = vpop.f32.mrf.mxu0
      %v2349 = vadd.f32 0.0, %v2348
      %v2350 = vpop.f32.mrf.mxu0
      %v2351 = vpop.f32.mrf.mxu0
      %v2352 = vadd.f32 0.0, %v2351
      %v2353 = vpop.f32.mrf.mxu0
      %2354 = vmatprep.mubr.bf16.mxu0 0
      %2355 = vmatmul.mubr.bf16.gmra.mxu0 %v1365
      %v2356 = vpop.f32.mrf.mxu0
      %v2357 = vadd.f32 0.0, %v2356
      %v2358 = vpop.f32.mrf.mxu0
      %v2359 = vpop.f32.mrf.mxu0
      %v2360 = vadd.f32 0.0, %v2359
      %v2361 = vpop.f32.mrf.mxu0
      %2362 = vmatprep.mubr.bf16.mxu0 0
      %2363 = vmatmul.mubr.bf16.gmra.mxu0 %v1366
      %v2364 = vpop.f32.mrf.mxu0
      %v2365 = vadd.f32 0.0, %v2364
      %v2366 = vpop.f32.mrf.mxu0
      %v2367 = vpop.f32.mrf.mxu0
      %v2368 = vadd.f32 0.0, %v2367
      %v2369 = vpop.f32.mrf.mxu0
      %2370 = vmatprep.mubr.bf16.mxu0 0
      %2371 = vmatmul.mubr.bf16.gmra.mxu0 %v1367
      %v2372 = vpop.f32.mrf.mxu0
      %v2373 = vadd.f32 0.0, %v2372
      %v2374 = vpop.f32.mrf.mxu0
      %v2375 = vpop.f32.mrf.mxu0
      %v2376 = vadd.f32 0.0, %v2375
      %v2377 = vpop.f32.mrf.mxu0
      %2378 = vmatprep.mubr.bf16.mxu0 0
      %2379 = vmatmul.mubr.bf16.gmra.mxu0 %v2160
      %v2380 = vpop.f32.mrf.mxu0
      %v2381 = vadd.f32 0.0, %v2380
      %v2382 = vpop.f32.mrf.mxu0
      %v2383 = vpop.f32.mrf.mxu0
      %v2384 = vadd.f32 0.0, %v2383
      %v2385 = vpop.f32.mrf.mxu0
      %2386 = vdwg.mxu0
      %v2387 = vadd.f32 %v2121, %v2261
      %v2388 = vadd.f32 %v2122, %v2264
      %v2389 = vadd.f32 %v2123, %v2269
      %v2390 = vadd.f32 %v2124, %v2272
      %v2391 = vadd.f32 %v2125, %v2277
      %v2392 = vadd.f32 %v2126, %v2280
      %v2393 = vadd.f32 %v2127, %v2285
      %v2394 = vadd.f32 %v2128, %v2288
      %v2395 = vadd.f32 %v2129, %v2293
      %v2396 = vadd.f32 %v2130, %v2296
      %v2397 = vadd.f32 %v2131, %v2301
      %v2398 = vadd.f32 %v2132, %v2304
      %v2399 = vadd.f32 %v2133, %v2309
      %v2400 = vadd.f32 %v2134, %v2312
      %v2401 = vadd.f32 %v2135, %v2317
      %v2402 = vadd.f32 %v2136, %v2320
      %v2403 = vadd.f32 %v2137, %v2325
      %v2404 = vadd.f32 %v2138, %v2328
      %v2405 = vadd.f32 %v2139, %v2333
      %v2406 = vadd.f32 %v2140, %v2336
      %v2407 = vadd.f32 %v2141, %v2341
      %v2408 = vadd.f32 %v2142, %v2344
      %v2409 = vadd.f32 %v2143, %v2349
      %v2410 = vadd.f32 %v2144, %v2352
      %v2411 = vadd.f32 %v2145, %v2357
      %v2412 = vadd.f32 %v2146, %v2360
      %v2413 = vadd.f32 %v2147, %v2365
      %v2414 = vadd.f32 %v2148, %v2368
      %v2415 = vadd.f32 %v2149, %v2373
      %v2416 = vadd.f32 %v2150, %v2376
      %v2417 = vadd.f32 %v2151, %v2381
      %v2418 = vadd.f32 %v2152, %v2384
      %s2419 = scalar_lea.vmem %s3, 384
      %v2420 = vld [vmem:[%s2419] sm:$0xf]
      %v2421 = vld [vmem:[%s2419 + $0x4] sm:$0xf]
      %v2422 = vld [vmem:[%s2419 + $0x8] sm:$0xf]
      %v2423 = vld [vmem:[%s2419 + $0xc] sm:$0xf]
      %v2424 = vld [vmem:[%s2419 + $0x10] sm:$0xf]
      %v2425 = vld [vmem:[%s2419 + $0x14] sm:$0xf]
      %v2426 = vld [vmem:[%s2419 + $0x18] sm:$0xf]
      %v2427 = vld [vmem:[%s2419 + $0x1c] sm:$0xf]
      %v2428 = vld [vmem:[%s2419 + $0x20] sm:$0xf]
      %v2429 = vld [vmem:[%s2419 + $0x24] sm:$0xf]
      %v2430 = vld [vmem:[%s2419 + $0x28] sm:$0xf]
      %v2431 = vld [vmem:[%s2419 + $0x2c] sm:$0xf]
      %v2432 = vld [vmem:[%s2419 + $0x30] sm:$0xf]
      %v2433 = vld [vmem:[%s2419 + $0x34] sm:$0xf]
      %v2434 = vld [vmem:[%s2419 + $0x38] sm:$0xf]
      %v2435 = vld [vmem:[%s2419 + $0x3c] sm:$0xf]
      %v2452 = vunpack.c.l.b16 %v2420
      %v2453 = vunpack.c.l.b16 %v2421
      %v2454 = vunpack.c.l.b16 %v2422
      %v2455 = vunpack.c.l.b16 %v2423
      %v2456 = vunpack.c.l.b16 %v2424
      %v2457 = vunpack.c.l.b16 %v2425
      %v2458 = vunpack.c.l.b16 %v2426
      %v2459 = vunpack.c.l.b16 %v2427
      %v2460 = vunpack.c.l.b16 %v2428
      %v2461 = vunpack.c.l.b16 %v2429
      %v2462 = vunpack.c.l.b16 %v2430
      %v2463 = vunpack.c.l.b16 %v2431
      %v2464 = vunpack.c.l.b16 %v2432
      %v2465 = vunpack.c.l.b16 %v2433
      %v2466 = vunpack.c.l.b16 %v2434
      %v2467 = vunpack.c.l.b16 %v2435
      %v2468 = vpack.c.b16 %v2453, %v2452
      %v2469 = vpack.c.b16 %v2455, %v2454
      %v2470 = vpack.c.b16 %v2457, %v2456
      %v2471 = vpack.c.b16 %v2459, %v2458
      %v2472 = vpack.c.b16 %v2461, %v2460
      %v2473 = vpack.c.b16 %v2463, %v2462
      %v2474 = vpack.c.b16 %v2465, %v2464
      %v2475 = vpack.c.b16 %v2467, %v2466
      %2484 = vmatprep.subr.bf16.mxu0 0
      %2485 = vmatpush1.bf16.msra.mxu0 %v2475
      %2486 = vmatprep.subr.bf16.mxu0 0
      %2487 = vmatpush1.bf16.msra.mxu0 %v2474
      %2488 = vmatprep.subr.bf16.mxu0 0
      %2489 = vmatpush1.bf16.msra.mxu0 %v2473
      %2490 = vmatprep.subr.bf16.mxu0 0
      %2491 = vmatpush1.bf16.msra.mxu0 %v2472
      %2492 = vmatprep.subr.bf16.mxu0 0
      %2493 = vmatpush1.bf16.msra.mxu0 %v2471
      %2494 = vmatprep.subr.bf16.mxu0 0
      %2495 = vmatpush1.bf16.msra.mxu0 %v2470
      %2496 = vmatprep.subr.bf16.mxu0 0
      %2497 = vmatpush1.bf16.msra.mxu0 %v2469
      %2498 = vmatprep.subr.bf16.mxu0 0
      %2499 = vmatpush1.bf16.msra.mxu0 %v2468
      %2500 = vmatprep.subr.bf16.mxu0 0
      %2501 = vmatpush2.bf16.msra.mxu0 0
      %2502 = vmatprep.subr.bf16.mxu0 0
      %2503 = vmatpush2.bf16.msra.mxu0 0
      %2504 = vmatprep.subr.bf16.mxu0 0
      %2505 = vmatpush2.bf16.msra.mxu0 0
      %2506 = vmatprep.subr.bf16.mxu0 0
      %2507 = vmatpush2.bf16.msra.mxu0 0
      %2508 = vmatprep.subr.bf16.mxu0 0
      %2509 = vmatpush2.bf16.msra.mxu0 0
      %2510 = vmatprep.subr.bf16.mxu0 0
      %2511 = vmatpush2.bf16.msra.mxu0 0
      %2512 = vmatprep.subr.bf16.mxu0 0
      %2513 = vmatpush2.bf16.msra.mxu0 0
      %2514 = vmatprep.subr.bf16.mxu0 0
      %2515 = vmatpush2.bf16.msra.mxu0 0
      %2516 = vmatprep.mubr.bf16.mxu0 0
      %2517 = vmatmul.mubr.bf16.gmra.mxu0 %v613
      %v2518 = vpop.f32.mrf.mxu0
      %v2519 = vadd.f32 0.0, %v2518
      %v2520 = vpop.f32.mrf.mxu0
      %v2521 = vpop.f32.mrf.mxu0
      %v2522 = vadd.f32 0.0, %v2521
      %v2523 = vpop.f32.mrf.mxu0
      %2524 = vmatprep.mubr.bf16.mxu0 0
      %2525 = vmatmul.mubr.bf16.gmra.mxu0 %v614
      %v2526 = vpop.f32.mrf.mxu0
      %v2527 = vadd.f32 0.0, %v2526
      %v2528 = vpop.f32.mrf.mxu0
      %v2529 = vpop.f32.mrf.mxu0
      %v2530 = vadd.f32 0.0, %v2529
      %v2531 = vpop.f32.mrf.mxu0
      %2532 = vmatprep.mubr.bf16.mxu0 0
      %2533 = vmatmul.mubr.bf16.gmra.mxu0 %v615
      %v2534 = vpop.f32.mrf.mxu0
      %v2535 = vadd.f32 0.0, %v2534
      %v2536 = vpop.f32.mrf.mxu0
      %v2537 = vpop.f32.mrf.mxu0
      %v2538 = vadd.f32 0.0, %v2537
      %v2539 = vpop.f32.mrf.mxu0
      %2540 = vmatprep.mubr.bf16.mxu0 0
      %2541 = vmatmul.mubr.bf16.gmra.mxu0 %v616
      %v2542 = vpop.f32.mrf.mxu0
      %v2543 = vadd.f32 0.0, %v2542
      %v2544 = vpop.f32.mrf.mxu0
      %v2545 = vpop.f32.mrf.mxu0
      %v2546 = vadd.f32 0.0, %v2545
      %v2547 = vpop.f32.mrf.mxu0
      %2548 = vmatprep.mubr.bf16.mxu0 0
      %2549 = vmatmul.mubr.bf16.gmra.mxu0 %v617
      %v2550 = vpop.f32.mrf.mxu0
      %v2551 = vadd.f32 0.0, %v2550
      %v2552 = vpop.f32.mrf.mxu0
      %v2553 = vpop.f32.mrf.mxu0
      %v2554 = vadd.f32 0.0, %v2553
      %v2555 = vpop.f32.mrf.mxu0
      %2556 = vmatprep.mubr.bf16.mxu0 0
      %2557 = vmatmul.mubr.bf16.gmra.mxu0 %v618
      %v2558 = vpop.f32.mrf.mxu0
      %v2559 = vadd.f32 0.0, %v2558
      %v2560 = vpop.f32.mrf.mxu0
      %v2561 = vpop.f32.mrf.mxu0
      %v2562 = vadd.f32 0.0, %v2561
      %v2563 = vpop.f32.mrf.mxu0
      %2564 = vmatprep.mubr.bf16.mxu0 0
      %2565 = vmatmul.mubr.bf16.gmra.mxu0 %v619
      %v2566 = vpop.f32.mrf.mxu0
      %v2567 = vadd.f32 0.0, %v2566
      %v2568 = vpop.f32.mrf.mxu0
      %v2569 = vpop.f32.mrf.mxu0
      %v2570 = vadd.f32 0.0, %v2569
      %v2571 = vpop.f32.mrf.mxu0
      %2572 = vmatprep.mubr.bf16.mxu0 0
      %2573 = vmatmul.mubr.bf16.gmra.mxu0 %v620
      %v2574 = vpop.f32.mrf.mxu0
      %v2575 = vadd.f32 0.0, %v2574
      %v2576 = vpop.f32.mrf.mxu0
      %v2577 = vpop.f32.mrf.mxu0
      %v2578 = vadd.f32 0.0, %v2577
      %v2579 = vpop.f32.mrf.mxu0
      %2580 = vmatprep.mubr.bf16.mxu0 0
      %2581 = vmatmul.mubr.bf16.gmra.mxu0 %v621
      %v2582 = vpop.f32.mrf.mxu0
      %v2583 = vadd.f32 0.0, %v2582
      %v2584 = vpop.f32.mrf.mxu0
      %v2585 = vpop.f32.mrf.mxu0
      %v2586 = vadd.f32 0.0, %v2585
      %v2587 = vpop.f32.mrf.mxu0
      %2588 = vmatprep.mubr.bf16.mxu0 0
      %2589 = vmatmul.mubr.bf16.gmra.mxu0 %v622
      %v2590 = vpop.f32.mrf.mxu0
      %v2591 = vadd.f32 0.0, %v2590
      %v2592 = vpop.f32.mrf.mxu0
      %v2593 = vpop.f32.mrf.mxu0
      %v2594 = vadd.f32 0.0, %v2593
      %v2595 = vpop.f32.mrf.mxu0
      %2596 = vmatprep.mubr.bf16.mxu0 0
      %2597 = vmatmul.mubr.bf16.gmra.mxu0 %v623
      %v2598 = vpop.f32.mrf.mxu0
      %v2599 = vadd.f32 0.0, %v2598
      %v2600 = vpop.f32.mrf.mxu0
      %v2601 = vpop.f32.mrf.mxu0
      %v2602 = vadd.f32 0.0, %v2601
      %v2603 = vpop.f32.mrf.mxu0
      %2604 = vmatprep.mubr.bf16.mxu0 0
      %2605 = vmatmul.mubr.bf16.gmra.mxu0 %v624
      %v2606 = vpop.f32.mrf.mxu0
      %v2607 = vadd.f32 0.0, %v2606
      %v2608 = vpop.f32.mrf.mxu0
      %v2609 = vpop.f32.mrf.mxu0
      %v2610 = vadd.f32 0.0, %v2609
      %v2611 = vpop.f32.mrf.mxu0
      %2612 = vmatprep.mubr.bf16.mxu0 0
      %2613 = vmatmul.mubr.bf16.gmra.mxu0 %v625
      %v2614 = vpop.f32.mrf.mxu0
      %v2615 = vadd.f32 0.0, %v2614
      %v2616 = vpop.f32.mrf.mxu0
      %v2617 = vpop.f32.mrf.mxu0
      %v2618 = vadd.f32 0.0, %v2617
      %v2619 = vpop.f32.mrf.mxu0
      %2620 = vmatprep.mubr.bf16.mxu0 0
      %2621 = vmatmul.mubr.bf16.gmra.mxu0 %v626
      %v2622 = vpop.f32.mrf.mxu0
      %v2623 = vadd.f32 0.0, %v2622
      %v2624 = vpop.f32.mrf.mxu0
      %v2625 = vpop.f32.mrf.mxu0
      %v2626 = vadd.f32 0.0, %v2625
      %v2627 = vpop.f32.mrf.mxu0
      %2628 = vmatprep.mubr.bf16.mxu0 0
      %2629 = vmatmul.mubr.bf16.gmra.mxu0 %v1626
      %v2630 = vpop.f32.mrf.mxu0
      %v2631 = vadd.f32 0.0, %v2630
      %v2632 = vpop.f32.mrf.mxu0
      %v2633 = vpop.f32.mrf.mxu0
      %v2634 = vadd.f32 0.0, %v2633
      %v2635 = vpop.f32.mrf.mxu0
      %2636 = vmatprep.mubr.bf16.mxu0 0
      %2637 = vmatmul.mubr.bf16.gmra.mxu0 %v611
      %v2638 = vpop.f32.mrf.mxu0
      %v2639 = vadd.f32 0.0, %v2638
      %v2640 = vpop.f32.mrf.mxu0
      %v2641 = vpop.f32.mrf.mxu0
      %v2642 = vadd.f32 0.0, %v2641
      %v2643 = vpop.f32.mrf.mxu0
      %2644 = vdwg.mxu0
      %v2645 = vadd.f32 %v2387, %v2519
      %v2646 = vadd.f32 %v2388, %v2522
      %v2647 = vadd.f32 %v2389, %v2527
      %v2648 = vadd.f32 %v2390, %v2530
      %v2649 = vadd.f32 %v2391, %v2535
      %v2650 = vadd.f32 %v2392, %v2538
      %v2651 = vadd.f32 %v2393, %v2543
      %v2652 = vadd.f32 %v2394, %v2546
      %v2653 = vadd.f32 %v2395, %v2551
      %v2654 = vadd.f32 %v2396, %v2554
      %v2655 = vadd.f32 %v2397, %v2559
      %v2656 = vadd.f32 %v2398, %v2562
      %v2657 = vadd.f32 %v2399, %v2567
      %v2658 = vadd.f32 %v2400, %v2570
      %v2659 = vadd.f32 %v2401, %v2575
      %v2660 = vadd.f32 %v2402, %v2578
      %v2661 = vadd.f32 %v2403, %v2583
      %v2662 = vadd.f32 %v2404, %v2586
      %v2663 = vadd.f32 %v2405, %v2591
      %v2664 = vadd.f32 %v2406, %v2594
      %v2665 = vadd.f32 %v2407, %v2599
      %v2666 = vadd.f32 %v2408, %v2602
      %v2667 = vadd.f32 %v2409, %v2607
      %v2668 = vadd.f32 %v2410, %v2610
      %v2669 = vadd.f32 %v2411, %v2615
      %v2670 = vadd.f32 %v2412, %v2618
      %v2671 = vadd.f32 %v2413, %v2623
      %v2672 = vadd.f32 %v2414, %v2626
      %v2673 = vadd.f32 %v2415, %v2631
      %v2674 = vadd.f32 %v2416, %v2634
      %v2675 = vadd.f32 %v2417, %v2639
      %v2676 = vadd.f32 %v2418, %v2642
      %s2677 = scalar_lea.vmem %s3, 448
      %v2678 = vld [vmem:[%s2677] sm:$0xf]
      %v2679 = vld [vmem:[%s2677 + $0x4] sm:$0xf]
      %v2680 = vld [vmem:[%s2677 + $0x8] sm:$0xf]
      %v2681 = vld [vmem:[%s2677 + $0xc] sm:$0xf]
      %v2682 = vld [vmem:[%s2677 + $0x10] sm:$0xf]
      %v2683 = vld [vmem:[%s2677 + $0x14] sm:$0xf]
      %v2684 = vld [vmem:[%s2677 + $0x18] sm:$0xf]
      %v2685 = vld [vmem:[%s2677 + $0x1c] sm:$0xf]
      %v2686 = vld [vmem:[%s2677 + $0x20] sm:$0xf]
      %v2687 = vld [vmem:[%s2677 + $0x24] sm:$0xf]
      %v2688 = vld [vmem:[%s2677 + $0x28] sm:$0xf]
      %v2689 = vld [vmem:[%s2677 + $0x2c] sm:$0xf]
      %v2690 = vld [vmem:[%s2677 + $0x30] sm:$0xf]
      %v2691 = vld [vmem:[%s2677 + $0x34] sm:$0xf]
      %v2692 = vld [vmem:[%s2677 + $0x38] sm:$0xf]
      %v2693 = vld [vmem:[%s2677 + $0x3c] sm:$0xf]
      %v2710 = vunpack.c.l.b16 %v2678
      %v2711 = vunpack.c.l.b16 %v2679
      %v2712 = vunpack.c.l.b16 %v2680
      %v2713 = vunpack.c.l.b16 %v2681
      %v2714 = vunpack.c.l.b16 %v2682
      %v2715 = vunpack.c.l.b16 %v2683
      %v2716 = vunpack.c.l.b16 %v2684
      %v2717 = vunpack.c.l.b16 %v2685
      %v2718 = vunpack.c.l.b16 %v2686
      %v2719 = vunpack.c.l.b16 %v2687
      %v2720 = vunpack.c.l.b16 %v2688
      %v2721 = vunpack.c.l.b16 %v2689
      %v2722 = vunpack.c.l.b16 %v2690
      %v2723 = vunpack.c.l.b16 %v2691
      %v2724 = vunpack.c.l.b16 %v2692
      %v2725 = vunpack.c.l.b16 %v2693
      %v2726 = vpack.c.b16 %v2711, %v2710
      %v2727 = vpack.c.b16 %v2713, %v2712
      %v2728 = vpack.c.b16 %v2715, %v2714
      %v2729 = vpack.c.b16 %v2717, %v2716
      %v2730 = vpack.c.b16 %v2719, %v2718
      %v2731 = vpack.c.b16 %v2721, %v2720
      %v2732 = vpack.c.b16 %v2723, %v2722
      %v2733 = vpack.c.b16 %v2725, %v2724
      %2742 = vmatprep.subr.bf16.mxu0 0
      %2743 = vmatpush1.bf16.msra.mxu0 %v2733
      %2744 = vmatprep.subr.bf16.mxu0 0
      %2745 = vmatpush1.bf16.msra.mxu0 %v2732
      %2746 = vmatprep.subr.bf16.mxu0 0
      %2747 = vmatpush1.bf16.msra.mxu0 %v2731
      %2748 = vmatprep.subr.bf16.mxu0 0
      %2749 = vmatpush1.bf16.msra.mxu0 %v2730
      %2750 = vmatprep.subr.bf16.mxu0 0
      %2751 = vmatpush1.bf16.msra.mxu0 %v2729
      %2752 = vmatprep.subr.bf16.mxu0 0
      %2753 = vmatpush1.bf16.msra.mxu0 %v2728
      %2754 = vmatprep.subr.bf16.mxu0 0
      %2755 = vmatpush1.bf16.msra.mxu0 %v2727
      %2756 = vmatprep.subr.bf16.mxu0 0
      %2757 = vmatpush1.bf16.msra.mxu0 %v2726
      %2758 = vmatprep.subr.bf16.mxu0 0
      %2759 = vmatpush2.bf16.msra.mxu0 0
      %2760 = vmatprep.subr.bf16.mxu0 0
      %2761 = vmatpush2.bf16.msra.mxu0 0
      %2762 = vmatprep.subr.bf16.mxu0 0
      %2763 = vmatpush2.bf16.msra.mxu0 0
      %2764 = vmatprep.subr.bf16.mxu0 0
      %2765 = vmatpush2.bf16.msra.mxu0 0
      %2766 = vmatprep.subr.bf16.mxu0 0
      %2767 = vmatpush2.bf16.msra.mxu0 0
      %2768 = vmatprep.subr.bf16.mxu0 0
      %2769 = vmatpush2.bf16.msra.mxu0 0
      %2770 = vmatprep.subr.bf16.mxu0 0
      %2771 = vmatpush2.bf16.msra.mxu0 0
      %2772 = vmatprep.subr.bf16.mxu0 0
      %2773 = vmatpush2.bf16.msra.mxu0 0
      %2774 = vmatprep.mubr.bf16.mxu0 0
      %2775 = vmatmul.mubr.bf16.gmra.mxu0 %v790
      %v2776 = vpop.f32.mrf.mxu0
      %v2777 = vadd.f32 0.0, %v2776
      %v2778 = vpop.f32.mrf.mxu0
      %v2779 = vpop.f32.mrf.mxu0
      %v2780 = vadd.f32 0.0, %v2779
      %v2781 = vpop.f32.mrf.mxu0
      %2782 = vmatprep.mubr.bf16.mxu0 0
      %2783 = vmatmul.mubr.bf16.gmra.mxu0 %v791
      %v2784 = vpop.f32.mrf.mxu0
      %v2785 = vadd.f32 0.0, %v2784
      %v2786 = vpop.f32.mrf.mxu0
      %v2787 = vpop.f32.mrf.mxu0
      %v2788 = vadd.f32 0.0, %v2787
      %v2789 = vpop.f32.mrf.mxu0
      %2790 = vmatprep.mubr.bf16.mxu0 0
      %2791 = vmatmul.mubr.bf16.gmra.mxu0 %v792
      %v2792 = vpop.f32.mrf.mxu0
      %v2793 = vadd.f32 0.0, %v2792
      %v2794 = vpop.f32.mrf.mxu0
      %v2795 = vpop.f32.mrf.mxu0
      %v2796 = vadd.f32 0.0, %v2795
      %v2797 = vpop.f32.mrf.mxu0
      %2798 = vmatprep.mubr.bf16.mxu0 0
      %2799 = vmatmul.mubr.bf16.gmra.mxu0 %v793
      %v2800 = vpop.f32.mrf.mxu0
      %v2801 = vadd.f32 0.0, %v2800
      %v2802 = vpop.f32.mrf.mxu0
      %v2803 = vpop.f32.mrf.mxu0
      %v2804 = vadd.f32 0.0, %v2803
      %v2805 = vpop.f32.mrf.mxu0
      %2806 = vmatprep.mubr.bf16.mxu0 0
      %2807 = vmatmul.mubr.bf16.gmra.mxu0 %v794
      %v2808 = vpop.f32.mrf.mxu0
      %v2809 = vadd.f32 0.0, %v2808
      %v2810 = vpop.f32.mrf.mxu0
      %v2811 = vpop.f32.mrf.mxu0
      %v2812 = vadd.f32 0.0, %v2811
      %v2813 = vpop.f32.mrf.mxu0
      %2814 = vmatprep.mubr.bf16.mxu0 0
      %2815 = vmatmul.mubr.bf16.gmra.mxu0 %v795
      %v2816 = vpop.f32.mrf.mxu0
      %v2817 = vadd.f32 0.0, %v2816
      %v2818 = vpop.f32.mrf.mxu0
      %v2819 = vpop.f32.mrf.mxu0
      %v2820 = vadd.f32 0.0, %v2819
      %v2821 = vpop.f32.mrf.mxu0
      %2822 = vmatprep.mubr.bf16.mxu0 0
      %2823 = vmatmul.mubr.bf16.gmra.mxu0 %v796
      %v2824 = vpop.f32.mrf.mxu0
      %v2825 = vadd.f32 0.0, %v2824
      %v2826 = vpop.f32.mrf.mxu0
      %v2827 = vpop.f32.mrf.mxu0
      %v2828 = vadd.f32 0.0, %v2827
      %v2829 = vpop.f32.mrf.mxu0
      %2830 = vmatprep.mubr.bf16.mxu0 0
      %2831 = vmatmul.mubr.bf16.gmra.mxu0 %v797
      %v2832 = vpop.f32.mrf.mxu0
      %v2833 = vadd.f32 0.0, %v2832
      %v2834 = vpop.f32.mrf.mxu0
      %v2835 = vpop.f32.mrf.mxu0
      %v2836 = vadd.f32 0.0, %v2835
      %v2837 = vpop.f32.mrf.mxu0
      %2838 = vmatprep.mubr.bf16.mxu0 0
      %2839 = vmatmul.mubr.bf16.gmra.mxu0 %v798
      %v2840 = vpop.f32.mrf.mxu0
      %v2841 = vadd.f32 0.0, %v2840
      %v2842 = vpop.f32.mrf.mxu0
      %v2843 = vpop.f32.mrf.mxu0
      %v2844 = vadd.f32 0.0, %v2843
      %v2845 = vpop.f32.mrf.mxu0
      %2846 = vmatprep.mubr.bf16.mxu0 0
      %2847 = vmatmul.mubr.bf16.gmra.mxu0 %v799
      %v2848 = vpop.f32.mrf.mxu0
      %v2849 = vadd.f32 0.0, %v2848
      %v2850 = vpop.f32.mrf.mxu0
      %v2851 = vpop.f32.mrf.mxu0
      %v2852 = vadd.f32 0.0, %v2851
      %v2853 = vpop.f32.mrf.mxu0
      %2854 = vmatprep.mubr.bf16.mxu0 0
      %2855 = vmatmul.mubr.bf16.gmra.mxu0 %v800
      %v2856 = vpop.f32.mrf.mxu0
      %v2857 = vadd.f32 0.0, %v2856
      %v2858 = vpop.f32.mrf.mxu0
      %v2859 = vpop.f32.mrf.mxu0
      %v2860 = vadd.f32 0.0, %v2859
      %v2861 = vpop.f32.mrf.mxu0
      %2862 = vmatprep.mubr.bf16.mxu0 0
      %2863 = vmatmul.mubr.bf16.gmra.mxu0 %v801
      %v2864 = vpop.f32.mrf.mxu0
      %v2865 = vadd.f32 0.0, %v2864
      %v2866 = vpop.f32.mrf.mxu0
      %v2867 = vpop.f32.mrf.mxu0
      %v2868 = vadd.f32 0.0, %v2867
      %v2869 = vpop.f32.mrf.mxu0
      %2870 = vmatprep.mubr.bf16.mxu0 0
      %2871 = vmatmul.mubr.bf16.gmra.mxu0 %v802
      %v2872 = vpop.f32.mrf.mxu0
      %v2873 = vadd.f32 0.0, %v2872
      %v2874 = vpop.f32.mrf.mxu0
      %v2875 = vpop.f32.mrf.mxu0
      %v2876 = vadd.f32 0.0, %v2875
      %v2877 = vpop.f32.mrf.mxu0
      %2878 = vmatprep.mubr.bf16.mxu0 0
      %2879 = vmatmul.mubr.bf16.gmra.mxu0 %v803
      %v2880 = vpop.f32.mrf.mxu0
      %v2881 = vadd.f32 0.0, %v2880
      %v2882 = vpop.f32.mrf.mxu0
      %v2883 = vpop.f32.mrf.mxu0
      %v2884 = vadd.f32 0.0, %v2883
      %v2885 = vpop.f32.mrf.mxu0
      %2886 = vmatprep.mubr.bf16.mxu0 0
      %2887 = vmatmul.mubr.bf16.gmra.mxu0 %v1894
      %v2888 = vpop.f32.mrf.mxu0
      %v2889 = vadd.f32 0.0, %v2888
      %v2890 = vpop.f32.mrf.mxu0
      %v2891 = vpop.f32.mrf.mxu0
      %v2892 = vadd.f32 0.0, %v2891
      %v2893 = vpop.f32.mrf.mxu0
      %2894 = vmatprep.mubr.bf16.mxu0 0
      %2895 = vmatmul.mubr.bf16.gmra.mxu0 %v788
      %v2896 = vpop.f32.mrf.mxu0
      %v2897 = vadd.f32 0.0, %v2896
      %v2898 = vpop.f32.mrf.mxu0
      %v2899 = vpop.f32.mrf.mxu0
      %v2900 = vadd.f32 0.0, %v2899
      %v2901 = vpop.f32.mrf.mxu0
      %2902 = vdwg.mxu0
      %v2903 = vadd.f32 %v2645, %v2777
      %v2904 = vadd.f32 %v2646, %v2780
      %v2905 = vadd.f32 %v2647, %v2785
      %v2906 = vadd.f32 %v2648, %v2788
      %v2907 = vadd.f32 %v2649, %v2793
      %v2908 = vadd.f32 %v2650, %v2796
      %v2909 = vadd.f32 %v2651, %v2801
      %v2910 = vadd.f32 %v2652, %v2804
      %v2911 = vadd.f32 %v2653, %v2809
      %v2912 = vadd.f32 %v2654, %v2812
      %v2913 = vadd.f32 %v2655, %v2817
      %v2914 = vadd.f32 %v2656, %v2820
      %v2915 = vadd.f32 %v2657, %v2825
      %v2916 = vadd.f32 %v2658, %v2828
      %v2917 = vadd.f32 %v2659, %v2833
      %v2918 = vadd.f32 %v2660, %v2836
      %v2919 = vadd.f32 %v2661, %v2841
      %v2920 = vadd.f32 %v2662, %v2844
      %v2921 = vadd.f32 %v2663, %v2849
      %v2922 = vadd.f32 %v2664, %v2852
      %v2923 = vadd.f32 %v2665, %v2857
      %v2924 = vadd.f32 %v2666, %v2860
      %v2925 = vadd.f32 %v2667, %v2865
      %v2926 = vadd.f32 %v2668, %v2868
      %v2927 = vadd.f32 %v2669, %v2873
      %v2928 = vadd.f32 %v2670, %v2876
      %v2929 = vadd.f32 %v2671, %v2881
      %v2930 = vadd.f32 %v2672, %v2884
      %v2931 = vadd.f32 %v2673, %v2889
      %v2932 = vadd.f32 %v2674, %v2892
      %v2933 = vadd.f32 %v2675, %v2897
      %v2934 = vadd.f32 %v2676, %v2900
      %s2935 = scalar_lea.vmem %s3, 512
      %v2936 = vld [vmem:[%s2935] sm:$0xf]
      %v2937 = vld [vmem:[%s2935 + $0x4] sm:$0xf]
      %v2938 = vld [vmem:[%s2935 + $0x8] sm:$0xf]
      %v2939 = vld [vmem:[%s2935 + $0xc] sm:$0xf]
      %v2940 = vld [vmem:[%s2935 + $0x10] sm:$0xf]
      %v2941 = vld [vmem:[%s2935 + $0x14] sm:$0xf]
      %v2942 = vld [vmem:[%s2935 + $0x18] sm:$0xf]
      %v2943 = vld [vmem:[%s2935 + $0x1c] sm:$0xf]
      %v2944 = vld [vmem:[%s2935 + $0x20] sm:$0xf]
      %v2945 = vld [vmem:[%s2935 + $0x24] sm:$0xf]
      %v2946 = vld [vmem:[%s2935 + $0x28] sm:$0xf]
      %v2947 = vld [vmem:[%s2935 + $0x2c] sm:$0xf]
      %v2948 = vld [vmem:[%s2935 + $0x30] sm:$0xf]
      %v2949 = vld [vmem:[%s2935 + $0x34] sm:$0xf]
      %v2950 = vld [vmem:[%s2935 + $0x38] sm:$0xf]
      %v2951 = vld [vmem:[%s2935 + $0x3c] sm:$0xf]
      %v2968 = vunpack.c.l.b16 %v2936
      %v2969 = vunpack.c.l.b16 %v2937
      %v2970 = vunpack.c.l.b16 %v2938
      %v2971 = vunpack.c.l.b16 %v2939
      %v2972 = vunpack.c.l.b16 %v2940
      %v2973 = vunpack.c.l.b16 %v2941
      %v2974 = vunpack.c.l.b16 %v2942
      %v2975 = vunpack.c.l.b16 %v2943
      %v2976 = vunpack.c.l.b16 %v2944
      %v2977 = vunpack.c.l.b16 %v2945
      %v2978 = vunpack.c.l.b16 %v2946
      %v2979 = vunpack.c.l.b16 %v2947
      %v2980 = vunpack.c.l.b16 %v2948
      %v2981 = vunpack.c.l.b16 %v2949
      %v2982 = vunpack.c.l.b16 %v2950
      %v2983 = vunpack.c.l.b16 %v2951
      %v2984 = vpack.c.b16 %v2969, %v2968
      %v2985 = vpack.c.b16 %v2971, %v2970
      %v2986 = vpack.c.b16 %v2973, %v2972
      %v2987 = vpack.c.b16 %v2975, %v2974
      %v2988 = vpack.c.b16 %v2977, %v2976
      %v2989 = vpack.c.b16 %v2979, %v2978
      %v2990 = vpack.c.b16 %v2981, %v2980
      %v2991 = vpack.c.b16 %v2983, %v2982
      %3000 = vmatprep.subr.bf16.mxu0 0
      %3001 = vmatpush1.bf16.msra.mxu0 %v2991
      %3002 = vmatprep.subr.bf16.mxu0 0
      %3003 = vmatpush1.bf16.msra.mxu0 %v2990
      %3004 = vmatprep.subr.bf16.mxu0 0
      %3005 = vmatpush1.bf16.msra.mxu0 %v2989
      %3006 = vmatprep.subr.bf16.mxu0 0
      %3007 = vmatpush1.bf16.msra.mxu0 %v2988
      %3008 = vmatprep.subr.bf16.mxu0 0
      %3009 = vmatpush1.bf16.msra.mxu0 %v2987
      %3010 = vmatprep.subr.bf16.mxu0 0
      %3011 = vmatpush1.bf16.msra.mxu0 %v2986
      %3012 = vmatprep.subr.bf16.mxu0 0
      %3013 = vmatpush1.bf16.msra.mxu0 %v2985
      %3014 = vmatprep.subr.bf16.mxu0 0
      %3015 = vmatpush1.bf16.msra.mxu0 %v2984
      %3016 = vmatprep.subr.bf16.mxu0 0
      %3017 = vmatpush2.bf16.msra.mxu0 0
      %3018 = vmatprep.subr.bf16.mxu0 0
      %3019 = vmatpush2.bf16.msra.mxu0 0
      %3020 = vmatprep.subr.bf16.mxu0 0
      %3021 = vmatpush2.bf16.msra.mxu0 0
      %3022 = vmatprep.subr.bf16.mxu0 0
      %3023 = vmatpush2.bf16.msra.mxu0 0
      %3024 = vmatprep.subr.bf16.mxu0 0
      %3025 = vmatpush2.bf16.msra.mxu0 0
      %3026 = vmatprep.subr.bf16.mxu0 0
      %3027 = vmatpush2.bf16.msra.mxu0 0
      %3028 = vmatprep.subr.bf16.mxu0 0
      %3029 = vmatpush2.bf16.msra.mxu0 0
      %3030 = vmatprep.subr.bf16.mxu0 0
      %3031 = vmatpush2.bf16.msra.mxu0 0
      %3032 = vmatprep.mubr.bf16.mxu0 0
      %3033 = vmatmul.mubr.bf16.gmra.mxu0 %v1354
      %v3034 = vpop.f32.mrf.mxu0
      %v3035 = vadd.f32 0.0, %v3034
      %v3036 = vpop.f32.mrf.mxu0
      %v3037 = vpop.f32.mrf.mxu0
      %v3038 = vadd.f32 0.0, %v3037
      %v3039 = vpop.f32.mrf.mxu0
      %3040 = vmatprep.mubr.bf16.mxu0 0
      %3041 = vmatmul.mubr.bf16.gmra.mxu0 %v1355
      %v3042 = vpop.f32.mrf.mxu0
      %v3043 = vadd.f32 0.0, %v3042
      %v3044 = vpop.f32.mrf.mxu0
      %v3045 = vpop.f32.mrf.mxu0
      %v3046 = vadd.f32 0.0, %v3045
      %v3047 = vpop.f32.mrf.mxu0
      %3048 = vmatprep.mubr.bf16.mxu0 0
      %3049 = vmatmul.mubr.bf16.gmra.mxu0 %v1356
      %v3050 = vpop.f32.mrf.mxu0
      %v3051 = vadd.f32 0.0, %v3050
      %v3052 = vpop.f32.mrf.mxu0
      %v3053 = vpop.f32.mrf.mxu0
      %v3054 = vadd.f32 0.0, %v3053
      %v3055 = vpop.f32.mrf.mxu0
      %3056 = vmatprep.mubr.bf16.mxu0 0
      %3057 = vmatmul.mubr.bf16.gmra.mxu0 %v1357
      %v3058 = vpop.f32.mrf.mxu0
      %v3059 = vadd.f32 0.0, %v3058
      %v3060 = vpop.f32.mrf.mxu0
      %v3061 = vpop.f32.mrf.mxu0
      %v3062 = vadd.f32 0.0, %v3061
      %v3063 = vpop.f32.mrf.mxu0
      %3064 = vmatprep.mubr.bf16.mxu0 0
      %3065 = vmatmul.mubr.bf16.gmra.mxu0 %v1358
      %v3066 = vpop.f32.mrf.mxu0
      %v3067 = vadd.f32 0.0, %v3066
      %v3068 = vpop.f32.mrf.mxu0
      %v3069 = vpop.f32.mrf.mxu0
      %v3070 = vadd.f32 0.0, %v3069
      %v3071 = vpop.f32.mrf.mxu0
      %3072 = vmatprep.mubr.bf16.mxu0 0
      %3073 = vmatmul.mubr.bf16.gmra.mxu0 %v1359
      %v3074 = vpop.f32.mrf.mxu0
      %v3075 = vadd.f32 0.0, %v3074
      %v3076 = vpop.f32.mrf.mxu0
      %v3077 = vpop.f32.mrf.mxu0
      %v3078 = vadd.f32 0.0, %v3077
      %v3079 = vpop.f32.mrf.mxu0
      %3080 = vmatprep.mubr.bf16.mxu0 0
      %3081 = vmatmul.mubr.bf16.gmra.mxu0 %v1360
      %v3082 = vpop.f32.mrf.mxu0
      %v3083 = vadd.f32 0.0, %v3082
      %v3084 = vpop.f32.mrf.mxu0
      %v3085 = vpop.f32.mrf.mxu0
      %v3086 = vadd.f32 0.0, %v3085
      %v3087 = vpop.f32.mrf.mxu0
      %3088 = vmatprep.mubr.bf16.mxu0 0
      %3089 = vmatmul.mubr.bf16.gmra.mxu0 %v1361
      %v3090 = vpop.f32.mrf.mxu0
      %v3091 = vadd.f32 0.0, %v3090
      %v3092 = vpop.f32.mrf.mxu0
      %v3093 = vpop.f32.mrf.mxu0
      %v3094 = vadd.f32 0.0, %v3093
      %v3095 = vpop.f32.mrf.mxu0
      %3096 = vmatprep.mubr.bf16.mxu0 0
      %3097 = vmatmul.mubr.bf16.gmra.mxu0 %v1362
      %v3098 = vpop.f32.mrf.mxu0
      %v3099 = vadd.f32 0.0, %v3098
      %v3100 = vpop.f32.mrf.mxu0
      %v3101 = vpop.f32.mrf.mxu0
      %v3102 = vadd.f32 0.0, %v3101
      %v3103 = vpop.f32.mrf.mxu0
      %3104 = vmatprep.mubr.bf16.mxu0 0
      %3105 = vmatmul.mubr.bf16.gmra.mxu0 %v1363
      %v3106 = vpop.f32.mrf.mxu0
      %v3107 = vadd.f32 0.0, %v3106
      %v3108 = vpop.f32.mrf.mxu0
      %v3109 = vpop.f32.mrf.mxu0
      %v3110 = vadd.f32 0.0, %v3109
      %v3111 = vpop.f32.mrf.mxu0
      %3112 = vmatprep.mubr.bf16.mxu0 0
      %3113 = vmatmul.mubr.bf16.gmra.mxu0 %v1364
      %v3114 = vpop.f32.mrf.mxu0
      %v3115 = vadd.f32 0.0, %v3114
      %v3116 = vpop.f32.mrf.mxu0
      %v3117 = vpop.f32.mrf.mxu0
      %v3118 = vadd.f32 0.0, %v3117
      %v3119 = vpop.f32.mrf.mxu0
      %3120 = vmatprep.mubr.bf16.mxu0 0
      %3121 = vmatmul.mubr.bf16.gmra.mxu0 %v1365
      %v3122 = vpop.f32.mrf.mxu0
      %v3123 = vadd.f32 0.0, %v3122
      %v3124 = vpop.f32.mrf.mxu0
      %v3125 = vpop.f32.mrf.mxu0
      %v3126 = vadd.f32 0.0, %v3125
      %v3127 = vpop.f32.mrf.mxu0
      %3128 = vmatprep.mubr.bf16.mxu0 0
      %3129 = vmatmul.mubr.bf16.gmra.mxu0 %v1366
      %v3130 = vpop.f32.mrf.mxu0
      %v3131 = vadd.f32 0.0, %v3130
      %v3132 = vpop.f32.mrf.mxu0
      %v3133 = vpop.f32.mrf.mxu0
      %v3134 = vadd.f32 0.0, %v3133
      %v3135 = vpop.f32.mrf.mxu0
      %3136 = vmatprep.mubr.bf16.mxu0 0
      %3137 = vmatmul.mubr.bf16.gmra.mxu0 %v1367
      %v3138 = vpop.f32.mrf.mxu0
      %v3139 = vadd.f32 0.0, %v3138
      %v3140 = vpop.f32.mrf.mxu0
      %v3141 = vpop.f32.mrf.mxu0
      %v3142 = vadd.f32 0.0, %v3141
      %v3143 = vpop.f32.mrf.mxu0
      %3144 = vmatprep.mubr.bf16.mxu0 0
      %3145 = vmatmul.mubr.bf16.gmra.mxu0 %v2160
      %v3146 = vpop.f32.mrf.mxu0
      %v3147 = vadd.f32 0.0, %v3146
      %v3148 = vpop.f32.mrf.mxu0
      %v3149 = vpop.f32.mrf.mxu0
      %v3150 = vadd.f32 0.0, %v3149
      %v3151 = vpop.f32.mrf.mxu0
      %3152 = vmatprep.mubr.bf16.mxu0 0
      %3153 = vmatmul.mubr.bf16.gmra.mxu0 %v1352
      %v3154 = vpop.f32.mrf.mxu0
      %v3155 = vadd.f32 0.0, %v3154
      %v3156 = vpop.f32.mrf.mxu0
      %v3157 = vpop.f32.mrf.mxu0
      %v3158 = vadd.f32 0.0, %v3157
      %v3159 = vpop.f32.mrf.mxu0
      %3160 = vdwg.mxu0
      %v3161 = vadd.f32 %v2903, %v3035
      %v3162 = vadd.f32 %v2904, %v3038
      %v3163 = vadd.f32 %v2905, %v3043
      %v3164 = vadd.f32 %v2906, %v3046
      %v3165 = vadd.f32 %v2907, %v3051
      %v3166 = vadd.f32 %v2908, %v3054
      %v3167 = vadd.f32 %v2909, %v3059
      %v3168 = vadd.f32 %v2910, %v3062
      %v3169 = vadd.f32 %v2911, %v3067
      %v3170 = vadd.f32 %v2912, %v3070
      %v3171 = vadd.f32 %v2913, %v3075
      %v3172 = vadd.f32 %v2914, %v3078
      %v3173 = vadd.f32 %v2915, %v3083
      %v3174 = vadd.f32 %v2916, %v3086
      %v3175 = vadd.f32 %v2917, %v3091
      %v3176 = vadd.f32 %v2918, %v3094
      %v3177 = vadd.f32 %v2919, %v3099
      %v3178 = vadd.f32 %v2920, %v3102
      %v3179 = vadd.f32 %v2921, %v3107
      %v3180 = vadd.f32 %v2922, %v3110
      %v3181 = vadd.f32 %v2923, %v3115
      %v3182 = vadd.f32 %v2924, %v3118
      %v3183 = vadd.f32 %v2925, %v3123
      %v3184 = vadd.f32 %v2926, %v3126
      %v3185 = vadd.f32 %v2927, %v3131
      %v3186 = vadd.f32 %v2928, %v3134
      %v3187 = vadd.f32 %v2929, %v3139
      %v3188 = vadd.f32 %v2930, %v3142
      %v3189 = vadd.f32 %v2931, %v3147
      %v3190 = vadd.f32 %v2932, %v3150
      %v3191 = vadd.f32 %v2933, %v3155
      %v3192 = vadd.f32 %v2934, %v3158
      %v3193 = vld [vmem:[%s4] sm:$0x1]
      %v3195 = vlaneseq
      %v3196 = vshrl.u32 %v3195, 7
      %v3197 = vsub.s32 0, %v3196
      %v3198 = vrot.slane %v3193, %v3197
      %v3200 = vadd.f32 %v3161, %v3198
      %v3201 = vadd.f32 %v3162, %v3198
      %v3202 = vadd.f32 %v3163, %v3198
      %v3203 = vadd.f32 %v3164, %v3198
      %v3204 = vadd.f32 %v3165, %v3198
      %v3205 = vadd.f32 %v3166, %v3198
      %v3206 = vadd.f32 %v3167, %v3198
      %v3207 = vadd.f32 %v3168, %v3198
      %v3208 = vadd.f32 %v3169, %v3198
      %v3209 = vadd.f32 %v3170, %v3198
      %v3210 = vadd.f32 %v3171, %v3198
      %v3211 = vadd.f32 %v3172, %v3198
      %v3212 = vadd.f32 %v3173, %v3198
      %v3213 = vadd.f32 %v3174, %v3198
      %v3214 = vadd.f32 %v3175, %v3198
      %v3215 = vadd.f32 %v3176, %v3198
      %v3216 = vadd.f32 %v3177, %v3198
      %v3217 = vadd.f32 %v3178, %v3198
      %v3218 = vadd.f32 %v3179, %v3198
      %v3219 = vadd.f32 %v3180, %v3198
      %v3220 = vadd.f32 %v3181, %v3198
      %v3221 = vadd.f32 %v3182, %v3198
      %v3222 = vadd.f32 %v3183, %v3198
      %v3223 = vadd.f32 %v3184, %v3198
      %v3224 = vadd.f32 %v3185, %v3198
      %v3225 = vadd.f32 %v3186, %v3198
      %v3226 = vadd.f32 %v3187, %v3198
      %v3227 = vadd.f32 %v3188, %v3198
      %v3228 = vadd.f32 %v3189, %v3198
      %v3229 = vadd.f32 %v3190, %v3198
      %v3230 = vadd.f32 %v3191, %v3198
      %v3231 = vadd.f32 %v3192, %v3198
      %3232 = vst [vmem:[%s291] sm:$0xff] %v3200
      %3233 = vst [vmem:[%s291 + $0x8] sm:$0xff] %v3201
      %3234 = vst [vmem:[%s291 + $0x10] sm:$0xff] %v3202
      %3235 = vst [vmem:[%s291 + $0x18] sm:$0xff] %v3203
      %3236 = vst [vmem:[%s291 + $0x20] sm:$0xff] %v3204
      %3237 = vst [vmem:[%s291 + $0x28] sm:$0xff] %v3205
      %3238 = vst [vmem:[%s291 + $0x30] sm:$0xff] %v3206
      %3239 = vst [vmem:[%s291 + $0x38] sm:$0xff] %v3207
      %3240 = vst [vmem:[%s291 + $0x40] sm:$0xff] %v3208
      %3241 = vst [vmem:[%s291 + $0x48] sm:$0xff] %v3209
      %3242 = vst [vmem:[%s291 + $0x50] sm:$0xff] %v3210
      %3243 = vst [vmem:[%s291 + $0x58] sm:$0xff] %v3211
      %3244 = vst [vmem:[%s291 + $0x60] sm:$0xff] %v3212
      %3245 = vst [vmem:[%s291 + $0x68] sm:$0xff] %v3213
      %3246 = vst [vmem:[%s291 + $0x70] sm:$0xff] %v3214
      %3247 = vst [vmem:[%s291 + $0x78] sm:$0xff] %v3215
      %3248 = vst [vmem:[%s291 + $0x80] sm:$0xff] %v3216
      %3249 = vst [vmem:[%s291 + $0x88] sm:$0xff] %v3217
      %3250 = vst [vmem:[%s291 + $0x90] sm:$0xff] %v3218
      %3251 = vst [vmem:[%s291 + $0x98] sm:$0xff] %v3219
      %3252 = vst [vmem:[%s291 + $0xa0] sm:$0xff] %v3220
      %3253 = vst [vmem:[%s291 + $0xa8] sm:$0xff] %v3221
      %3254 = vst [vmem:[%s291 + $0xb0] sm:$0xff] %v3222
      %3255 = vst [vmem:[%s291 + $0xb8] sm:$0xff] %v3223
      %3256 = vst [vmem:[%s291 + $0xc0] sm:$0xff] %v3224
      %3257 = vst [vmem:[%s291 + $0xc8] sm:$0xff] %v3225
      %3258 = vst [vmem:[%s291 + $0xd0] sm:$0xff] %v3226
      %3259 = vst [vmem:[%s291 + $0xd8] sm:$0xff] %v3227
      %3260 = vst [vmem:[%s291 + $0xe0] sm:$0xff] %v3228
      %3261 = vst [vmem:[%s291 + $0xe8] sm:$0xff] %v3229
      %3262 = vst [vmem:[%s291 + $0xf0] sm:$0xff] %v3230
      %3263 = vst [vmem:[%s291 + $0xf8] sm:$0xff] %v3231
      %v3264 = vadd.f32 %v3200, %v3201
      %v3265 = vadd.f32 %v3264, %v3202
      %v3266 = vadd.f32 %v3265, %v3203
      %v3267 = vadd.f32 %v3266, %v3204
      %v3268 = vadd.f32 %v3267, %v3205
      %v3269 = vadd.f32 %v3268, %v3206
      %v3270 = vadd.f32 %v3269, %v3207
      %v3271 = vadd.f32 %v3270, %v3208
      %v3272 = vadd.f32 %v3271, %v3209
      %v3273 = vadd.f32 %v3272, %v3210
      %v3274 = vadd.f32 %v3273, %v3211
      %v3275 = vadd.f32 %v3274, %v3212
      %v3276 = vadd.f32 %v3275, %v3213
      %v3277 = vadd.f32 %v3276, %v3214
      %v3278 = vadd.f32 %v3277, %v3215
      %v3279 = vadd.f32 %v3278, %v3216
      %v3280 = vadd.f32 %v3279, %v3217
      %v3281 = vadd.f32 %v3280, %v3218
      %v3282 = vadd.f32 %v3281, %v3219
      %v3283 = vadd.f32 %v3282, %v3220
      %v3284 = vadd.f32 %v3283, %v3221
      %v3285 = vadd.f32 %v3284, %v3222
      %v3286 = vadd.f32 %v3285, %v3223
      %v3287 = vadd.f32 %v3286, %v3224
      %v3288 = vadd.f32 %v3287, %v3225
      %v3289 = vadd.f32 %v3288, %v3226
      %v3290 = vadd.f32 %v3289, %v3227
      %v3291 = vadd.f32 %v3290, %v3228
      %v3292 = vadd.f32 %v3291, %v3229
      %v3293 = vadd.f32 %v3292, %v3230
      %v3294 = vadd.f32 %v3293, %v3231
      %v3295 = vrot.slane %v3294, 4
      %v3296 = vadd.f32 %v3294, %v3295
      %v3297 = vrot.slane %v3296, 2
      %v3298 = vadd.f32 %v3296, %v3297
      %v3299 = vrot.slane %v3298, 1
      %v3300 = vadd.f32 %v3298, %v3299
      %v3301 = vmul.f32 %v3200, %v3200
      %v3302 = vmul.f32 %v3201, %v3201
      %v3303 = vmul.f32 %v3202, %v3202
      %v3304 = vmul.f32 %v3203, %v3203
      %v3305 = vmul.f32 %v3204, %v3204
      %v3306 = vmul.f32 %v3205, %v3205
      %v3307 = vmul.f32 %v3206, %v3206
      %v3308 = vmul.f32 %v3207, %v3207
      %v3309 = vmul.f32 %v3208, %v3208
      %v3310 = vmul.f32 %v3209, %v3209
      %v3311 = vmul.f32 %v3210, %v3210
      %v3312 = vmul.f32 %v3211, %v3211
      %v3313 = vmul.f32 %v3212, %v3212
      %v3314 = vmul.f32 %v3213, %v3213
      %v3315 = vmul.f32 %v3214, %v3214
      %v3316 = vmul.f32 %v3215, %v3215
      %v3317 = vmul.f32 %v3216, %v3216
      %v3318 = vmul.f32 %v3217, %v3217
      %v3319 = vmul.f32 %v3218, %v3218
      %v3320 = vmul.f32 %v3219, %v3219
      %v3321 = vmul.f32 %v3220, %v3220
      %v3322 = vmul.f32 %v3221, %v3221
      %v3323 = vmul.f32 %v3222, %v3222
      %v3324 = vmul.f32 %v3223, %v3223
      %v3325 = vmul.f32 %v3224, %v3224
      %v3326 = vmul.f32 %v3225, %v3225
      %v3327 = vmul.f32 %v3226, %v3226
      %v3328 = vmul.f32 %v3227, %v3227
      %v3329 = vmul.f32 %v3228, %v3228
      %v3330 = vmul.f32 %v3229, %v3229
      %v3331 = vmul.f32 %v3230, %v3230
      %v3332 = vmul.f32 %v3231, %v3231
      %v3333 = vadd.f32 %v3301, %v3302
      %v3334 = vadd.f32 %v3333, %v3303
      %v3335 = vadd.f32 %v3334, %v3304
      %v3336 = vadd.f32 %v3335, %v3305
      %v3337 = vadd.f32 %v3336, %v3306
      %v3338 = vadd.f32 %v3337, %v3307
      %v3339 = vadd.f32 %v3338, %v3308
      %v3340 = vadd.f32 %v3339, %v3309
      %v3341 = vadd.f32 %v3340, %v3310
      %v3342 = vadd.f32 %v3341, %v3311
      %v3343 = vadd.f32 %v3342, %v3312
      %v3344 = vadd.f32 %v3343, %v3313
      %v3345 = vadd.f32 %v3344, %v3314
      %v3346 = vadd.f32 %v3345, %v3315
      %v3347 = vadd.f32 %v3346, %v3316
      %v3348 = vadd.f32 %v3347, %v3317
      %v3349 = vadd.f32 %v3348, %v3318
      %v3350 = vadd.f32 %v3349, %v3319
      %v3351 = vadd.f32 %v3350, %v3320
      %v3352 = vadd.f32 %v3351, %v3321
      %v3353 = vadd.f32 %v3352, %v3322
      %v3354 = vadd.f32 %v3353, %v3323
      %v3355 = vadd.f32 %v3354, %v3324
      %v3356 = vadd.f32 %v3355, %v3325
      %v3357 = vadd.f32 %v3356, %v3326
      %v3358 = vadd.f32 %v3357, %v3327
      %v3359 = vadd.f32 %v3358, %v3328
      %v3360 = vadd.f32 %v3359, %v3329
      %v3361 = vadd.f32 %v3360, %v3330
      %v3362 = vadd.f32 %v3361, %v3331
      %v3363 = vadd.f32 %v3362, %v3332
      %v3364 = vrot.slane %v3363, 4
      %v3365 = vadd.f32 %v3363, %v3364
      %v3366 = vrot.slane %v3365, 2
      %v3367 = vadd.f32 %v3365, %v3366
      %v3368 = vrot.slane %v3367, 1
      %v3369 = vadd.f32 %v3367, %v3368
      %3370 = vst [vmem:[%s295] sm:$0xff] %v3300
      %3371 = vst [vmem:[%s299] sm:$0xff] %v3369
      %p3372 = scmp.lt.s32.totalorder %s19, 1
      %s3373 = scalar_select %p3372, %s19, 1
      %s3374 = smul.addr %s3373, 32
      %s3375 = smul.addr %s3374, 8
      %s3376 = scalar_lea.vmem %s5, %s3375
      %p3377 = scmp.lt.s32.totalorder %s19, 1
      %s3378 = scalar_select %p3377, %s19, 1
      %s3379 = smul.addr %s3378, 8
      %s3380 = scalar_lea.vmem %s6, %s3379
      %p3381 = scmp.lt.s32.totalorder %s19, 1
      %s3382 = scalar_select %p3381, %s19, 1
      %s3383 = smul.addr %s3382, 8
      %s3384 = scalar_lea.vmem %s7, %s3383
      // Predicated region
      $region41: #{residual_forward.6} parent=39 // pred_check
        %p3385 = pneg %p147
      $region42: #{residual_forward.6} parent=39 // pred_check_branch
        %3387 = sbr.rel (%p3385) target = $region44
      $region43: #{residual_forward.6} parent=39 // pred_region
        _
      $region44: #{residual_forward.6} parent=39 // pred_fallthru
        _
      // Predicated region
      $region45: #{residual_forward.6} parent=39 // pred_check
        %p3388 = pneg %p173
      $region46: #{residual_forward.6} parent=39 // pred_check_branch
        %3390 = sbr.rel (%p3388) target = $region48
      $region47: #{residual_forward.6} parent=39 // pred_region
        _
      $region48: #{residual_forward.6} parent=39 // pred_fallthru
        _
      // Predicated region
      $region49: #{residual_forward.6} parent=39 // pred_check
        %p3391 = pneg %p199
      $region50: #{residual_forward.6} parent=39 // pred_check_branch
        %3393 = sbr.rel (%p3391) target = $region52
      $region51: #{residual_forward.6} parent=39 // pred_region
        _
      $region52: #{residual_forward.6} parent=39 // pred_fallthru
        _
    $region40: #{residual_forward.6} parent=5 // pred_fallthru
      _
    %p3394 = scmp.le.s32.totalorder 2, %s14
    // Predicated region
    $region53: #{residual_forward.6} parent=5 // pred_check
      %p3395 = pneg %p3394
    $region54: #{residual_forward.6} parent=5 // pred_check_branch
      %3397 = sbr.rel (%p3395) target = $region56
    $region55: #{residual_forward.6} parent=5 // pred_region
      %s3398 = ssub.s32 %s14, 2
      // Predicated region
      $region57: #{residual_forward.6} parent=55 // pred_check
        %p3399 = pneg %p153
      $region58: #{residual_forward.6} parent=55 // pred_check_branch
        %3401 = sbr.rel (%p3399) target = $region60
      $region59: #{residual_forward.6} parent=55 // pred_region
        %p3402 = scmp.lt.s32.totalorder %s20, 1
        %s3403 = scalar_select %p3402, %s20, 1
        %s3404 = smul.addr %s3403, 32
        %s3405 = smul.addr %s3404, 8
        %s3406 = scalar_lea.vmem %s5, %s3405
      $region60: #{residual_forward.6} parent=55 // pred_fallthru
        _
      // Predicated region
      $region61: #{residual_forward.6} parent=55 // pred_check
        %p3407 = pneg %p179
      $region62: #{residual_forward.6} parent=55 // pred_check_branch
        %3409 = sbr.rel (%p3407) target = $region64
      $region63: #{residual_forward.6} parent=55 // pred_region
        %p3410 = scmp.lt.s32.totalorder %s20, 1
        %s3411 = scalar_select %p3410, %s20, 1
        %s3412 = smul.addr %s3411, 8
        %s3413 = scalar_lea.vmem %s6, %s3412
      $region64: #{residual_forward.6} parent=55 // pred_fallthru
        _
      // Predicated region
      $region65: #{residual_forward.6} parent=55 // pred_check
        %p3414 = pneg %p205
      $region66: #{residual_forward.6} parent=55 // pred_check_branch
        %3416 = sbr.rel (%p3414) target = $region68
      $region67: #{residual_forward.6} parent=55 // pred_region
        %p3417 = scmp.lt.s32.totalorder %s20, 1
        %s3418 = scalar_select %p3417, %s20, 1
        %s3419 = smul.addr %s3418, 8
        %s3420 = scalar_lea.vmem %s7, %s3419
      $region68: #{residual_forward.6} parent=55 // pred_fallthru
        _
    $region56: #{residual_forward.6} parent=5 // pred_fallthru
      _
  $region6: #{residual_forward.6} parent=0 // loop_footer
    %s18 = sadd.s32 1, %s14
  $region7: #{residual_forward.6} parent=0 // loop_footer_branch
    %13 = sbr.rel target = $region3
  $region8: #{residual_forward.6} parent=0 // loop_exit
    _

</llo_original>
